<compile_context>
chip_gen: v7x
topology: tpu7x:2x2x1
jax: 0.10.0
libtpu: 0.0.40
codegen_flags: <defaults>
</compile_context>

<pallas_src>
import functools

import jax
import jax.numpy as jnp
import numpy as np
from jax.experimental import pallas as pl
from jax.experimental.pallas import tpu as pltpu


def _convlstm_seq_kernel(x_ref, h0_ref, c0_ref, w_ref, b_ref,
                         wci_ref, wcf_ref, wco_ref, mask_ref,
                         h_seq_ref, c_last_ref,
                         h_st, c_st,
                         *, K, Hp, Wp, C_in, C_out):
    # x_ref:      (1, 1, P, C_in)   pre-padded (zero halo) flattened x_t
    # h0_ref/c0_ref: (1, P, C_out)  initial state, padded-flat, zero halo
    # w_ref:      (K*K*C_cat, 4*C_out) bf16, im2col-ordered conv weight
    # b_ref:      (1, 4*C_out)
    # wci/wcf/wco_ref: (P, C_out)   peephole weights, padded-flat
    # mask_ref:   (P, 1)            1.0 on interior spatial positions, 0.0 on halo
    # h_seq_ref:  (1, 1, P, C_out)  per-timestep output
    # c_last_ref: (1, P, C_out)     final cell state (rewritten each t; last wins)
    # h_st/c_st:  (P, C_out) f32    VMEM-resident recurrent state
    t = pl.program_id(1)
    P = Hp * Wp
    pad = (K - 1) // 2
    margin = pad * Wp + pad  # max |flat tap offset|

    @pl.when(t == 0)
    def _init():
        h_st[...] = h0_ref[0]
        c_st[...] = c0_ref[0]

    x = x_ref[0, 0]                       # (P, C_in)  f32, zero halo
    h_prev = h_st[...]                    # (P, C_out) f32, zero halo
    c_prev = c_st[...]                    # (P, C_out) f32, zero halo

    # In-kernel concat([x_t, h]) along channels, then im2col via flat spatial shifts.
    xh = jnp.concatenate([x, h_prev], axis=-1)            # (P, C_cat)
    zpad = jnp.zeros((margin, xh.shape[-1]), jnp.float32)
    xh_big = jnp.concatenate([zpad, xh, zpad], axis=0)     # (P + 2*margin, C_cat)

    pieces = []
    for ky in range(K):
        for kx in range(K):
            off = margin + (ky - pad) * Wp + (kx - pad)
            pieces.append(xh_big[off:off + P, :])          # (P, C_cat)
    # Single big MXU matmul in bf16 with f32 accumulation.
    col = jnp.concatenate(pieces, axis=-1).astype(jnp.bfloat16)   # (P, K*K*C_cat)
    gates = jnp.dot(col, w_ref[...], preferred_element_type=jnp.float32)
    gates = gates + b_ref[...]                              # (P, 4*C_out)

    # PyTorch split order: input, forget, cell, output
    i_g = gates[:, 0 * C_out:1 * C_out]
    f_g = gates[:, 1 * C_out:2 * C_out]
    g_g = gates[:, 2 * C_out:3 * C_out]
    o_g = gates[:, 3 * C_out:4 * C_out]

    i_g = jax.nn.sigmoid(i_g + wci_ref[...] * c_prev)
    f_g = jax.nn.sigmoid(f_g + wcf_ref[...] * c_prev)
    c_new = f_g * c_prev + i_g * jnp.tanh(g_g)
    o_g = jax.nn.sigmoid(o_g + wco_ref[...] * c_new)
    h_new = o_g * jnp.tanh(c_new)

    # Halo rows of the padded-flat grid carry garbage (their matmul rows use wrapped
    # indices); zero them so the implicit conv zero-padding stays exact for step t+1.
    m = mask_ref[...]                                       # (P, 1)
    h_new = h_new * m
    c_new = c_new * m

    h_st[...] = h_new
    c_st[...] = c_new
    h_seq_ref[0, 0] = h_new.astype(h_seq_ref.dtype)
    c_last_ref[0] = c_new.astype(c_last_ref.dtype)


def _build_convlstm_call(B, T, C_in, C_out, K, H, W):
    pad = (K - 1) // 2
    Hp, Wp = H + 2 * pad, W + 2 * pad
    P = Hp * Wp
    C_cat = C_in + C_out
    kernel = functools.partial(_convlstm_seq_kernel, K=K, Hp=Hp, Wp=Wp,
                               C_in=C_in, C_out=C_out)
    grid_spec = pltpu.PrefetchScalarGridSpec(
        num_scalar_prefetch=0,
        grid=(B, T),
        in_specs=[
            pl.BlockSpec((1, 1, P, C_in), lambda b, t: (b, t, 0, 0)),      # x
            pl.BlockSpec((1, P, C_out), lambda b, t: (b, 0, 0)),           # h0
            pl.BlockSpec((1, P, C_out), lambda b, t: (b, 0, 0)),           # c0
            pl.BlockSpec((K * K * C_cat, 4 * C_out), lambda b, t: (0, 0)),  # w (bf16)
            pl.BlockSpec((1, 4 * C_out), lambda b, t: (0, 0)),             # bias
            pl.BlockSpec((P, C_out), lambda b, t: (0, 0)),                 # Wci
            pl.BlockSpec((P, C_out), lambda b, t: (0, 0)),                 # Wcf
            pl.BlockSpec((P, C_out), lambda b, t: (0, 0)),                 # Wco
            pl.BlockSpec((P, 1), lambda b, t: (0, 0)),                     # interior mask
        ],
        out_specs=[
            pl.BlockSpec((1, 1, P, C_out), lambda b, t: (b, t, 0, 0)),     # h per step
            pl.BlockSpec((1, P, C_out), lambda b, t: (b, 0, 0)),           # final c
        ],
        scratch_shapes=[pltpu.VMEM((P, C_out), jnp.float32),
                        pltpu.VMEM((P, C_out), jnp.float32)],
    )
    return pl.pallas_call(
        kernel,
        out_shape=(jax.ShapeDtypeStruct((B, T, P, C_out), jnp.float32),
                   jax.ShapeDtypeStruct((B, P, C_out), jnp.float32)),
        grid_spec=grid_spec,
        compiler_params=pltpu.CompilerParams(
            dimension_semantics=("parallel", "arbitrary")),
    )


def conv_lstm_block_forward(inputs_nchw, params, lstm_state=None):
    """inputs_nchw: (B, T, C_in, H, W) float32 (PyTorch convention).

    Returns (next_hs, (h, c)) with next_hs: (B, T, C_out, H, W),
    h/c: (B, C_out, H, W), matching the PyTorch module.
    """
    B, T, C_in, H, W = inputs_nchw.shape
    C_out = params["wci"].shape[-1]
    K = params["w"].shape[0]
    pad = (K - 1) // 2
    Hp, Wp = H + 2 * pad, W + 2 * pad
    P = Hp * Wp
    C_cat = C_in + C_out

    # x: NCHW -> NHWC, zero-pad spatially once for all T, flatten spatial dims.
    x = jnp.transpose(inputs_nchw, (0, 1, 3, 4, 2)).astype(jnp.float32)
    x = jnp.pad(x, ((0, 0), (0, 0), (pad, pad), (pad, pad), (0, 0)))
    x = x.reshape(B, T, P, C_in)

    def to_padded_flat_state(s_nchw):
        s = jnp.transpose(s_nchw, (0, 2, 3, 1)).astype(jnp.float32)
        s = jnp.pad(s, ((0, 0), (pad, pad), (pad, pad), (0, 0)))
        return s.reshape(B, P, C_out)

    if lstm_state is None:
        h0 = jnp.zeros((B, P, C_out), jnp.float32)
        c0 = jnp.zeros((B, P, C_out), jnp.float32)
    else:
        h0 = to_padded_flat_state(lstm_state[0])
        c0 = to_padded_flat_state(lstm_state[1])

    # Pre-reshape weights once: HWIO -> im2col 2-D (K*K*C_cat, 4*C_out), bf16 for MXU.
    w2d = params["w"].reshape(K * K * C_cat, 4 * C_out).astype(jnp.bfloat16)
    b2d = params["b"].reshape(1, 4 * C_out).astype(jnp.float32)

    def to_padded_flat_hw(p):   # (H, W, C_out) -> (P, C_out), zero halo
        p = jnp.pad(p.astype(jnp.float32), ((pad, pad), (pad, pad), (0, 0)))
        return p.reshape(P, C_out)

    wci = to_padded_flat_hw(params["wci"])
    wcf = to_padded_flat_hw(params["wcf"])
    wco = to_padded_flat_hw(params["wco"])

    mask = jnp.pad(jnp.ones((H, W, 1), jnp.float32),
                   ((pad, pad), (pad, pad), (0, 0))).reshape(P, 1)

    call = _build_convlstm_call(B, T, C_in, C_out, K, H, W)
    h_seq, c_last_flat = call(x, h0, c0, w2d, b2d, wci, wcf, wco, mask)

    # Back to NCHW, dropping the halo rows (all zeros by construction).
    h_seq = h_seq.reshape(B, T, Hp, Wp, C_out)[:, :, pad:pad + H, pad:pad + W, :]
    out = jnp.transpose(h_seq, (0, 1, 4, 2, 3))                     # (B, T, C_out, H, W)
    c_last = c_last_flat.reshape(B, Hp, Wp, C_out)[:, pad:pad + H, pad:pad + W, :]
    c_last = jnp.transpose(c_last, (0, 3, 1, 2))                    # (B, C_out, H, W)
    h_last = out[:, -1]
    return out, (h_last, c_last)


def _reference_forward(inputs_nchw, params):
    """Pure-JAX reference (lax conv, f32 HIGHEST) mirroring the PyTorch forward."""
    B, T, _, H, W = inputs_nchw.shape
    C_out = params["wci"].shape[-1]
    K = params["w"].shape[0]
    pad = (K - 1) // 2
    h = jnp.zeros((B, H, W, C_out), jnp.float32)
    c = jnp.zeros((B, H, W, C_out), jnp.float32)
    hs = []
    for t in range(T):
        x_t = jnp.transpose(inputs_nchw[:, t], (0, 2, 3, 1))
        xh = jnp.concatenate([x_t, h], axis=-1)
        gates = jax.lax.conv_general_dilated(
            xh, params["w"], window_strides=(1, 1),
            padding=[(pad, pad), (pad, pad)],
            dimension_numbers=("NHWC", "HWIO", "NHWC"),
            precision=jax.lax.Precision.HIGHEST) + params["b"].reshape(-1)
        i_g, f_g, g_g, o_g = jnp.split(gates, 4, axis=-1)
        i_g = jax.nn.sigmoid(i_g + params["wci"] * c)
        f_g = jax.nn.sigmoid(f_g + params["wcf"] * c)
        c = f_g * c + i_g * jnp.tanh(g_g)
        o_g = jax.nn.sigmoid(o_g + params["wco"] * c)
        h = o_g * jnp.tanh(c)
        hs.append(h)
    out = jnp.transpose(jnp.stack(hs, axis=1), (0, 1, 4, 2, 3))
    return out, (jnp.transpose(h, (0, 3, 1, 2)), jnp.transpose(c, (0, 3, 1, 2)))


if __name__ == "__main__":
    # Small shapes consistent with the module's forward:
    B, T, C_IN, C_OUT, IMG, K = 2, 4, 4, 32, 16, 3

    key = jax.random.PRNGKey(0)
    k_x, k_w, k_b, k_ci, k_cf, k_co = jax.random.split(key, 6)

    inputs = jax.random.normal(k_x, (B, T, C_IN, IMG, IMG), jnp.float32)

    C_cat = C_IN + C_OUT
    params = {
        # lstm_conv: Conv2d(C_in + C_out -> 4*C_out, kernel=3, stride=1, pad=1),
        # stored HWIO for the NHWC kernel layout.
        "w": 0.05 * jax.random.normal(k_w, (K, K, C_cat, 4 * C_OUT), jnp.float32),
        "b": 0.01 * jax.random.normal(k_b, (1, 4 * C_OUT), jnp.float32),
        # Peephole weights Wci/Wcf/Wco: (1, C_out, IMG, IMG) in PyTorch (zeros at
        # init); stored (IMG, IMG, C_out) here, small deterministic values so the
        # peephole path is actually exercised.
        "wci": 0.1 * jax.random.normal(k_ci, (IMG, IMG, C_OUT), jnp.float32),
        "wcf": 0.1 * jax.random.normal(k_cf, (IMG, IMG, C_OUT), jnp.float32),
        "wco": 0.1 * jax.random.normal(k_co, (IMG, IMG, C_OUT), jnp.float32),
    }

    fwd = jax.jit(conv_lstm_block_forward)
    out, (h_last, c_last) = jax.block_until_ready(fwd(inputs, params))

    ref_out, (ref_h, ref_c) = jax.block_until_ready(
        jax.jit(_reference_forward)(inputs, params))

    assert out.shape == (B, T, C_OUT, IMG, IMG)
    assert h_last.shape == (B, C_OUT, IMG, IMG)
    assert c_last.shape == (B, C_OUT, IMG, IMG)
    # Tolerance accounts for intentional bf16 MXU operands (f32 accumulation) in the
    # kernel vs. the f32-HIGHEST reference, compounded over the T-step recurrence.
    np.testing.assert_allclose(np.asarray(out), np.asarray(ref_out),
                               rtol=2e-2, atol=2e-2)
    np.testing.assert_allclose(np.asarray(h_last), np.asarray(ref_h),
                               rtol=2e-2, atol=2e-2)
    np.testing.assert_allclose(np.asarray(c_last), np.asarray(ref_c),
                               rtol=2e-2, atol=2e-2)

    print("KERNEL_OK")
</pallas_src>

<mosaic_0001>
module attributes {stable_mosaic.version = 11 : i64} {
  func.func @_convlstm_seq_kernel(%arg0: i32, %arg1: i32, %arg2: memref<1x1x324x4xf32, #tpu.memory_space<vmem>>, %arg3: memref<1x324x32xf32, #tpu.memory_space<vmem>>, %arg4: memref<1x324x32xf32, #tpu.memory_space<vmem>>, %arg5: memref<324x128xbf16, #tpu.memory_space<vmem>>, %arg6: memref<1x128xf32, #tpu.memory_space<vmem>>, %arg7: memref<324x32xf32, #tpu.memory_space<vmem>>, %arg8: memref<324x32xf32, #tpu.memory_space<vmem>>, %arg9: memref<324x32xf32, #tpu.memory_space<vmem>>, %arg10: memref<324x1xf32, #tpu.memory_space<vmem>>, %arg11: memref<1x1x324x32xf32, #tpu.memory_space<vmem>>, %arg12: memref<1x324x32xf32, #tpu.memory_space<vmem>>, %arg13: memref<324x32xf32, #tpu.memory_space<vmem>>, %arg14: memref<324x32xf32, #tpu.memory_space<vmem>>) attributes {dimension_semantics = [#tpu.dimension_semantics<parallel>, #tpu.dimension_semantics<arbitrary>], iteration_bounds = array<i64: 2, 4>, scalar_prefetch = 0 : i64, scratch_operands = 2 : i64, tpu.core_type = #tpu.core_type<tc>, window_params = [{transform_indices = @transform_0, window_bounds = array<i64: 1, 1, 324, 4>}, {transform_indices = @transform_1, window_bounds = array<i64: 1, 324, 32>}, {transform_indices = @transform_2, window_bounds = array<i64: 1, 324, 32>}, {pipeline_mode = #tpu.pipeline_mode<synchronous>, transform_indices = @transform_3, window_bounds = array<i64: 324, 128>}, {pipeline_mode = #tpu.pipeline_mode<synchronous>, transform_indices = @transform_4, window_bounds = array<i64: 1, 128>}, {pipeline_mode = #tpu.pipeline_mode<synchronous>, transform_indices = @transform_5, window_bounds = array<i64: 324, 32>}, {pipeline_mode = #tpu.pipeline_mode<synchronous>, transform_indices = @transform_6, window_bounds = array<i64: 324, 32>}, {pipeline_mode = #tpu.pipeline_mode<synchronous>, transform_indices = @transform_7, window_bounds = array<i64: 324, 32>}, {pipeline_mode = #tpu.pipeline_mode<synchronous>, transform_indices = @transform_8, window_bounds = array<i64: 324, 1>}, {transform_indices = @transform_9, window_bounds = array<i64: 1, 1, 324, 32>}, {transform_indices = @transform_10, window_bounds = array<i64: 1, 324, 32>}]} {
    %c0_i32 = arith.constant 0 : i32
    %0 = arith.cmpi eq, %arg1, %c0_i32 : i32
    %1 = arith.extui %0 : i1 to i32
    %c0_i32_0 = arith.constant 0 : i32
    %2 = arith.cmpi ne, %1, %c0_i32_0 : i32
    scf.if %2 {
      %c0_35 = arith.constant 0 : index
      %c0_36 = arith.constant 0 : index
      %c0_37 = arith.constant 0 : index
      %73 = vector.load %arg3[%c0_35, %c0_36, %c0_37] : memref<1x324x32xf32, #tpu.memory_space<vmem>>, vector<1x324x32xf32>
      %74 = vector.shape_cast %73 : vector<1x324x32xf32> to vector<324x32xf32>
      %c0_38 = arith.constant 0 : index
      %c0_39 = arith.constant 0 : index
      %75 = vector.load %arg13[%c0_38, %c0_39] : memref<324x32xf32, #tpu.memory_space<vmem>>, vector<324x32xf32>
      tpu.vector_store %arg13[%c0_38, %c0_39], %74 {strides = array<i32>} : memref<324x32xf32, #tpu.memory_space<vmem>>, vector<324x32xf32>,
      %c0_40 = arith.constant 0 : index
      %c0_41 = arith.constant 0 : index
      %c0_42 = arith.constant 0 : index
      %76 = vector.load %arg4[%c0_40, %c0_41, %c0_42] : memref<1x324x32xf32, #tpu.memory_space<vmem>>, vector<1x324x32xf32>
      %77 = vector.shape_cast %76 : vector<1x324x32xf32> to vector<324x32xf32>
      %c0_43 = arith.constant 0 : index
      %c0_44 = arith.constant 0 : index
      %78 = vector.load %arg14[%c0_43, %c0_44] : memref<324x32xf32, #tpu.memory_space<vmem>>, vector<324x32xf32>
      tpu.vector_store %arg14[%c0_43, %c0_44], %77 {strides = array<i32>} : memref<324x32xf32, #tpu.memory_space<vmem>>, vector<324x32xf32>,
    } else {
    }
    %c0 = arith.constant 0 : index
    %c0_1 = arith.constant 0 : index
    %c0_2 = arith.constant 0 : index
    %c0_3 = arith.constant 0 : index
    %3 = vector.load %arg2[%c0, %c0_1, %c0_2, %c0_3] : memref<1x1x324x4xf32, #tpu.memory_space<vmem>>, vector<1x1x324x4xf32>
    %4 = vector.shape_cast %3 : vector<1x1x324x4xf32> to vector<324x4xf32>
    %c0_4 = arith.constant 0 : index
    %c0_5 = arith.constant 0 : index
    %5 = vector.load %arg13[%c0_4, %c0_5] : memref<324x32xf32, #tpu.memory_space<vmem>>, vector<324x32xf32>
    %c0_6 = arith.constant 0 : index
    %c0_7 = arith.constant 0 : index
    %6 = vector.load %arg14[%c0_6, %c0_7] : memref<324x32xf32, #tpu.memory_space<vmem>>, vector<324x32xf32>
    %7 = tpu.concatenate %4, %5 in 1 : vector<324x4xf32>, vector<324x32xf32> -> vector<324x36xf32>
    %cst = arith.constant 0.000000e+00 : f32
    %8 = vector.broadcast %cst : f32 to vector<19x36xf32>
    %9 = tpu.concatenate %8, %7, %8 in 0 : vector<19x36xf32>, vector<324x36xf32>, vector<19x36xf32> -> vector<362x36xf32>
    %10 = vector.extract_strided_slice %9 {offsets = [0, 0], sizes = [324, 36], strides = [1, 1]} : vector<362x36xf32> to vector<324x36xf32>
    %11 = vector.extract_strided_slice %9 {offsets = [1, 0], sizes = [324, 36], strides = [1, 1]} : vector<362x36xf32> to vector<324x36xf32>
    %12 = vector.extract_strided_slice %9 {offsets = [2, 0], sizes = [324, 36], strides = [1, 1]} : vector<362x36xf32> to vector<324x36xf32>
    %13 = vector.extract_strided_slice %9 {offsets = [18, 0], sizes = [324, 36], strides = [1, 1]} : vector<362x36xf32> to vector<324x36xf32>
    %14 = vector.extract_strided_slice %9 {offsets = [19, 0], sizes = [324, 36], strides = [1, 1]} : vector<362x36xf32> to vector<324x36xf32>
    %15 = vector.extract_strided_slice %9 {offsets = [20, 0], sizes = [324, 36], strides = [1, 1]} : vector<362x36xf32> to vector<324x36xf32>
    %16 = vector.extract_strided_slice %9 {offsets = [36, 0], sizes = [324, 36], strides = [1, 1]} : vector<362x36xf32> to vector<324x36xf32>
    %17 = vector.extract_strided_slice %9 {offsets = [37, 0], sizes = [324, 36], strides = [1, 1]} : vector<362x36xf32> to vector<324x36xf32>
    %18 = vector.extract_strided_slice %9 {offsets = [38, 0], sizes = [324, 36], strides = [1, 1]} : vector<362x36xf32> to vector<324x36xf32>
    %19 = tpu.concatenate %10, %11, %12, %13, %14, %15, %16, %17, %18 in 1 : vector<324x36xf32>, vector<324x36xf32>, vector<324x36xf32>, vector<324x36xf32>, vector<324x36xf32>, vector<324x36xf32>, vector<324x36xf32>, vector<324x36xf32>, vector<324x36xf32> -> vector<324x324xf32>
    %20 = arith.truncf %19 : vector<324x324xf32> to vector<324x324xbf16>
    %c0_8 = arith.constant 0 : index
    %c0_9 = arith.constant 0 : index
    %21 = vector.load %arg5[%c0_8, %c0_9] : memref<324x128xbf16, #tpu.memory_space<vmem>>, vector<324x128xbf16>
    %cst_10 = arith.constant dense<0.000000e+00> : vector<324x128xf32>
    %22 = tpu.matmul %20, %21, %cst_10 {dimension_numbers = #tpu.dot_dimension_numbers<[1], [0], [0], [1], [0, 0, 1, 1], [], []>} : vector<324x324xbf16>, vector<324x128xbf16>, vector<324x128xf32> -> vector<324x128xf32>
    %c0_11 = arith.constant 0 : index
    %c0_12 = arith.constant 0 : index
    %23 = vector.load %arg6[%c0_11, %c0_12] : memref<1x128xf32, #tpu.memory_space<vmem>>, vector<1x128xf32>
    %24 = vector.broadcast %23 : vector<1x128xf32> to vector<324x128xf32>
    %25 = arith.addf %22, %24 : vector<324x128xf32>
    %26 = vector.extract_strided_slice %25 {offsets = [0, 0], sizes = [324, 32], strides = [1, 1]} : vector<324x128xf32> to vector<324x32xf32>
    %27 = vector.extract_strided_slice %25 {offsets = [0, 32], sizes = [324, 32], strides = [1, 1]} : vector<324x128xf32> to vector<324x32xf32>
    %28 = vector.extract_strided_slice %25 {offsets = [0, 64], sizes = [324, 32], strides = [1, 1]} : vector<324x128xf32> to vector<324x32xf32>
    %29 = vector.extract_strided_slice %25 {offsets = [0, 96], sizes = [324, 32], strides = [1, 1]} : vector<324x128xf32> to vector<324x32xf32>
    %c0_13 = arith.constant 0 : index
    %c0_14 = arith.constant 0 : index
    %30 = vector.load %arg7[%c0_13, %c0_14] : memref<324x32xf32, #tpu.memory_space<vmem>>, vector<324x32xf32>
    %31 = arith.mulf %30, %6 : vector<324x32xf32>
    %32 = arith.addf %26, %31 : vector<324x32xf32>
    %33 = arith.negf %32 : vector<324x32xf32>
    %34 = math.exp %33 : vector<324x32xf32>
    %cst_15 = arith.constant 1.000000e+00 : f32
    %35 = vector.broadcast %cst_15 : f32 to vector<324x32xf32>
    %36 = arith.addf %35, %34 : vector<324x32xf32>
    %37 = arith.divf %35, %36 : vector<324x32xf32>
    %c0_16 = arith.constant 0 : index
    %c0_17 = arith.constant 0 : index
    %38 = vector.load %arg8[%c0_16, %c0_17] : memref<324x32xf32, #tpu.memory_space<vmem>>, vector<324x32xf32>
    %39 = arith.mulf %38, %6 : vector<324x32xf32>
    %40 = arith.addf %27, %39 : vector<324x32xf32>
    %41 = arith.negf %40 : vector<324x32xf32>
    %42 = math.exp %41 : vector<324x32xf32>
    %cst_18 = arith.constant 1.000000e+00 : f32
    %43 = vector.broadcast %cst_18 : f32 to vector<324x32xf32>
    %44 = arith.addf %43, %42 : vector<324x32xf32>
    %45 = arith.divf %43, %44 : vector<324x32xf32>
    %46 = arith.mulf %45, %6 : vector<324x32xf32>
    %47 = math.tanh %28 : vector<324x32xf32>
    %48 = arith.mulf %37, %47 : vector<324x32xf32>
    %49 = arith.addf %46, %48 : vector<324x32xf32>
    %c0_19 = arith.constant 0 : index
    %c0_20 = arith.constant 0 : index
    %50 = vector.load %arg9[%c0_19, %c0_20] : memref<324x32xf32, #tpu.memory_space<vmem>>, vector<324x32xf32>
    %51 = arith.mulf %50, %49 : vector<324x32xf32>
    %52 = arith.addf %29, %51 : vector<324x32xf32>
    %53 = arith.negf %52 : vector<324x32xf32>
    %54 = math.exp %53 : vector<324x32xf32>
    %cst_21 = arith.constant 1.000000e+00 : f32
    %55 = vector.broadcast %cst_21 : f32 to vector<324x32xf32>
    %56 = arith.addf %55, %54 : vector<324x32xf32>
    %57 = arith.divf %55, %56 : vector<324x32xf32>
    %58 = math.tanh %49 : vector<324x32xf32>
    %59 = arith.mulf %57, %58 : vector<324x32xf32>
    %c0_22 = arith.constant 0 : index
    %c0_23 = arith.constant 0 : index
    %60 = vector.load %arg10[%c0_22, %c0_23] : memref<324x1xf32, #tpu.memory_space<vmem>>, vector<324x1xf32>
    %61 = vector.broadcast %60 : vector<324x1xf32> to vector<324x32xf32>
    %62 = arith.mulf %59, %61 : vector<324x32xf32>
    %63 = vector.broadcast %60 : vector<324x1xf32> to vector<324x32xf32>
    %64 = arith.mulf %49, %63 : vector<324x32xf32>
    %c0_24 = arith.constant 0 : index
    %c0_25 = arith.constant 0 : index
    %65 = vector.load %arg13[%c0_24, %c0_25] : memref<324x32xf32, #tpu.memory_space<vmem>>, vector<324x32xf32>
    tpu.vector_store %arg13[%c0_24, %c0_25], %62 {strides = array<i32>} : memref<324x32xf32, #tpu.memory_space<vmem>>, vector<324x32xf32>,
    %c0_26 = arith.constant 0 : index
    %c0_27 = arith.constant 0 : index
    %66 = vector.load %arg14[%c0_26, %c0_27] : memref<324x32xf32, #tpu.memory_space<vmem>>, vector<324x32xf32>
    tpu.vector_store %arg14[%c0_26, %c0_27], %64 {strides = array<i32>} : memref<324x32xf32, #tpu.memory_space<vmem>>, vector<324x32xf32>,
    %c0_28 = arith.constant 0 : index
    %c0_29 = arith.constant 0 : index
    %c0_30 = arith.constant 0 : index
    %c0_31 = arith.constant 0 : index
    %67 = vector.load %arg11[%c0_28, %c0_29, %c0_30, %c0_31] : memref<1x1x324x32xf32, #tpu.memory_space<vmem>>, vector<1x1x324x32xf32>
    %68 = vector.shape_cast %67 : vector<1x1x324x32xf32> to vector<324x32xf32>
    %69 = vector.shape_cast %62 : vector<324x32xf32> to vector<1x1x324x32xf32>
    tpu.vector_store %arg11[%c0_28, %c0_29, %c0_30, %c0_31], %69 {strides = array<i32>} : memref<1x1x324x32xf32, #tpu.memory_space<vmem>>, vector<1x1x324x32xf32>,
    %c0_32 = arith.constant 0 : index
    %c0_33 = arith.constant 0 : index
    %c0_34 = arith.constant 0 : index
    %70 = vector.load %arg12[%c0_32, %c0_33, %c0_34] : memref<1x324x32xf32, #tpu.memory_space<vmem>>, vector<1x324x32xf32>
    %71 = vector.shape_cast %70 : vector<1x324x32xf32> to vector<324x32xf32>
    %72 = vector.shape_cast %64 : vector<324x32xf32> to vector<1x324x32xf32>
    tpu.vector_store %arg12[%c0_32, %c0_33, %c0_34], %72 {strides = array<i32>} : memref<1x324x32xf32, #tpu.memory_space<vmem>>, vector<1x324x32xf32>,
    return
  }
  func.func @transform_0(%arg0: i32, %arg1: i32) -> (i32, i32, i32, i32) {
    %c0_i32 = arith.constant 0 : i32
    %c0_i32_0 = arith.constant 0 : i32
    %c0_i32_1 = arith.constant 0 : i32
    return %arg0, %arg1, %c0_i32, %c0_i32_0 : i32, i32, i32, i32
  }
  func.func @transform_1(%arg0: i32, %arg1: i32) -> (i32, i32, i32) {
    %c0_i32 = arith.constant 0 : i32
    %c0_i32_0 = arith.constant 0 : i32
    %c0_i32_1 = arith.constant 0 : i32
    return %arg0, %c0_i32, %c0_i32_0 : i32, i32, i32
  }
  func.func @transform_2(%arg0: i32, %arg1: i32) -> (i32, i32, i32) {
    %c0_i32 = arith.constant 0 : i32
    %c0_i32_0 = arith.constant 0 : i32
    %c0_i32_1 = arith.constant 0 : i32
    return %arg0, %c0_i32, %c0_i32_0 : i32, i32, i32
  }
  func.func @transform_3(%arg0: i32, %arg1: i32) -> (i32, i32) {
    %c0_i32 = arith.constant 0 : i32
    %c0_i32_0 = arith.constant 0 : i32
    %c0_i32_1 = arith.constant 0 : i32
    return %c0_i32, %c0_i32_0 : i32, i32
  }
  func.func @transform_4(%arg0: i32, %arg1: i32) -> (i32, i32) {
    %c0_i32 = arith.constant 0 : i32
    %c0_i32_0 = arith.constant 0 : i32
    %c0_i32_1 = arith.constant 0 : i32
    return %c0_i32, %c0_i32_0 : i32, i32
  }
  func.func @transform_5(%arg0: i32, %arg1: i32) -> (i32, i32) {
    %c0_i32 = arith.constant 0 : i32
    %c0_i32_0 = arith.constant 0 : i32
    %c0_i32_1 = arith.constant 0 : i32
    return %c0_i32, %c0_i32_0 : i32, i32
  }
  func.func @transform_6(%arg0: i32, %arg1: i32) -> (i32, i32) {
    %c0_i32 = arith.constant 0 : i32
    %c0_i32_0 = arith.constant 0 : i32
    %c0_i32_1 = arith.constant 0 : i32
    return %c0_i32, %c0_i32_0 : i32, i32
  }
  func.func @transform_7(%arg0: i32, %arg1: i32) -> (i32, i32) {
    %c0_i32 = arith.constant 0 : i32
    %c0_i32_0 = arith.constant 0 : i32
    %c0_i32_1 = arith.constant 0 : i32
    return %c0_i32, %c0_i32_0 : i32, i32
  }
  func.func @transform_8(%arg0: i32, %arg1: i32) -> (i32, i32) {
    %c0_i32 = arith.constant 0 : i32
    %c0_i32_0 = arith.constant 0 : i32
    %c0_i32_1 = arith.constant 0 : i32
    return %c0_i32, %c0_i32_0 : i32, i32
  }
  func.func @transform_9(%arg0: i32, %arg1: i32) -> (i32, i32, i32, i32) {
    %c0_i32 = arith.constant 0 : i32
    %c0_i32_0 = arith.constant 0 : i32
    %c0_i32_1 = arith.constant 0 : i32
    return %arg0, %arg1, %c0_i32, %c0_i32_0 : i32, i32, i32, i32
  }
  func.func @transform_10(%arg0: i32, %arg1: i32) -> (i32, i32, i32) {
    %c0_i32 = arith.constant 0 : i32
    %c0_i32_0 = arith.constant 0 : i32
    %c0_i32_1 = arith.constant 0 : i32
    return %arg0, %c0_i32, %c0_i32_0 : i32, i32, i32
  }
}

</mosaic_0001>

<llo_original>
// kernel: conv_lstm_block_forward.1
$region0: #{conv_lstm_block_forward.1}
  #allocation0 [shape = 'u32[]', space=smem, size = 0x4, offset = 0x4, fixed_abs, tag = 'smem constant byte address 0x4 - core index']
  #allocation1 [shape = 'u32[144,128]{1,0:T(1,128)}', space=vmem, size = 0x12000, scoped, tag = 'internal scratch']
  #allocation2 [shape = 'f32[324,32]{1,0:T(8,128)}', space=vmem, size = 0x29000, scoped, tag = 'scratch operand']
  #allocation3 [shape = 'f32[324,32]{1,0:T(8,128)}', space=vmem, size = 0x29000, scoped, tag = 'scratch operand']
  %s0 = inlined_call_operand.vmem [shape: f32[2,4,324,4], index: 0, kind: input, shape index: {}]
  %s1 = inlined_call_operand.vmem [shape: f32[2,324,32], index: 1, kind: input, shape index: {}, may-alias: {1,2}]
  %s2 = inlined_call_operand.vmem [shape: f32[2,324,32], index: 2, kind: input, shape index: {}, may-alias: {1,2}]
  %s3 = inlined_call_operand.vmem [shape: bf16[324,128], index: 3, kind: input, shape index: {}]
  %s4 = inlined_call_operand.vmem [shape: f32[1,128], index: 4, kind: input, shape index: {}]
  %s5 = inlined_call_operand.vmem [shape: f32[324,32], index: 5, kind: input, shape index: {}]
  %s6 = inlined_call_operand.vmem [shape: f32[324,32], index: 6, kind: input, shape index: {}]
  %s7 = inlined_call_operand.vmem [shape: f32[324,32], index: 7, kind: input, shape index: {}]
  %s8 = inlined_call_operand.vmem [shape: f32[324,1], index: 8, kind: input, shape index: {}]
  %s9 = inlined_call_operand.vmem [shape: f32[2,4,324,32], index: 9, kind: output, shape index: {0}]
  %s10 = inlined_call_operand.vmem [shape: f32[2,324,32], index: 10, kind: output, shape index: {1}]
  %11 = xla_tuple %s9, %s10
  %s12 = sld [smem:[#allocation0]]
  $region81: #{conv_lstm_block_forward.1} parent=0
    _
  %s14 = ssub.s32 1, %s12
  %s15 = scalar_select 0, %s14, %s12
  loop: start=0, step=1, limit=10
  $region2: #{conv_lstm_block_forward.1} parent=0 // loop_pre_header
    _
  $region3: #{conv_lstm_block_forward.1} parent=0 // loop_header
    %s17 = sphi 0, %s21
    %p18 = scmp.ge.s32.totalorder %s17, 10
    %s24 = sphi 0, %s36
    %s25 = sphi 0, %s32
    %s26 = sphi 0, %s24
    %s27 = sphi 0, %s25
    %s28 = sphi 0, %s26
    %s29 = sphi 0, %s27
    %s41 = sphi 0, %s43
    %s44 = sphi 0, %s41
    %s45 = sphi 0, %s44
    %s61 = sphi 0, %s45
    %s67 = sphi 0, %s69
    %s70 = sphi 0, %s67
    %s71 = sphi 0, %s70
    %s87 = sphi 0, %s71
    %s93 = sphi 0, %s95
    %s96 = sphi 0, %s93
    %s97 = sphi 0, %s96
    %s113 = sphi 0, %s97
    %s117 = sphi 0, %s117
    %s119 = sphi 0, %s117
    %s120 = sphi 0, %s119
    %s134 = sphi 0, %s120
    %s138 = sphi 0, %s138
    %s140 = sphi 0, %s138
    %s141 = sphi 0, %s140
    %s155 = sphi 0, %s141
    %s159 = sphi 0, %s159
    %s161 = sphi 0, %s159
    %s162 = sphi 0, %s161
    %s176 = sphi 0, %s162
    %s180 = sphi 0, %s180
    %s182 = sphi 0, %s180
    %s183 = sphi 0, %s182
    %s197 = sphi 0, %s183
    %s201 = sphi 0, %s201
    %s203 = sphi 0, %s201
    %s204 = sphi 0, %s203
    %s218 = sphi 0, %s204
    %s222 = sphi 0, %s222
    %s224 = sphi 0, %s222
    %s225 = sphi 0, %s224
    %s239 = sphi 0, %s225
    %s247 = sphi 0, %s249
    %s250 = sphi 0, %s247
    %s251 = sphi 0, %s250
    %s267 = sphi 0, %s251
    %s273 = sphi 0, %s275
    %s276 = sphi 0, %s273
    %s277 = sphi 0, %s276
    %s293 = sphi 0, %s277
  $region4: #{conv_lstm_block_forward.1} parent=0 // loop_header_branch
    %20 = sbr.rel (%p18) target = $region8
  $region5: #{conv_lstm_block_forward.1} parent=0 // loop_body
    %s22 = ssub.s32 %s17, 1
    %s23 = ssub.s32 %s17, 2
    %s30 = sadd.s32 1, %s25
    %p31 = scmp.ge.s32.totalorder %s30, 4
    %s32 = scalar_select %p31, 0, %s30
    %s33 = sadd.s32 1, %s24
    %s34 = scalar_select %p31, %s33, %s24
    %p35 = scmp.ge.s32.totalorder %s34, 2
    %s36 = scalar_select %p35, 0, %s34
    %s37 = ssub.s32 %s24, %s36
    %s38 = ssub.s32 %s25, %s32
    %s39 = sor.u32 %s37, %s38
    %p40 = scmp.eq.s32.totalorder %s39, 0
    %s42 = sadd.s32 %s41, 1
    %s43 = scalar_select %p40, %s41, %s42
    %p46 = pneg %p40
    %p47 = scmp.eq.s32.totalorder %s17, 7
    %p48 = por %p46, %p47
    %p49 = scmp.ne.s32.totalorder %s41, %s44
    %p50 = scmp.eq.s32.totalorder %s17, 0
    %p51 = por %p49, %p50
    %p52 = scmp.ne.s32.totalorder %s41, %s44
    %p53 = scmp.eq.s32.totalorder %s22, 7
    %p54 = por %p52, %p53
    %p55 = scmp.ne.s32.totalorder %s44, %s45
    %p56 = scmp.eq.s32.totalorder %s22, 0
    %p57 = por %p55, %p56
    %p58 = scmp.ne.s32.totalorder %s44, %s45
    %p59 = scmp.eq.s32.totalorder %s23, 7
    %p60 = por %p58, %p59
    %p62 = scmp.ne.s32.totalorder %s45, %s61
    %p63 = scmp.eq.s32.totalorder %s23, 0
    %p64 = por %p62, %p63
    %s65 = ssub.s32 %s24, %s36
    %p66 = scmp.eq.s32.totalorder %s65, 0
    %s68 = sadd.s32 %s67, 1
    %s69 = scalar_select %p66, %s67, %s68
    %p72 = pneg %p66
    %p73 = scmp.eq.s32.totalorder %s17, 7
    %p74 = por %p72, %p73
    %p75 = scmp.ne.s32.totalorder %s67, %s70
    %p76 = scmp.eq.s32.totalorder %s17, 0
    %p77 = por %p75, %p76
    %p78 = scmp.ne.s32.totalorder %s67, %s70
    %p79 = scmp.eq.s32.totalorder %s22, 7
    %p80 = por %p78, %p79
    %p81 = scmp.ne.s32.totalorder %s70, %s71
    %p82 = scmp.eq.s32.totalorder %s22, 0
    %p83 = por %p81, %p82
    %p84 = scmp.ne.s32.totalorder %s70, %s71
    %p85 = scmp.eq.s32.totalorder %s23, 7
    %p86 = por %p84, %p85
    %p88 = scmp.ne.s32.totalorder %s71, %s87
    %p89 = scmp.eq.s32.totalorder %s23, 0
    %p90 = por %p88, %p89
    %s91 = ssub.s32 %s24, %s36
    %p92 = scmp.eq.s32.totalorder %s91, 0
    %s94 = sadd.s32 %s93, 1
    %s95 = scalar_select %p92, %s93, %s94
    %p98 = pneg %p92
    %p99 = scmp.eq.s32.totalorder %s17, 7
    %p100 = por %p98, %p99
    %p101 = scmp.ne.s32.totalorder %s93, %s96
    %p102 = scmp.eq.s32.totalorder %s17, 0
    %p103 = por %p101, %p102
    %p104 = scmp.ne.s32.totalorder %s93, %s96
    %p105 = scmp.eq.s32.totalorder %s22, 7
    %p106 = por %p104, %p105
    %p107 = scmp.ne.s32.totalorder %s96, %s97
    %p108 = scmp.eq.s32.totalorder %s22, 0
    %p109 = por %p107, %p108
    %p110 = scmp.ne.s32.totalorder %s96, %s97
    %p111 = scmp.eq.s32.totalorder %s23, 7
    %p112 = por %p110, %p111
    %p114 = scmp.ne.s32.totalorder %s97, %s113
    %p115 = scmp.eq.s32.totalorder %s23, 0
    %p116 = por %p114, %p115
    %s118 = sadd.s32 %s117, 1
    %p121 = scmp.eq.s32.totalorder %s17, 7
    %p122 = scmp.ne.s32.totalorder %s117, %s119
    %p123 = scmp.eq.s32.totalorder %s17, 0
    %p124 = por %p122, %p123
    %p125 = scmp.ne.s32.totalorder %s117, %s119
    %p126 = scmp.eq.s32.totalorder %s22, 7
    %p127 = por %p125, %p126
    %p128 = scmp.ne.s32.totalorder %s119, %s120
    %p129 = scmp.eq.s32.totalorder %s22, 0
    %p130 = por %p128, %p129
    %p131 = scmp.ne.s32.totalorder %s119, %s120
    %p132 = scmp.eq.s32.totalorder %s23, 7
    %p133 = por %p131, %p132
    %p135 = scmp.ne.s32.totalorder %s120, %s134
    %p136 = scmp.eq.s32.totalorder %s23, 0
    %p137 = por %p135, %p136
    %s139 = sadd.s32 %s138, 1
    %p142 = scmp.eq.s32.totalorder %s17, 7
    %p143 = scmp.ne.s32.totalorder %s138, %s140
    %p144 = scmp.eq.s32.totalorder %s17, 0
    %p145 = por %p143, %p144
    %p146 = scmp.ne.s32.totalorder %s138, %s140
    %p147 = scmp.eq.s32.totalorder %s22, 7
    %p148 = por %p146, %p147
    %p149 = scmp.ne.s32.totalorder %s140, %s141
    %p150 = scmp.eq.s32.totalorder %s22, 0
    %p151 = por %p149, %p150
    %p152 = scmp.ne.s32.totalorder %s140, %s141
    %p153 = scmp.eq.s32.totalorder %s23, 7
    %p154 = por %p152, %p153
    %p156 = scmp.ne.s32.totalorder %s141, %s155
    %p157 = scmp.eq.s32.totalorder %s23, 0
    %p158 = por %p156, %p157
    %s160 = sadd.s32 %s159, 1
    %p163 = scmp.eq.s32.totalorder %s17, 7
    %p164 = scmp.ne.s32.totalorder %s159, %s161
    %p165 = scmp.eq.s32.totalorder %s17, 0
    %p166 = por %p164, %p165
    %p167 = scmp.ne.s32.totalorder %s159, %s161
    %p168 = scmp.eq.s32.totalorder %s22, 7
    %p169 = por %p167, %p168
    %p170 = scmp.ne.s32.totalorder %s161, %s162
    %p171 = scmp.eq.s32.totalorder %s22, 0
    %p172 = por %p170, %p171
    %p173 = scmp.ne.s32.totalorder %s161, %s162
    %p174 = scmp.eq.s32.totalorder %s23, 7
    %p175 = por %p173, %p174
    %p177 = scmp.ne.s32.totalorder %s162, %s176
    %p178 = scmp.eq.s32.totalorder %s23, 0
    %p179 = por %p177, %p178
    %s181 = sadd.s32 %s180, 1
    %p184 = scmp.eq.s32.totalorder %s17, 7
    %p185 = scmp.ne.s32.totalorder %s180, %s182
    %p186 = scmp.eq.s32.totalorder %s17, 0
    %p187 = por %p185, %p186
    %p188 = scmp.ne.s32.totalorder %s180, %s182
    %p189 = scmp.eq.s32.totalorder %s22, 7
    %p190 = por %p188, %p189
    %p191 = scmp.ne.s32.totalorder %s182, %s183
    %p192 = scmp.eq.s32.totalorder %s22, 0
    %p193 = por %p191, %p192
    %p194 = scmp.ne.s32.totalorder %s182, %s183
    %p195 = scmp.eq.s32.totalorder %s23, 7
    %p196 = por %p194, %p195
    %p198 = scmp.ne.s32.totalorder %s183, %s197
    %p199 = scmp.eq.s32.totalorder %s23, 0
    %p200 = por %p198, %p199
    %s202 = sadd.s32 %s201, 1
    %p205 = scmp.eq.s32.totalorder %s17, 7
    %p206 = scmp.ne.s32.totalorder %s201, %s203
    %p207 = scmp.eq.s32.totalorder %s17, 0
    %p208 = por %p206, %p207
    %p209 = scmp.ne.s32.totalorder %s201, %s203
    %p210 = scmp.eq.s32.totalorder %s22, 7
    %p211 = por %p209, %p210
    %p212 = scmp.ne.s32.totalorder %s203, %s204
    %p213 = scmp.eq.s32.totalorder %s22, 0
    %p214 = por %p212, %p213
    %p215 = scmp.ne.s32.totalorder %s203, %s204
    %p216 = scmp.eq.s32.totalorder %s23, 7
    %p217 = por %p215, %p216
    %p219 = scmp.ne.s32.totalorder %s204, %s218
    %p220 = scmp.eq.s32.totalorder %s23, 0
    %p221 = por %p219, %p220
    %s223 = sadd.s32 %s222, 1
    %p226 = scmp.eq.s32.totalorder %s17, 7
    %p227 = scmp.ne.s32.totalorder %s222, %s224
    %p228 = scmp.eq.s32.totalorder %s17, 0
    %p229 = por %p227, %p228
    %p230 = scmp.ne.s32.totalorder %s222, %s224
    %p231 = scmp.eq.s32.totalorder %s22, 7
    %p232 = por %p230, %p231
    %p233 = scmp.ne.s32.totalorder %s224, %s225
    %p234 = scmp.eq.s32.totalorder %s22, 0
    %p235 = por %p233, %p234
    %p236 = scmp.ne.s32.totalorder %s224, %s225
    %p237 = scmp.eq.s32.totalorder %s23, 7
    %p238 = por %p236, %p237
    %p240 = scmp.ne.s32.totalorder %s225, %s239
    %p241 = scmp.eq.s32.totalorder %s23, 0
    %p242 = por %p240, %p241
    %s243 = ssub.s32 %s24, %s36
    %s244 = ssub.s32 %s25, %s32
    %s245 = sor.u32 %s243, %s244
    %p246 = scmp.eq.s32.totalorder %s245, 0
    %s248 = sadd.s32 %s247, 1
    %s249 = scalar_select %p246, %s247, %s248
    %p252 = pneg %p246
    %p253 = scmp.eq.s32.totalorder %s17, 7
    %p254 = por %p252, %p253
    %p255 = scmp.ne.s32.totalorder %s247, %s250
    %p256 = scmp.eq.s32.totalorder %s17, 0
    %p257 = por %p255, %p256
    %p258 = scmp.ne.s32.totalorder %s247, %s250
    %p259 = scmp.eq.s32.totalorder %s22, 7
    %p260 = por %p258, %p259
    %p261 = scmp.ne.s32.totalorder %s250, %s251
    %p262 = scmp.eq.s32.totalorder %s22, 0
    %p263 = por %p261, %p262
    %p264 = scmp.ne.s32.totalorder %s250, %s251
    %p265 = scmp.eq.s32.totalorder %s23, 7
    %p266 = por %p264, %p265
    %p268 = scmp.ne.s32.totalorder %s251, %s267
    %p269 = scmp.eq.s32.totalorder %s23, 0
    %p270 = por %p268, %p269
    %s271 = ssub.s32 %s24, %s36
    %p272 = scmp.eq.s32.totalorder %s271, 0
    %s274 = sadd.s32 %s273, 1
    %s275 = scalar_select %p272, %s273, %s274
    %p278 = pneg %p272
    %p279 = scmp.eq.s32.totalorder %s17, 7
    %p280 = por %p278, %p279
    %p281 = scmp.ne.s32.totalorder %s273, %s276
    %p282 = scmp.eq.s32.totalorder %s17, 0
    %p283 = por %p281, %p282
    %p284 = scmp.ne.s32.totalorder %s273, %s276
    %p285 = scmp.eq.s32.totalorder %s22, 7
    %p286 = por %p284, %p285
    %p287 = scmp.ne.s32.totalorder %s276, %s277
    %p288 = scmp.eq.s32.totalorder %s22, 0
    %p289 = por %p287, %p288
    %p290 = scmp.ne.s32.totalorder %s276, %s277
    %p291 = scmp.eq.s32.totalorder %s23, 7
    %p292 = por %p290, %p291
    %p294 = scmp.ne.s32.totalorder %s277, %s293
    %p295 = scmp.eq.s32.totalorder %s23, 0
    %p296 = por %p294, %p295
    %p297 = scmp.le.s32.totalorder 1, %s17
    %p298 = scmp.lt.s32.totalorder %s17, 9
    %p299 = pnand %p297, %p298
    %p300 = pneg %p299
    // Predicated region
    $region9: #{conv_lstm_block_forward.1} parent=5 // pred_check
      _
    $region10: #{conv_lstm_block_forward.1} parent=5 // pred_check_branch
      %302 = sbr.rel (%p299) target = $region12
    $region11: #{conv_lstm_block_forward.1} parent=5 // pred_region
      %s303 = ssub.s32 %s17, 1
      // Predicated region
      $region13: #{conv_lstm_block_forward.1} parent=11 // pred_check
        %p304 = pneg %p130
      $region14: #{conv_lstm_block_forward.1} parent=11 // pred_check_branch
        %306 = sbr.rel (%p304) target = $region16
      $region15: #{conv_lstm_block_forward.1} parent=11 // pred_region
        _
      $region16: #{conv_lstm_block_forward.1} parent=11 // pred_fallthru
        _
      // Predicated region
      $region17: #{conv_lstm_block_forward.1} parent=11 // pred_check
        %p307 = pneg %p151
      $region18: #{conv_lstm_block_forward.1} parent=11 // pred_check_branch
        %309 = sbr.rel (%p307) target = $region20
      $region19: #{conv_lstm_block_forward.1} parent=11 // pred_region
        _
      $region20: #{conv_lstm_block_forward.1} parent=11 // pred_fallthru
        _
      // Predicated region
      $region21: #{conv_lstm_block_forward.1} parent=11 // pred_check
        %p310 = pneg %p172
      $region22: #{conv_lstm_block_forward.1} parent=11 // pred_check_branch
        %312 = sbr.rel (%p310) target = $region24
      $region23: #{conv_lstm_block_forward.1} parent=11 // pred_region
        _
      $region24: #{conv_lstm_block_forward.1} parent=11 // pred_fallthru
        _
      // Predicated region
      $region25: #{conv_lstm_block_forward.1} parent=11 // pred_check
        %p313 = pneg %p193
      $region26: #{conv_lstm_block_forward.1} parent=11 // pred_check_branch
        %315 = sbr.rel (%p313) target = $region28
      $region27: #{conv_lstm_block_forward.1} parent=11 // pred_region
        _
      $region28: #{conv_lstm_block_forward.1} parent=11 // pred_fallthru
        _
      // Predicated region
      $region29: #{conv_lstm_block_forward.1} parent=11 // pred_check
        %p316 = pneg %p214
      $region30: #{conv_lstm_block_forward.1} parent=11 // pred_check_branch
        %318 = sbr.rel (%p316) target = $region32
      $region31: #{conv_lstm_block_forward.1} parent=11 // pred_region
        _
      $region32: #{conv_lstm_block_forward.1} parent=11 // pred_fallthru
        _
      // Predicated region
      $region33: #{conv_lstm_block_forward.1} parent=11 // pred_check
        %p319 = pneg %p235
      $region34: #{conv_lstm_block_forward.1} parent=11 // pred_check_branch
        %321 = sbr.rel (%p319) target = $region36
      $region35: #{conv_lstm_block_forward.1} parent=11 // pred_region
        _
      $region36: #{conv_lstm_block_forward.1} parent=11 // pred_fallthru
        _
    $region12: #{conv_lstm_block_forward.1} parent=5 // pred_fallthru
      _
    %p322 = scmp.lt.s32.totalorder %s17, 8
    // Predicated region
    $region37: #{conv_lstm_block_forward.1} parent=5 // pred_check
      %p323 = pneg %p322
    $region38: #{conv_lstm_block_forward.1} parent=5 // pred_check_branch
      %325 = sbr.rel (%p323) target = $region40
    $region39: #{conv_lstm_block_forward.1} parent=5 // pred_region
      // Predicated region
      $region41: #{conv_lstm_block_forward.1} parent=39 // pred_check
        %p326 = pneg %p51
      $region42: #{conv_lstm_block_forward.1} parent=39 // pred_check_branch
        %328 = sbr.rel (%p326) target = $region44
      $region43: #{conv_lstm_block_forward.1} parent=39 // pred_region
        %p329 = scmp.lt.s32.totalorder %s24, 1
        %s330 = scalar_select %p329, %s24, 1
        %p331 = scmp.lt.s32.totalorder %s25, 3
        %s332 = scalar_select %p331, %s25, 3
        %s333 = smul.addr %s332, 41
        %s334 = smul.addr %s330, 164
        %s335 = sadd.s32 %s333, %s334
        %s336 = smul.addr %s335, 8
        %s337 = scalar_lea.vmem %s0, %s336
      $region44: #{conv_lstm_block_forward.1} parent=39 // pred_fallthru
        _
      // Predicated region
      $region45: #{conv_lstm_block_forward.1} parent=39 // pred_check
        %p338 = pneg %p77
      $region46: #{conv_lstm_block_forward.1} parent=39 // pred_check_branch
        %340 = sbr.rel (%p338) target = $region48
      $region47: #{conv_lstm_block_forward.1} parent=39 // pred_region
        %p341 = scmp.lt.s32.totalorder %s24, 1
        %s342 = scalar_select %p341, %s24, 1
        %s343 = smul.addr %s342, 41
        %s344 = smul.addr %s343, 8
        %s345 = scalar_lea.vmem %s1, %s344
      $region48: #{conv_lstm_block_forward.1} parent=39 // pred_fallthru
        _
      // Predicated region
      $region49: #{conv_lstm_block_forward.1} parent=39 // pred_check
        %p346 = pneg %p103
      $region50: #{conv_lstm_block_forward.1} parent=39 // pred_check_branch
        %348 = sbr.rel (%p346) target = $region52
      $region51: #{conv_lstm_block_forward.1} parent=39 // pred_region
        %p349 = scmp.lt.s32.totalorder %s24, 1
        %s350 = scalar_select %p349, %s24, 1
        %s351 = smul.addr %s350, 41
        %s352 = smul.addr %s351, 8
        %s353 = scalar_lea.vmem %s2, %s352
      $region52: #{conv_lstm_block_forward.1} parent=39 // pred_fallthru
        _
    $region40: #{conv_lstm_block_forward.1} parent=5 // pred_fallthru
      _
    %p354 = scmp.le.s32.totalorder 1, %s17
    %p355 = scmp.lt.s32.totalorder %s17, 9
    %p356 = pnand %p354, %p355
    %p357 = pneg %p356
    // Predicated region
    $region53: #{conv_lstm_block_forward.1} parent=5 // pred_check
      _
    $region54: #{conv_lstm_block_forward.1} parent=5 // pred_check_branch
      %359 = sbr.rel (%p356) target = $region56
    $region55: #{conv_lstm_block_forward.1} parent=5 // pred_region
      %s360 = ssub.s32 %s17, 1
      %p361 = scmp.lt.s32.totalorder %s26, 1
      %s362 = scalar_select %p361, %s26, 1
      %p363 = scmp.lt.s32.totalorder %s27, 3
      %s364 = scalar_select %p363, %s27, 3
      %s365 = smul.addr %s364, 41
      %s366 = smul.addr %s362, 164
      %s367 = sadd.s32 %s365, %s366
      %s368 = smul.addr %s367, 8
      %s369 = scalar_lea.vmem %s0, %s368
      %p370 = pneg %p57
      %p371 = pneg %p54
      %p372 = scmp.lt.s32.totalorder %s26, 1
      %s373 = scalar_select %p372, %s26, 1
      %s374 = smul.addr %s373, 41
      %s375 = smul.addr %s374, 8
      %s376 = scalar_lea.vmem %s1, %s375
      %p377 = pneg %p83
      %p378 = pneg %p80
      %p379 = scmp.lt.s32.totalorder %s26, 1
      %s380 = scalar_select %p379, %s26, 1
      %s381 = smul.addr %s380, 41
      %s382 = smul.addr %s381, 8
      %s383 = scalar_lea.vmem %s2, %s382
      %p384 = pneg %p109
      %p385 = pneg %p106
      %p386 = pneg %p130
      %p387 = pneg %p127
      %p388 = pneg %p151
      %p389 = pneg %p148
      %p390 = pneg %p172
      %p391 = pneg %p169
      %p392 = pneg %p193
      %p393 = pneg %p190
      %p394 = pneg %p214
      %p395 = pneg %p211
      %p396 = pneg %p235
      %p397 = pneg %p232
      %p398 = pneg %p263
      %p399 = pneg %p260
      %p400 = scmp.lt.s32.totalorder %s26, 1
      %s401 = scalar_select %p400, %s26, 1
      %p402 = scmp.lt.s32.totalorder %s27, 3
      %s403 = scalar_select %p402, %s27, 3
      %s404 = smul.addr %s403, 41
      %s405 = smul.addr %s401, 164
      %s406 = sadd.s32 %s404, %s405
      %s407 = smul.addr %s406, 8
      %s408 = scalar_lea.vmem %s9, %s407
      %p409 = pneg %p289
      %p410 = pneg %p286
      %p411 = scmp.lt.s32.totalorder %s26, 1
      %s412 = scalar_select %p411, %s26, 1
      %s413 = smul.addr %s412, 41
      %s414 = smul.addr %s413, 8
      %s415 = scalar_lea.vmem %s10, %s414
      %p416 = scmp.lt.s32.totalorder %s26, 1
      %s417 = scalar_select %p416, %s26, 1
      %p418 = scmp.lt.s32.totalorder %s27, 3
      %s419 = scalar_select %p418, %s27, 3
      %s420 = smul.addr %s419, 41
      %s421 = smul.addr %s417, 164
      %s422 = sadd.s32 %s420, %s421
      %s423 = smul.addr %s422, 8
      %s424 = scalar_lea.vmem %s0, %s423
      %p425 = scmp.lt.s32.totalorder %s26, 1
      %s426 = scalar_select %p425, %s26, 1
      %s427 = smul.addr %s426, 41
      %s428 = smul.addr %s427, 8
      %s429 = scalar_lea.vmem %s1, %s428
      %p430 = scmp.lt.s32.totalorder %s26, 1
      %s431 = scalar_select %p430, %s26, 1
      %s432 = smul.addr %s431, 41
      %s433 = smul.addr %s432, 8
      %s434 = scalar_lea.vmem %s2, %s433
      %p435 = scmp.lt.s32.totalorder %s26, 1
      %s436 = scalar_select %p435, %s26, 1
      %p437 = scmp.lt.s32.totalorder %s27, 3
      %s438 = scalar_select %p437, %s27, 3
      %s439 = smul.addr %s438, 41
      %s440 = smul.addr %s436, 164
      %s441 = sadd.s32 %s439, %s440
      %s442 = smul.addr %s441, 8
      %s443 = scalar_lea.vmem %s9, %s442
      %p444 = scmp.lt.s32.totalorder %s26, 1
      %s445 = scalar_select %p444, %s26, 1
      %s446 = smul.addr %s445, 41
      %s447 = smul.addr %s446, 8
      %s448 = scalar_lea.vmem %s10, %s447
      %p450 = scmp.eq.s32.totalorder %s27, 0
      // Predicated region
      $region57: #{conv_lstm_block_forward.1} parent=55 // pred_check
        %p451 = pneg %p450
      $region58: #{conv_lstm_block_forward.1} parent=55 // pred_check_branch
        %453 = sbr.rel (%p451) target = $region60
      $region59: #{conv_lstm_block_forward.1} parent=55 // pred_region
        %v454 = vld [vmem:[%s429] sm:$0xff]
        %v455 = vld [vmem:[%s429 + $0x8] sm:$0xff]
        %v456 = vld [vmem:[%s429 + $0x10] sm:$0xff]
        %v457 = vld [vmem:[%s429 + $0x18] sm:$0xff]
        %v458 = vld [vmem:[%s429 + $0x20] sm:$0xff]
        %v459 = vld [vmem:[%s429 + $0x28] sm:$0xff]
        %v460 = vld [vmem:[%s429 + $0x30] sm:$0xff]
        %v461 = vld [vmem:[%s429 + $0x38] sm:$0xff]
        %v462 = vld [vmem:[%s429 + $0x40] sm:$0xff]
        %v463 = vld [vmem:[%s429 + $0x48] sm:$0xff]
        %v464 = vld [vmem:[%s429 + $0x50] sm:$0xff]
        %v465 = vld [vmem:[%s429 + $0x58] sm:$0xff]
        %v466 = vld [vmem:[%s429 + $0x60] sm:$0xff]
        %v467 = vld [vmem:[%s429 + $0x68] sm:$0xff]
        %v468 = vld [vmem:[%s429 + $0x70] sm:$0xff]
        %v469 = vld [vmem:[%s429 + $0x78] sm:$0xff]
        %v470 = vld [vmem:[%s429 + $0x80] sm:$0xff]
        %v471 = vld [vmem:[%s429 + $0x88] sm:$0xff]
        %v472 = vld [vmem:[%s429 + $0x90] sm:$0xff]
        %v473 = vld [vmem:[%s429 + $0x98] sm:$0xff]
        %v474 = vld [vmem:[%s429 + $0xa0] sm:$0xff]
        %v475 = vld [vmem:[%s429 + $0xa8] sm:$0xff]
        %v476 = vld [vmem:[%s429 + $0xb0] sm:$0xff]
        %v477 = vld [vmem:[%s429 + $0xb8] sm:$0xff]
        %v478 = vld [vmem:[%s429 + $0xc0] sm:$0xff]
        %v479 = vld [vmem:[%s429 + $0xc8] sm:$0xff]
        %v480 = vld [vmem:[%s429 + $0xd0] sm:$0xff]
        %v481 = vld [vmem:[%s429 + $0xd8] sm:$0xff]
        %v482 = vld [vmem:[%s429 + $0xe0] sm:$0xff]
        %v483 = vld [vmem:[%s429 + $0xe8] sm:$0xff]
        %v484 = vld [vmem:[%s429 + $0xf0] sm:$0xff]
        %v485 = vld [vmem:[%s429 + $0xf8] sm:$0xff]
        %v486 = vld [vmem:[%s429 + $0x100] sm:$0xff]
        %v487 = vld [vmem:[%s429 + $0x108] sm:$0xff]
        %v488 = vld [vmem:[%s429 + $0x110] sm:$0xff]
        %v489 = vld [vmem:[%s429 + $0x118] sm:$0xff]
        %v490 = vld [vmem:[%s429 + $0x120] sm:$0xff]
        %v491 = vld [vmem:[%s429 + $0x128] sm:$0xff]
        %v492 = vld [vmem:[%s429 + $0x130] sm:$0xff]
        %v493 = vld [vmem:[%s429 + $0x138] sm:$0xff]
        %v494 = vld [vmem:[%s429 + $0x140] sm:$0xf]
        %vm495 = vcmask 261120
        %496 = vst.msk [vmem:[#allocation2] sm:$0xff] %vm495, %v454
        %497 = vst.msk [vmem:[#allocation2 + $0x8] sm:$0xff] %vm495, %v455
        %498 = vst.msk [vmem:[#allocation2 + $0x10] sm:$0xff] %vm495, %v456
        %499 = vst.msk [vmem:[#allocation2 + $0x18] sm:$0xff] %vm495, %v457
        %500 = vst.msk [vmem:[#allocation2 + $0x20] sm:$0xff] %vm495, %v458
        %501 = vst.msk [vmem:[#allocation2 + $0x28] sm:$0xff] %vm495, %v459
        %502 = vst.msk [vmem:[#allocation2 + $0x30] sm:$0xff] %vm495, %v460
        %503 = vst.msk [vmem:[#allocation2 + $0x38] sm:$0xff] %vm495, %v461
        %504 = vst.msk [vmem:[#allocation2 + $0x40] sm:$0xff] %vm495, %v462
        %505 = vst.msk [vmem:[#allocation2 + $0x48] sm:$0xff] %vm495, %v463
        %506 = vst.msk [vmem:[#allocation2 + $0x50] sm:$0xff] %vm495, %v464
        %507 = vst.msk [vmem:[#allocation2 + $0x58] sm:$0xff] %vm495, %v465
        %508 = vst.msk [vmem:[#allocation2 + $0x60] sm:$0xff] %vm495, %v466
        %509 = vst.msk [vmem:[#allocation2 + $0x68] sm:$0xff] %vm495, %v467
        %510 = vst.msk [vmem:[#allocation2 + $0x70] sm:$0xff] %vm495, %v468
        %511 = vst.msk [vmem:[#allocation2 + $0x78] sm:$0xff] %vm495, %v469
        %512 = vst.msk [vmem:[#allocation2 + $0x80] sm:$0xff] %vm495, %v470
        %513 = vst.msk [vmem:[#allocation2 + $0x88] sm:$0xff] %vm495, %v471
        %514 = vst.msk [vmem:[#allocation2 + $0x90] sm:$0xff] %vm495, %v472
        %515 = vst.msk [vmem:[#allocation2 + $0x98] sm:$0xff] %vm495, %v473
        %516 = vst.msk [vmem:[#allocation2 + $0xa0] sm:$0xff] %vm495, %v474
        %517 = vst.msk [vmem:[#allocation2 + $0xa8] sm:$0xff] %vm495, %v475
        %518 = vst.msk [vmem:[#allocation2 + $0xb0] sm:$0xff] %vm495, %v476
        %519 = vst.msk [vmem:[#allocation2 + $0xb8] sm:$0xff] %vm495, %v477
        %520 = vst.msk [vmem:[#allocation2 + $0xc0] sm:$0xff] %vm495, %v478
        %521 = vst.msk [vmem:[#allocation2 + $0xc8] sm:$0xff] %vm495, %v479
        %522 = vst.msk [vmem:[#allocation2 + $0xd0] sm:$0xff] %vm495, %v480
        %523 = vst.msk [vmem:[#allocation2 + $0xd8] sm:$0xff] %vm495, %v481
        %524 = vst.msk [vmem:[#allocation2 + $0xe0] sm:$0xff] %vm495, %v482
        %525 = vst.msk [vmem:[#allocation2 + $0xe8] sm:$0xff] %vm495, %v483
        %526 = vst.msk [vmem:[#allocation2 + $0xf0] sm:$0xff] %vm495, %v484
        %527 = vst.msk [vmem:[#allocation2 + $0xf8] sm:$0xff] %vm495, %v485
        %528 = vst.msk [vmem:[#allocation2 + $0x100] sm:$0xff] %vm495, %v486
        %529 = vst.msk [vmem:[#allocation2 + $0x108] sm:$0xff] %vm495, %v487
        %530 = vst.msk [vmem:[#allocation2 + $0x110] sm:$0xff] %vm495, %v488
        %531 = vst.msk [vmem:[#allocation2 + $0x118] sm:$0xff] %vm495, %v489
        %532 = vst.msk [vmem:[#allocation2 + $0x120] sm:$0xff] %vm495, %v490
        %533 = vst.msk [vmem:[#allocation2 + $0x128] sm:$0xff] %vm495, %v491
        %534 = vst.msk [vmem:[#allocation2 + $0x130] sm:$0xff] %vm495, %v492
        %535 = vst.msk [vmem:[#allocation2 + $0x138] sm:$0xff] %vm495, %v493
        %vm536 = vcmask 257024
        %537 = vst.msk [vmem:[#allocation2 + $0x140] sm:$0xf] %vm536, %v494
        %v538 = vld [vmem:[%s434] sm:$0xff]
        %v539 = vld [vmem:[%s434 + $0x8] sm:$0xff]
        %v540 = vld [vmem:[%s434 + $0x10] sm:$0xff]
        %v541 = vld [vmem:[%s434 + $0x18] sm:$0xff]
        %v542 = vld [vmem:[%s434 + $0x20] sm:$0xff]
        %v543 = vld [vmem:[%s434 + $0x28] sm:$0xff]
        %v544 = vld [vmem:[%s434 + $0x30] sm:$0xff]
        %v545 = vld [vmem:[%s434 + $0x38] sm:$0xff]
        %v546 = vld [vmem:[%s434 + $0x40] sm:$0xff]
        %v547 = vld [vmem:[%s434 + $0x48] sm:$0xff]
        %v548 = vld [vmem:[%s434 + $0x50] sm:$0xff]
        %v549 = vld [vmem:[%s434 + $0x58] sm:$0xff]
        %v550 = vld [vmem:[%s434 + $0x60] sm:$0xff]
        %v551 = vld [vmem:[%s434 + $0x68] sm:$0xff]
        %v552 = vld [vmem:[%s434 + $0x70] sm:$0xff]
        %v553 = vld [vmem:[%s434 + $0x78] sm:$0xff]
        %v554 = vld [vmem:[%s434 + $0x80] sm:$0xff]
        %v555 = vld [vmem:[%s434 + $0x88] sm:$0xff]
        %v556 = vld [vmem:[%s434 + $0x90] sm:$0xff]
        %v557 = vld [vmem:[%s434 + $0x98] sm:$0xff]
        %v558 = vld [vmem:[%s434 + $0xa0] sm:$0xff]
        %v559 = vld [vmem:[%s434 + $0xa8] sm:$0xff]
        %v560 = vld [vmem:[%s434 + $0xb0] sm:$0xff]
        %v561 = vld [vmem:[%s434 + $0xb8] sm:$0xff]
        %v562 = vld [vmem:[%s434 + $0xc0] sm:$0xff]
        %v563 = vld [vmem:[%s434 + $0xc8] sm:$0xff]
        %v564 = vld [vmem:[%s434 + $0xd0] sm:$0xff]
        %v565 = vld [vmem:[%s434 + $0xd8] sm:$0xff]
        %v566 = vld [vmem:[%s434 + $0xe0] sm:$0xff]
        %v567 = vld [vmem:[%s434 + $0xe8] sm:$0xff]
        %v568 = vld [vmem:[%s434 + $0xf0] sm:$0xff]
        %v569 = vld [vmem:[%s434 + $0xf8] sm:$0xff]
        %v570 = vld [vmem:[%s434 + $0x100] sm:$0xff]
        %v571 = vld [vmem:[%s434 + $0x108] sm:$0xff]
        %v572 = vld [vmem:[%s434 + $0x110] sm:$0xff]
        %v573 = vld [vmem:[%s434 + $0x118] sm:$0xff]
        %v574 = vld [vmem:[%s434 + $0x120] sm:$0xff]
        %v575 = vld [vmem:[%s434 + $0x128] sm:$0xff]
        %v576 = vld [vmem:[%s434 + $0x130] sm:$0xff]
        %v577 = vld [vmem:[%s434 + $0x138] sm:$0xff]
        %v578 = vld [vmem:[%s434 + $0x140] sm:$0xf]
        %579 = vst.msk [vmem:[#allocation3] sm:$0xff] %vm495, %v538
        %580 = vst.msk [vmem:[#allocation3 + $0x8] sm:$0xff] %vm495, %v539
        %581 = vst.msk [vmem:[#allocation3 + $0x10] sm:$0xff] %vm495, %v540
        %582 = vst.msk [vmem:[#allocation3 + $0x18] sm:$0xff] %vm495, %v541
        %583 = vst.msk [vmem:[#allocation3 + $0x20] sm:$0xff] %vm495, %v542
        %584 = vst.msk [vmem:[#allocation3 + $0x28] sm:$0xff] %vm495, %v543
        %585 = vst.msk [vmem:[#allocation3 + $0x30] sm:$0xff] %vm495, %v544
        %586 = vst.msk [vmem:[#allocation3 + $0x38] sm:$0xff] %vm495, %v545
        %587 = vst.msk [vmem:[#allocation3 + $0x40] sm:$0xff] %vm495, %v546
        %588 = vst.msk [vmem:[#allocation3 + $0x48] sm:$0xff] %vm495, %v547
        %589 = vst.msk [vmem:[#allocation3 + $0x50] sm:$0xff] %vm495, %v548
        %590 = vst.msk [vmem:[#allocation3 + $0x58] sm:$0xff] %vm495, %v549
        %591 = vst.msk [vmem:[#allocation3 + $0x60] sm:$0xff] %vm495, %v550
        %592 = vst.msk [vmem:[#allocation3 + $0x68] sm:$0xff] %vm495, %v551
        %593 = vst.msk [vmem:[#allocation3 + $0x70] sm:$0xff] %vm495, %v552
        %594 = vst.msk [vmem:[#allocation3 + $0x78] sm:$0xff] %vm495, %v553
        %595 = vst.msk [vmem:[#allocation3 + $0x80] sm:$0xff] %vm495, %v554
        %596 = vst.msk [vmem:[#allocation3 + $0x88] sm:$0xff] %vm495, %v555
        %597 = vst.msk [vmem:[#allocation3 + $0x90] sm:$0xff] %vm495, %v556
        %598 = vst.msk [vmem:[#allocation3 + $0x98] sm:$0xff] %vm495, %v557
        %599 = vst.msk [vmem:[#allocation3 + $0xa0] sm:$0xff] %vm495, %v558
        %600 = vst.msk [vmem:[#allocation3 + $0xa8] sm:$0xff] %vm495, %v559
        %601 = vst.msk [vmem:[#allocation3 + $0xb0] sm:$0xff] %vm495, %v560
        %602 = vst.msk [vmem:[#allocation3 + $0xb8] sm:$0xff] %vm495, %v561
        %603 = vst.msk [vmem:[#allocation3 + $0xc0] sm:$0xff] %vm495, %v562
        %604 = vst.msk [vmem:[#allocation3 + $0xc8] sm:$0xff] %vm495, %v563
        %605 = vst.msk [vmem:[#allocation3 + $0xd0] sm:$0xff] %vm495, %v564
        %606 = vst.msk [vmem:[#allocation3 + $0xd8] sm:$0xff] %vm495, %v565
        %607 = vst.msk [vmem:[#allocation3 + $0xe0] sm:$0xff] %vm495, %v566
        %608 = vst.msk [vmem:[#allocation3 + $0xe8] sm:$0xff] %vm495, %v567
        %609 = vst.msk [vmem:[#allocation3 + $0xf0] sm:$0xff] %vm495, %v568
        %610 = vst.msk [vmem:[#allocation3 + $0xf8] sm:$0xff] %vm495, %v569
        %611 = vst.msk [vmem:[#allocation3 + $0x100] sm:$0xff] %vm495, %v570
        %612 = vst.msk [vmem:[#allocation3 + $0x108] sm:$0xff] %vm495, %v571
        %613 = vst.msk [vmem:[#allocation3 + $0x110] sm:$0xff] %vm495, %v572
        %614 = vst.msk [vmem:[#allocation3 + $0x118] sm:$0xff] %vm495, %v573
        %615 = vst.msk [vmem:[#allocation3 + $0x120] sm:$0xff] %vm495, %v574
        %616 = vst.msk [vmem:[#allocation3 + $0x128] sm:$0xff] %vm495, %v575
        %617 = vst.msk [vmem:[#allocation3 + $0x130] sm:$0xff] %vm495, %v576
        %618 = vst.msk [vmem:[#allocation3 + $0x138] sm:$0xff] %vm495, %v577
        %619 = vst.msk [vmem:[#allocation3 + $0x140] sm:$0xf] %vm536, %v578
      $region60: #{conv_lstm_block_forward.1} parent=55 // pred_fallthru
        _
      %v620 = vld [vmem:[%s424] sm:$0xff]
      %v621 = vld [vmem:[%s424 + $0x8] sm:$0xff]
      %v622 = vld [vmem:[%s424 + $0x10] sm:$0xff]
      %v623 = vld [vmem:[%s424 + $0x18] sm:$0xff]
      %v624 = vld [vmem:[%s424 + $0x20] sm:$0xff]
      %v625 = vld [vmem:[%s424 + $0x28] sm:$0xff]
      %v626 = vld [vmem:[%s424 + $0x30] sm:$0xff]
      %v627 = vld [vmem:[%s424 + $0x38] sm:$0xff]
      %v628 = vld [vmem:[%s424 + $0x40] sm:$0xff]
      %v629 = vld [vmem:[%s424 + $0x48] sm:$0xff]
      %v630 = vld [vmem:[%s424 + $0x50] sm:$0xff]
      %v631 = vld [vmem:[%s424 + $0x58] sm:$0xff]
      %v632 = vld [vmem:[%s424 + $0x60] sm:$0xff]
      %v633 = vld [vmem:[%s424 + $0x68] sm:$0xff]
      %v634 = vld [vmem:[%s424 + $0x70] sm:$0xff]
      %v635 = vld [vmem:[%s424 + $0x78] sm:$0xff]
      %v636 = vld [vmem:[%s424 + $0x80] sm:$0xff]
      %v637 = vld [vmem:[%s424 + $0x88] sm:$0xff]
      %v638 = vld [vmem:[%s424 + $0x90] sm:$0xff]
      %v639 = vld [vmem:[%s424 + $0x98] sm:$0xff]
      %v640 = vld [vmem:[%s424 + $0xa0] sm:$0xff]
      %v641 = vld [vmem:[%s424 + $0xa8] sm:$0xff]
      %v642 = vld [vmem:[%s424 + $0xb0] sm:$0xff]
      %v643 = vld [vmem:[%s424 + $0xb8] sm:$0xff]
      %v644 = vld [vmem:[%s424 + $0xc0] sm:$0xff]
      %v645 = vld [vmem:[%s424 + $0xc8] sm:$0xff]
      %v646 = vld [vmem:[%s424 + $0xd0] sm:$0xff]
      %v647 = vld [vmem:[%s424 + $0xd8] sm:$0xff]
      %v648 = vld [vmem:[%s424 + $0xe0] sm:$0xff]
      %v649 = vld [vmem:[%s424 + $0xe8] sm:$0xff]
      %v650 = vld [vmem:[%s424 + $0xf0] sm:$0xff]
      %v651 = vld [vmem:[%s424 + $0xf8] sm:$0xff]
      %v652 = vld [vmem:[%s424 + $0x100] sm:$0xff]
      %v653 = vld [vmem:[%s424 + $0x108] sm:$0xff]
      %v654 = vld [vmem:[%s424 + $0x110] sm:$0xff]
      %v655 = vld [vmem:[%s424 + $0x118] sm:$0xff]
      %v656 = vld [vmem:[%s424 + $0x120] sm:$0xff]
      %v657 = vld [vmem:[%s424 + $0x128] sm:$0xff]
      %v658 = vld [vmem:[%s424 + $0x130] sm:$0xff]
      %v659 = vld [vmem:[%s424 + $0x138] sm:$0xff]
      %v660 = vld [vmem:[%s424 + $0x140] sm:$0xf]
      %v661 = vld [vmem:[#allocation2] sm:$0xff]
      %v662 = vld [vmem:[#allocation2 + $0x8] sm:$0xff]
      %v663 = vld [vmem:[#allocation2 + $0x10] sm:$0xff]
      %v664 = vld [vmem:[#allocation2 + $0x18] sm:$0xff]
      %v665 = vld [vmem:[#allocation2 + $0x20] sm:$0xff]
      %v666 = vld [vmem:[#allocation2 + $0x28] sm:$0xff]
      %v667 = vld [vmem:[#allocation2 + $0x30] sm:$0xff]
      %v668 = vld [vmem:[#allocation2 + $0x38] sm:$0xff]
      %v669 = vld [vmem:[#allocation2 + $0x40] sm:$0xff]
      %v670 = vld [vmem:[#allocation2 + $0x48] sm:$0xff]
      %v671 = vld [vmem:[#allocation2 + $0x50] sm:$0xff]
      %v672 = vld [vmem:[#allocation2 + $0x58] sm:$0xff]
      %v673 = vld [vmem:[#allocation2 + $0x60] sm:$0xff]
      %v674 = vld [vmem:[#allocation2 + $0x68] sm:$0xff]
      %v675 = vld [vmem:[#allocation2 + $0x70] sm:$0xff]
      %v676 = vld [vmem:[#allocation2 + $0x78] sm:$0xff]
      %v677 = vld [vmem:[#allocation2 + $0x80] sm:$0xff]
      %v678 = vld [vmem:[#allocation2 + $0x88] sm:$0xff]
      %v679 = vld [vmem:[#allocation2 + $0x90] sm:$0xff]
      %v680 = vld [vmem:[#allocation2 + $0x98] sm:$0xff]
      %v681 = vld [vmem:[#allocation2 + $0xa0] sm:$0xff]
      %v682 = vld [vmem:[#allocation2 + $0xa8] sm:$0xff]
      %v683 = vld [vmem:[#allocation2 + $0xb0] sm:$0xff]
      %v684 = vld [vmem:[#allocation2 + $0xb8] sm:$0xff]
      %v685 = vld [vmem:[#allocation2 + $0xc0] sm:$0xff]
      %v686 = vld [vmem:[#allocation2 + $0xc8] sm:$0xff]
      %v687 = vld [vmem:[#allocation2 + $0xd0] sm:$0xff]
      %v688 = vld [vmem:[#allocation2 + $0xd8] sm:$0xff]
      %v689 = vld [vmem:[#allocation2 + $0xe0] sm:$0xff]
      %v690 = vld [vmem:[#allocation2 + $0xe8] sm:$0xff]
      %v691 = vld [vmem:[#allocation2 + $0xf0] sm:$0xff]
      %v692 = vld [vmem:[#allocation2 + $0xf8] sm:$0xff]
      %v693 = vld [vmem:[#allocation2 + $0x100] sm:$0xff]
      %v694 = vld [vmem:[#allocation2 + $0x108] sm:$0xff]
      %v695 = vld [vmem:[#allocation2 + $0x110] sm:$0xff]
      %v696 = vld [vmem:[#allocation2 + $0x118] sm:$0xff]
      %v697 = vld [vmem:[#allocation2 + $0x120] sm:$0xff]
      %v698 = vld [vmem:[#allocation2 + $0x128] sm:$0xff]
      %v699 = vld [vmem:[#allocation2 + $0x130] sm:$0xff]
      %v700 = vld [vmem:[#allocation2 + $0x138] sm:$0xff]
      %v701 = vld [vmem:[#allocation2 + $0x140] sm:$0xf]
      %v702 = vld [vmem:[#allocation3] sm:$0xff]
      %v703 = vld [vmem:[#allocation3 + $0x8] sm:$0xff]
      %v704 = vld [vmem:[#allocation3 + $0x10] sm:$0xff]
      %v705 = vld [vmem:[#allocation3 + $0x18] sm:$0xff]
      %v706 = vld [vmem:[#allocation3 + $0x20] sm:$0xff]
      %v707 = vld [vmem:[#allocation3 + $0x28] sm:$0xff]
      %v708 = vld [vmem:[#allocation3 + $0x30] sm:$0xff]
      %v709 = vld [vmem:[#allocation3 + $0x38] sm:$0xff]
      %v710 = vld [vmem:[#allocation3 + $0x40] sm:$0xff]
      %v711 = vld [vmem:[#allocation3 + $0x48] sm:$0xff]
      %v712 = vld [vmem:[#allocation3 + $0x50] sm:$0xff]
      %v713 = vld [vmem:[#allocation3 + $0x58] sm:$0xff]
      %v714 = vld [vmem:[#allocation3 + $0x60] sm:$0xff]
      %v715 = vld [vmem:[#allocation3 + $0x68] sm:$0xff]
      %v716 = vld [vmem:[#allocation3 + $0x70] sm:$0xff]
      %v717 = vld [vmem:[#allocation3 + $0x78] sm:$0xff]
      %v718 = vld [vmem:[#allocation3 + $0x80] sm:$0xff]
      %v719 = vld [vmem:[#allocation3 + $0x88] sm:$0xff]
      %v720 = vld [vmem:[#allocation3 + $0x90] sm:$0xff]
      %v721 = vld [vmem:[#allocation3 + $0x98] sm:$0xff]
      %v722 = vld [vmem:[#allocation3 + $0xa0] sm:$0xff]
      %v723 = vld [vmem:[#allocation3 + $0xa8] sm:$0xff]
      %v724 = vld [vmem:[#allocation3 + $0xb0] sm:$0xff]
      %v725 = vld [vmem:[#allocation3 + $0xb8] sm:$0xff]
      %v726 = vld [vmem:[#allocation3 + $0xc0] sm:$0xff]
      %v727 = vld [vmem:[#allocation3 + $0xc8] sm:$0xff]
      %v728 = vld [vmem:[#allocation3 + $0xd0] sm:$0xff]
      %v729 = vld [vmem:[#allocation3 + $0xd8] sm:$0xff]
      %v730 = vld [vmem:[#allocation3 + $0xe0] sm:$0xff]
      %v731 = vld [vmem:[#allocation3 + $0xe8] sm:$0xff]
      %v732 = vld [vmem:[#allocation3 + $0xf0] sm:$0xff]
      %v733 = vld [vmem:[#allocation3 + $0xf8] sm:$0xff]
      %v734 = vld [vmem:[#allocation3 + $0x100] sm:$0xff]
      %v735 = vld [vmem:[#allocation3 + $0x108] sm:$0xff]
      %v736 = vld [vmem:[#allocation3 + $0x110] sm:$0xff]
      %v737 = vld [vmem:[#allocation3 + $0x118] sm:$0xff]
      %v738 = vld [vmem:[#allocation3 + $0x120] sm:$0xff]
      %v739 = vld [vmem:[#allocation3 + $0x128] sm:$0xff]
      %v740 = vld [vmem:[#allocation3 + $0x130] sm:$0xff]
      %v741 = vld [vmem:[#allocation3 + $0x138] sm:$0xff]
      %v742 = vld [vmem:[#allocation3 + $0x140] sm:$0xf]
      %784 = vrot.lane.b32.xlu0 %v661, 4
      %v785 = vpop.permute.xlu0 %784
      %786 = vrot.lane.b32.xlu0 %v662, 4
      %v787 = vpop.permute.xlu0 %786
      %788 = vrot.lane.b32.xlu0 %v663, 4
      %v789 = vpop.permute.xlu0 %788
      %790 = vrot.lane.b32.xlu0 %v664, 4
      %v791 = vpop.permute.xlu0 %790
      %792 = vrot.lane.b32.xlu0 %v665, 4
      %v793 = vpop.permute.xlu0 %792
      %794 = vrot.lane.b32.xlu0 %v666, 4
      %v795 = vpop.permute.xlu0 %794
      %796 = vrot.lane.b32.xlu0 %v667, 4
      %v797 = vpop.permute.xlu0 %796
      %798 = vrot.lane.b32.xlu0 %v668, 4
      %v799 = vpop.permute.xlu0 %798
      %800 = vrot.lane.b32.xlu0 %v669, 4
      %v801 = vpop.permute.xlu0 %800
      %802 = vrot.lane.b32.xlu0 %v670, 4
      %v803 = vpop.permute.xlu0 %802
      %804 = vrot.lane.b32.xlu0 %v671, 4
      %v805 = vpop.permute.xlu0 %804
      %806 = vrot.lane.b32.xlu0 %v672, 4
      %v807 = vpop.permute.xlu0 %806
      %808 = vrot.lane.b32.xlu0 %v673, 4
      %v809 = vpop.permute.xlu0 %808
      %810 = vrot.lane.b32.xlu0 %v674, 4
      %v811 = vpop.permute.xlu0 %810
      %812 = vrot.lane.b32.xlu0 %v675, 4
      %v813 = vpop.permute.xlu0 %812
      %814 = vrot.lane.b32.xlu0 %v676, 4
      %v815 = vpop.permute.xlu0 %814
      %816 = vrot.lane.b32.xlu0 %v677, 4
      %v817 = vpop.permute.xlu0 %816
      %818 = vrot.lane.b32.xlu0 %v678, 4
      %v819 = vpop.permute.xlu0 %818
      %820 = vrot.lane.b32.xlu0 %v679, 4
      %v821 = vpop.permute.xlu0 %820
      %822 = vrot.lane.b32.xlu0 %v680, 4
      %v823 = vpop.permute.xlu0 %822
      %824 = vrot.lane.b32.xlu0 %v681, 4
      %v825 = vpop.permute.xlu0 %824
      %826 = vrot.lane.b32.xlu0 %v682, 4
      %v827 = vpop.permute.xlu0 %826
      %828 = vrot.lane.b32.xlu0 %v683, 4
      %v829 = vpop.permute.xlu0 %828
      %830 = vrot.lane.b32.xlu0 %v684, 4
      %v831 = vpop.permute.xlu0 %830
      %832 = vrot.lane.b32.xlu0 %v685, 4
      %v833 = vpop.permute.xlu0 %832
      %834 = vrot.lane.b32.xlu0 %v686, 4
      %v835 = vpop.permute.xlu0 %834
      %836 = vrot.lane.b32.xlu0 %v687, 4
      %v837 = vpop.permute.xlu0 %836
      %838 = vrot.lane.b32.xlu0 %v688, 4
      %v839 = vpop.permute.xlu0 %838
      %840 = vrot.lane.b32.xlu0 %v689, 4
      %v841 = vpop.permute.xlu0 %840
      %842 = vrot.lane.b32.xlu0 %v690, 4
      %v843 = vpop.permute.xlu0 %842
      %844 = vrot.lane.b32.xlu0 %v691, 4
      %v845 = vpop.permute.xlu0 %844
      %846 = vrot.lane.b32.xlu0 %v692, 4
      %v847 = vpop.permute.xlu0 %846
      %848 = vrot.lane.b32.xlu0 %v693, 4
      %v849 = vpop.permute.xlu0 %848
      %850 = vrot.lane.b32.xlu0 %v694, 4
      %v851 = vpop.permute.xlu0 %850
      %852 = vrot.lane.b32.xlu0 %v695, 4
      %v853 = vpop.permute.xlu0 %852
      %854 = vrot.lane.b32.xlu0 %v696, 4
      %v855 = vpop.permute.xlu0 %854
      %856 = vrot.lane.b32.xlu0 %v697, 4
      %v857 = vpop.permute.xlu0 %856
      %858 = vrot.lane.b32.xlu0 %v698, 4
      %v859 = vpop.permute.xlu0 %858
      %860 = vrot.lane.b32.xlu0 %v699, 4
      %v861 = vpop.permute.xlu0 %860
      %862 = vrot.lane.b32.xlu0 %v700, 4
      %v863 = vpop.permute.xlu0 %862
      %864 = vrot.lane.b32.xlu0 %v701, 4
      %v865 = vpop.permute.xlu0 %864
      %vm907 = vcmask 31744
      %v908 = vsel %vm907, %v620, %v785
      %v909 = vsel %vm907, %v621, %v787
      %v910 = vsel %vm907, %v622, %v789
      %v911 = vsel %vm907, %v623, %v791
      %v912 = vsel %vm907, %v624, %v793
      %v913 = vsel %vm907, %v625, %v795
      %v914 = vsel %vm907, %v626, %v797
      %v915 = vsel %vm907, %v627, %v799
      %v916 = vsel %vm907, %v628, %v801
      %v917 = vsel %vm907, %v629, %v803
      %v918 = vsel %vm907, %v630, %v805
      %v919 = vsel %vm907, %v631, %v807
      %v920 = vsel %vm907, %v632, %v809
      %v921 = vsel %vm907, %v633, %v811
      %v922 = vsel %vm907, %v634, %v813
      %v923 = vsel %vm907, %v635, %v815
      %v924 = vsel %vm907, %v636, %v817
      %v925 = vsel %vm907, %v637, %v819
      %v926 = vsel %vm907, %v638, %v821
      %v927 = vsel %vm907, %v639, %v823
      %v928 = vsel %vm907, %v640, %v825
      %v929 = vsel %vm907, %v641, %v827
      %v930 = vsel %vm907, %v642, %v829
      %v931 = vsel %vm907, %v643, %v831
      %v932 = vsel %vm907, %v644, %v833
      %v933 = vsel %vm907, %v645, %v835
      %v934 = vsel %vm907, %v646, %v837
      %v935 = vsel %vm907, %v647, %v839
      %v936 = vsel %vm907, %v648, %v841
      %v937 = vsel %vm907, %v649, %v843
      %v938 = vsel %vm907, %v650, %v845
      %v939 = vsel %vm907, %v651, %v847
      %v940 = vsel %vm907, %v652, %v849
      %v941 = vsel %vm907, %v653, %v851
      %v942 = vsel %vm907, %v654, %v853
      %v943 = vsel %vm907, %v655, %v855
      %v944 = vsel %vm907, %v656, %v857
      %v945 = vsel %vm907, %v657, %v859
      %v946 = vsel %vm907, %v658, %v861
      %v947 = vsel %vm907, %v659, %v863
      %v948 = vsel %vm907, %v660, %v865
      %vm990 = vcmask 1042432
      %v991 = vrot.slane %v908, 5
      %v992 = vrot.slane %v909, 5
      %v993 = vsel %vm990, %v991, %v992
      %v994 = vrot.slane %v910, 5
      %v995 = vsel %vm990, %v992, %v994
      %v996 = vrot.slane %v911, 5
      %v997 = vsel %vm990, %v994, %v996
      %v998 = vrot.slane %v912, 5
      %v999 = vsel %vm990, %v996, %v998
      %v1000 = vrot.slane %v913, 5
      %v1001 = vsel %vm990, %v998, %v1000
      %v1002 = vrot.slane %v914, 5
      %v1003 = vsel %vm990, %v1000, %v1002
      %v1004 = vrot.slane %v915, 5
      %v1005 = vsel %vm990, %v1002, %v1004
      %v1006 = vrot.slane %v916, 5
      %v1007 = vsel %vm990, %v1004, %v1006
      %v1008 = vrot.slane %v917, 5
      %v1009 = vsel %vm990, %v1006, %v1008
      %v1010 = vrot.slane %v918, 5
      %v1011 = vsel %vm990, %v1008, %v1010
      %v1012 = vrot.slane %v919, 5
      %v1013 = vsel %vm990, %v1010, %v1012
      %v1014 = vrot.slane %v920, 5
      %v1015 = vsel %vm990, %v1012, %v1014
      %v1016 = vrot.slane %v921, 5
      %v1017 = vsel %vm990, %v1014, %v1016
      %v1018 = vrot.slane %v922, 5
      %v1019 = vsel %vm990, %v1016, %v1018
      %v1020 = vrot.slane %v923, 5
      %v1021 = vsel %vm990, %v1018, %v1020
      %v1022 = vrot.slane %v924, 5
      %v1023 = vsel %vm990, %v1020, %v1022
      %v1024 = vrot.slane %v925, 5
      %v1025 = vsel %vm990, %v1022, %v1024
      %v1026 = vrot.slane %v926, 5
      %v1027 = vsel %vm990, %v1024, %v1026
      %v1028 = vrot.slane %v927, 5
      %v1029 = vsel %vm990, %v1026, %v1028
      %v1030 = vrot.slane %v928, 5
      %v1031 = vsel %vm990, %v1028, %v1030
      %v1032 = vrot.slane %v929, 5
      %v1033 = vsel %vm990, %v1030, %v1032
      %v1034 = vrot.slane %v930, 5
      %v1035 = vsel %vm990, %v1032, %v1034
      %v1036 = vrot.slane %v931, 5
      %v1037 = vsel %vm990, %v1034, %v1036
      %v1038 = vrot.slane %v932, 5
      %v1039 = vsel %vm990, %v1036, %v1038
      %v1040 = vrot.slane %v933, 5
      %v1041 = vsel %vm990, %v1038, %v1040
      %v1042 = vrot.slane %v934, 5
      %v1043 = vsel %vm990, %v1040, %v1042
      %v1044 = vrot.slane %v935, 5
      %v1045 = vsel %vm990, %v1042, %v1044
      %v1046 = vrot.slane %v936, 5
      %v1047 = vsel %vm990, %v1044, %v1046
      %v1048 = vrot.slane %v937, 5
      %v1049 = vsel %vm990, %v1046, %v1048
      %v1050 = vrot.slane %v938, 5
      %v1051 = vsel %vm990, %v1048, %v1050
      %v1052 = vrot.slane %v939, 5
      %v1053 = vsel %vm990, %v1050, %v1052
      %v1054 = vrot.slane %v940, 5
      %v1055 = vsel %vm990, %v1052, %v1054
      %v1056 = vrot.slane %v941, 5
      %v1057 = vsel %vm990, %v1054, %v1056
      %v1058 = vrot.slane %v942, 5
      %v1059 = vsel %vm990, %v1056, %v1058
      %v1060 = vrot.slane %v943, 5
      %v1061 = vsel %vm990, %v1058, %v1060
      %v1062 = vrot.slane %v944, 5
      %v1063 = vsel %vm990, %v1060, %v1062
      %v1064 = vrot.slane %v945, 5
      %v1065 = vsel %vm990, %v1062, %v1064
      %v1066 = vrot.slane %v946, 5
      %v1067 = vsel %vm990, %v1064, %v1066
      %v1068 = vrot.slane %v947, 5
      %v1069 = vsel %vm990, %v1066, %v1068
      %v1070 = vrot.slane %v948, 5
      %v1071 = vsel %vm990, %v1068, %v1070
      %v1112 = vsel %vm990, 0.0, %v991
      %vm1113 = vcmask 1046528
      %v1114 = vsel %vm1113, %v1071, 0.0
      %v1117 = vrot.slane 0.0, 1
      %v1118 = vsel %vm1113, %v1117, %v1117
      %v1119 = vrot.slane %v1112, 1
      %v1120 = vsel %vm1113, %v1117, %v1119
      %v1121 = vrot.slane %v993, 1
      %v1122 = vsel %vm1113, %v1119, %v1121
      %v1123 = vrot.slane %v995, 1
      %v1124 = vsel %vm1113, %v1121, %v1123
      %v1125 = vrot.slane %v997, 1
      %v1126 = vsel %vm1113, %v1123, %v1125
      %v1127 = vrot.slane %v999, 1
      %v1128 = vsel %vm1113, %v1125, %v1127
      %v1129 = vrot.slane %v1001, 1
      %v1130 = vsel %vm1113, %v1127, %v1129
      %v1131 = vrot.slane %v1003, 1
      %v1132 = vsel %vm1113, %v1129, %v1131
      %v1133 = vrot.slane %v1005, 1
      %v1134 = vsel %vm1113, %v1131, %v1133
      %v1135 = vrot.slane %v1007, 1
      %v1136 = vsel %vm1113, %v1133, %v1135
      %v1137 = vrot.slane %v1009, 1
      %v1138 = vsel %vm1113, %v1135, %v1137
      %v1139 = vrot.slane %v1011, 1
      %v1140 = vsel %vm1113, %v1137, %v1139
      %v1141 = vrot.slane %v1013, 1
      %v1142 = vsel %vm1113, %v1139, %v1141
      %v1143 = vrot.slane %v1015, 1
      %v1144 = vsel %vm1113, %v1141, %v1143
      %v1145 = vrot.slane %v1017, 1
      %v1146 = vsel %vm1113, %v1143, %v1145
      %v1147 = vrot.slane %v1019, 1
      %v1148 = vsel %vm1113, %v1145, %v1147
      %v1149 = vrot.slane %v1021, 1
      %v1150 = vsel %vm1113, %v1147, %v1149
      %v1151 = vrot.slane %v1023, 1
      %v1152 = vsel %vm1113, %v1149, %v1151
      %v1153 = vrot.slane %v1025, 1
      %v1154 = vsel %vm1113, %v1151, %v1153
      %v1155 = vrot.slane %v1027, 1
      %v1156 = vsel %vm1113, %v1153, %v1155
      %v1157 = vrot.slane %v1029, 1
      %v1158 = vsel %vm1113, %v1155, %v1157
      %v1159 = vrot.slane %v1031, 1
      %v1160 = vsel %vm1113, %v1157, %v1159
      %v1161 = vrot.slane %v1033, 1
      %v1162 = vsel %vm1113, %v1159, %v1161
      %v1163 = vrot.slane %v1035, 1
      %v1164 = vsel %vm1113, %v1161, %v1163
      %v1165 = vrot.slane %v1037, 1
      %v1166 = vsel %vm1113, %v1163, %v1165
      %v1167 = vrot.slane %v1039, 1
      %v1168 = vsel %vm1113, %v1165, %v1167
      %v1169 = vrot.slane %v1041, 1
      %v1170 = vsel %vm1113, %v1167, %v1169
      %v1171 = vrot.slane %v1043, 1
      %v1172 = vsel %vm1113, %v1169, %v1171
      %v1173 = vrot.slane %v1045, 1
      %v1174 = vsel %vm1113, %v1171, %v1173
      %v1175 = vrot.slane %v1047, 1
      %v1176 = vsel %vm1113, %v1173, %v1175
      %v1177 = vrot.slane %v1049, 1
      %v1178 = vsel %vm1113, %v1175, %v1177
      %v1179 = vrot.slane %v1051, 1
      %v1180 = vsel %vm1113, %v1177, %v1179
      %v1181 = vrot.slane %v1053, 1
      %v1182 = vsel %vm1113, %v1179, %v1181
      %v1183 = vrot.slane %v1055, 1
      %v1184 = vsel %vm1113, %v1181, %v1183
      %v1185 = vrot.slane %v1057, 1
      %v1186 = vsel %vm1113, %v1183, %v1185
      %v1187 = vrot.slane %v1059, 1
      %v1188 = vsel %vm1113, %v1185, %v1187
      %v1189 = vrot.slane %v1061, 1
      %v1190 = vsel %vm1113, %v1187, %v1189
      %v1191 = vrot.slane %v1063, 1
      %v1192 = vsel %vm1113, %v1189, %v1191
      %v1193 = vrot.slane %v1065, 1
      %v1194 = vsel %vm1113, %v1191, %v1193
      %v1195 = vrot.slane %v1067, 1
      %v1196 = vsel %vm1113, %v1193, %v1195
      %1197 = vrot.lane.b32.xlu0 %v1118, 36
      %v1198 = vpop.permute.xlu0 %1197
      %1199 = vrot.lane.b32.xlu0 %v1120, 36
      %v1200 = vpop.permute.xlu0 %1199
      %1201 = vrot.lane.b32.xlu0 %v1122, 36
      %v1202 = vpop.permute.xlu0 %1201
      %1203 = vrot.lane.b32.xlu0 %v1124, 36
      %v1204 = vpop.permute.xlu0 %1203
      %1205 = vrot.lane.b32.xlu0 %v1126, 36
      %v1206 = vpop.permute.xlu0 %1205
      %1207 = vrot.lane.b32.xlu0 %v1128, 36
      %v1208 = vpop.permute.xlu0 %1207
      %1209 = vrot.lane.b32.xlu0 %v1130, 36
      %v1210 = vpop.permute.xlu0 %1209
      %1211 = vrot.lane.b32.xlu0 %v1132, 36
      %v1212 = vpop.permute.xlu0 %1211
      %1213 = vrot.lane.b32.xlu0 %v1134, 36
      %v1214 = vpop.permute.xlu0 %1213
      %1215 = vrot.lane.b32.xlu0 %v1136, 36
      %v1216 = vpop.permute.xlu0 %1215
      %1217 = vrot.lane.b32.xlu0 %v1138, 36
      %v1218 = vpop.permute.xlu0 %1217
      %1219 = vrot.lane.b32.xlu0 %v1140, 36
      %v1220 = vpop.permute.xlu0 %1219
      %1221 = vrot.lane.b32.xlu0 %v1142, 36
      %v1222 = vpop.permute.xlu0 %1221
      %1223 = vrot.lane.b32.xlu0 %v1144, 36
      %v1224 = vpop.permute.xlu0 %1223
      %1225 = vrot.lane.b32.xlu0 %v1146, 36
      %v1226 = vpop.permute.xlu0 %1225
      %1227 = vrot.lane.b32.xlu0 %v1148, 36
      %v1228 = vpop.permute.xlu0 %1227
      %1229 = vrot.lane.b32.xlu0 %v1150, 36
      %v1230 = vpop.permute.xlu0 %1229
      %1231 = vrot.lane.b32.xlu0 %v1152, 36
      %v1232 = vpop.permute.xlu0 %1231
      %1233 = vrot.lane.b32.xlu0 %v1154, 36
      %v1234 = vpop.permute.xlu0 %1233
      %1235 = vrot.lane.b32.xlu0 %v1156, 36
      %v1236 = vpop.permute.xlu0 %1235
      %1237 = vrot.lane.b32.xlu0 %v1158, 36
      %v1238 = vpop.permute.xlu0 %1237
      %1239 = vrot.lane.b32.xlu0 %v1160, 36
      %v1240 = vpop.permute.xlu0 %1239
      %1241 = vrot.lane.b32.xlu0 %v1162, 36
      %v1242 = vpop.permute.xlu0 %1241
      %1243 = vrot.lane.b32.xlu0 %v1164, 36
      %v1244 = vpop.permute.xlu0 %1243
      %1245 = vrot.lane.b32.xlu0 %v1166, 36
      %v1246 = vpop.permute.xlu0 %1245
      %1247 = vrot.lane.b32.xlu0 %v1168, 36
      %v1248 = vpop.permute.xlu0 %1247
      %1249 = vrot.lane.b32.xlu0 %v1170, 36
      %v1250 = vpop.permute.xlu0 %1249
      %1251 = vrot.lane.b32.xlu0 %v1172, 36
      %v1252 = vpop.permute.xlu0 %1251
      %1253 = vrot.lane.b32.xlu0 %v1174, 36
      %v1254 = vpop.permute.xlu0 %1253
      %1255 = vrot.lane.b32.xlu0 %v1176, 36
      %v1256 = vpop.permute.xlu0 %1255
      %1257 = vrot.lane.b32.xlu0 %v1178, 36
      %v1258 = vpop.permute.xlu0 %1257
      %1259 = vrot.lane.b32.xlu0 %v1180, 36
      %v1260 = vpop.permute.xlu0 %1259
      %1261 = vrot.lane.b32.xlu0 %v1182, 36
      %v1262 = vpop.permute.xlu0 %1261
      %1263 = vrot.lane.b32.xlu0 %v1184, 36
      %v1264 = vpop.permute.xlu0 %1263
      %1265 = vrot.lane.b32.xlu0 %v1186, 36
      %v1266 = vpop.permute.xlu0 %1265
      %1267 = vrot.lane.b32.xlu0 %v1188, 36
      %v1268 = vpop.permute.xlu0 %1267
      %1269 = vrot.lane.b32.xlu0 %v1190, 36
      %v1270 = vpop.permute.xlu0 %1269
      %1271 = vrot.lane.b32.xlu0 %v1192, 36
      %v1272 = vpop.permute.xlu0 %1271
      %1273 = vrot.lane.b32.xlu0 %v1194, 36
      %v1274 = vpop.permute.xlu0 %1273
      %1275 = vrot.lane.b32.xlu0 %v1196, 36
      %v1276 = vpop.permute.xlu0 %1275
      %1277 = vrot.lane.b32.xlu0 %v1195, 36
      %v1278 = vpop.permute.xlu0 %1277
      %vm1320 = vcmask 1045504
      %v1321 = vrot.slane 0.0, 2
      %v1322 = vsel %vm1320, %v1321, %v1321
      %v1323 = vrot.slane %v1112, 2
      %v1324 = vsel %vm1320, %v1321, %v1323
      %v1325 = vrot.slane %v993, 2
      %v1326 = vsel %vm1320, %v1323, %v1325
      %v1327 = vrot.slane %v995, 2
      %v1328 = vsel %vm1320, %v1325, %v1327
      %v1329 = vrot.slane %v997, 2
      %v1330 = vsel %vm1320, %v1327, %v1329
      %v1331 = vrot.slane %v999, 2
      %v1332 = vsel %vm1320, %v1329, %v1331
      %v1333 = vrot.slane %v1001, 2
      %v1334 = vsel %vm1320, %v1331, %v1333
      %v1335 = vrot.slane %v1003, 2
      %v1336 = vsel %vm1320, %v1333, %v1335
      %v1337 = vrot.slane %v1005, 2
      %v1338 = vsel %vm1320, %v1335, %v1337
      %v1339 = vrot.slane %v1007, 2
      %v1340 = vsel %vm1320, %v1337, %v1339
      %v1341 = vrot.slane %v1009, 2
      %v1342 = vsel %vm1320, %v1339, %v1341
      %v1343 = vrot.slane %v1011, 2
      %v1344 = vsel %vm1320, %v1341, %v1343
      %v1345 = vrot.slane %v1013, 2
      %v1346 = vsel %vm1320, %v1343, %v1345
      %v1347 = vrot.slane %v1015, 2
      %v1348 = vsel %vm1320, %v1345, %v1347
      %v1349 = vrot.slane %v1017, 2
      %v1350 = vsel %vm1320, %v1347, %v1349
      %v1351 = vrot.slane %v1019, 2
      %v1352 = vsel %vm1320, %v1349, %v1351
      %v1353 = vrot.slane %v1021, 2
      %v1354 = vsel %vm1320, %v1351, %v1353
      %v1355 = vrot.slane %v1023, 2
      %v1356 = vsel %vm1320, %v1353, %v1355
      %v1357 = vrot.slane %v1025, 2
      %v1358 = vsel %vm1320, %v1355, %v1357
      %v1359 = vrot.slane %v1027, 2
      %v1360 = vsel %vm1320, %v1357, %v1359
      %v1361 = vrot.slane %v1029, 2
      %v1362 = vsel %vm1320, %v1359, %v1361
      %v1363 = vrot.slane %v1031, 2
      %v1364 = vsel %vm1320, %v1361, %v1363
      %v1365 = vrot.slane %v1033, 2
      %v1366 = vsel %vm1320, %v1363, %v1365
      %v1367 = vrot.slane %v1035, 2
      %v1368 = vsel %vm1320, %v1365, %v1367
      %v1369 = vrot.slane %v1037, 2
      %v1370 = vsel %vm1320, %v1367, %v1369
      %v1371 = vrot.slane %v1039, 2
      %v1372 = vsel %vm1320, %v1369, %v1371
      %v1373 = vrot.slane %v1041, 2
      %v1374 = vsel %vm1320, %v1371, %v1373
      %v1375 = vrot.slane %v1043, 2
      %v1376 = vsel %vm1320, %v1373, %v1375
      %v1377 = vrot.slane %v1045, 2
      %v1378 = vsel %vm1320, %v1375, %v1377
      %v1379 = vrot.slane %v1047, 2
      %v1380 = vsel %vm1320, %v1377, %v1379
      %v1381 = vrot.slane %v1049, 2
      %v1382 = vsel %vm1320, %v1379, %v1381
      %v1383 = vrot.slane %v1051, 2
      %v1384 = vsel %vm1320, %v1381, %v1383
      %v1385 = vrot.slane %v1053, 2
      %v1386 = vsel %vm1320, %v1383, %v1385
      %v1387 = vrot.slane %v1055, 2
      %v1388 = vsel %vm1320, %v1385, %v1387
      %v1389 = vrot.slane %v1057, 2
      %v1390 = vsel %vm1320, %v1387, %v1389
      %v1391 = vrot.slane %v1059, 2
      %v1392 = vsel %vm1320, %v1389, %v1391
      %v1393 = vrot.slane %v1061, 2
      %v1394 = vsel %vm1320, %v1391, %v1393
      %v1395 = vrot.slane %v1063, 2
      %v1396 = vsel %vm1320, %v1393, %v1395
      %v1397 = vrot.slane %v1065, 2
      %v1398 = vsel %vm1320, %v1395, %v1397
      %v1399 = vrot.slane %v1067, 2
      %v1400 = vsel %vm1320, %v1397, %v1399
      %1401 = vrot.lane.b32.xlu0 %v1322, 72
      %v1402 = vpop.permute.xlu0 %1401
      %1403 = vrot.lane.b32.xlu0 %v1324, 72
      %v1404 = vpop.permute.xlu0 %1403
      %1405 = vrot.lane.b32.xlu0 %v1326, 72
      %v1406 = vpop.permute.xlu0 %1405
      %1407 = vrot.lane.b32.xlu0 %v1328, 72
      %v1408 = vpop.permute.xlu0 %1407
      %1409 = vrot.lane.b32.xlu0 %v1330, 72
      %v1410 = vpop.permute.xlu0 %1409
      %1411 = vrot.lane.b32.xlu0 %v1332, 72
      %v1412 = vpop.permute.xlu0 %1411
      %1413 = vrot.lane.b32.xlu0 %v1334, 72
      %v1414 = vpop.permute.xlu0 %1413
      %1415 = vrot.lane.b32.xlu0 %v1336, 72
      %v1416 = vpop.permute.xlu0 %1415
      %1417 = vrot.lane.b32.xlu0 %v1338, 72
      %v1418 = vpop.permute.xlu0 %1417
      %1419 = vrot.lane.b32.xlu0 %v1340, 72
      %v1420 = vpop.permute.xlu0 %1419
      %1421 = vrot.lane.b32.xlu0 %v1342, 72
      %v1422 = vpop.permute.xlu0 %1421
      %1423 = vrot.lane.b32.xlu0 %v1344, 72
      %v1424 = vpop.permute.xlu0 %1423
      %1425 = vrot.lane.b32.xlu0 %v1346, 72
      %v1426 = vpop.permute.xlu0 %1425
      %1427 = vrot.lane.b32.xlu0 %v1348, 72
      %v1428 = vpop.permute.xlu0 %1427
      %1429 = vrot.lane.b32.xlu0 %v1350, 72
      %v1430 = vpop.permute.xlu0 %1429
      %1431 = vrot.lane.b32.xlu0 %v1352, 72
      %v1432 = vpop.permute.xlu0 %1431
      %1433 = vrot.lane.b32.xlu0 %v1354, 72
      %v1434 = vpop.permute.xlu0 %1433
      %1435 = vrot.lane.b32.xlu0 %v1356, 72
      %v1436 = vpop.permute.xlu0 %1435
      %1437 = vrot.lane.b32.xlu0 %v1358, 72
      %v1438 = vpop.permute.xlu0 %1437
      %1439 = vrot.lane.b32.xlu0 %v1360, 72
      %v1440 = vpop.permute.xlu0 %1439
      %1441 = vrot.lane.b32.xlu0 %v1362, 72
      %v1442 = vpop.permute.xlu0 %1441
      %1443 = vrot.lane.b32.xlu0 %v1364, 72
      %v1444 = vpop.permute.xlu0 %1443
      %1445 = vrot.lane.b32.xlu0 %v1366, 72
      %v1446 = vpop.permute.xlu0 %1445
      %1447 = vrot.lane.b32.xlu0 %v1368, 72
      %v1448 = vpop.permute.xlu0 %1447
      %1449 = vrot.lane.b32.xlu0 %v1370, 72
      %v1450 = vpop.permute.xlu0 %1449
      %1451 = vrot.lane.b32.xlu0 %v1372, 72
      %v1452 = vpop.permute.xlu0 %1451
      %1453 = vrot.lane.b32.xlu0 %v1374, 72
      %v1454 = vpop.permute.xlu0 %1453
      %1455 = vrot.lane.b32.xlu0 %v1376, 72
      %v1456 = vpop.permute.xlu0 %1455
      %1457 = vrot.lane.b32.xlu0 %v1378, 72
      %v1458 = vpop.permute.xlu0 %1457
      %1459 = vrot.lane.b32.xlu0 %v1380, 72
      %v1460 = vpop.permute.xlu0 %1459
      %1461 = vrot.lane.b32.xlu0 %v1382, 72
      %v1462 = vpop.permute.xlu0 %1461
      %1463 = vrot.lane.b32.xlu0 %v1384, 72
      %v1464 = vpop.permute.xlu0 %1463
      %1465 = vrot.lane.b32.xlu0 %v1386, 72
      %v1466 = vpop.permute.xlu0 %1465
      %1467 = vrot.lane.b32.xlu0 %v1388, 72
      %v1468 = vpop.permute.xlu0 %1467
      %1469 = vrot.lane.b32.xlu0 %v1390, 72
      %v1470 = vpop.permute.xlu0 %1469
      %1471 = vrot.lane.b32.xlu0 %v1392, 72
      %v1472 = vpop.permute.xlu0 %1471
      %1473 = vrot.lane.b32.xlu0 %v1394, 72
      %v1474 = vpop.permute.xlu0 %1473
      %1475 = vrot.lane.b32.xlu0 %v1396, 72
      %v1476 = vpop.permute.xlu0 %1475
      %1477 = vrot.lane.b32.xlu0 %v1398, 72
      %v1478 = vpop.permute.xlu0 %1477
      %1479 = vrot.lane.b32.xlu0 %v1400, 72
      %v1480 = vpop.permute.xlu0 %1479
      %1481 = vrot.lane.b32.xlu0 %v1399, 72
      %v1482 = vpop.permute.xlu0 %1481
      %v1525 = vrot.slane %v1069, 2
      %v1526 = vsel %vm1320, %v1399, %v1525
      %v1527 = vrot.slane %v1114, 2
      %v1528 = vsel %vm1320, %v1525, %v1527
      %1529 = vrot.lane.b32.xlu0 %v1326, 108
      %v1530 = vpop.permute.xlu0 %1529
      %1531 = vrot.lane.b32.xlu0 %v1328, 108
      %v1532 = vpop.permute.xlu0 %1531
      %1533 = vrot.lane.b32.xlu0 %v1330, 108
      %v1534 = vpop.permute.xlu0 %1533
      %1535 = vrot.lane.b32.xlu0 %v1332, 108
      %v1536 = vpop.permute.xlu0 %1535
      %1537 = vrot.lane.b32.xlu0 %v1334, 108
      %v1538 = vpop.permute.xlu0 %1537
      %1539 = vrot.lane.b32.xlu0 %v1336, 108
      %v1540 = vpop.permute.xlu0 %1539
      %1541 = vrot.lane.b32.xlu0 %v1338, 108
      %v1542 = vpop.permute.xlu0 %1541
      %1543 = vrot.lane.b32.xlu0 %v1340, 108
      %v1544 = vpop.permute.xlu0 %1543
      %1545 = vrot.lane.b32.xlu0 %v1342, 108
      %v1546 = vpop.permute.xlu0 %1545
      %1547 = vrot.lane.b32.xlu0 %v1344, 108
      %v1548 = vpop.permute.xlu0 %1547
      %1549 = vrot.lane.b32.xlu0 %v1346, 108
      %v1550 = vpop.permute.xlu0 %1549
      %1551 = vrot.lane.b32.xlu0 %v1348, 108
      %v1552 = vpop.permute.xlu0 %1551
      %1553 = vrot.lane.b32.xlu0 %v1350, 108
      %v1554 = vpop.permute.xlu0 %1553
      %1555 = vrot.lane.b32.xlu0 %v1352, 108
      %v1556 = vpop.permute.xlu0 %1555
      %1557 = vrot.lane.b32.xlu0 %v1354, 108
      %v1558 = vpop.permute.xlu0 %1557
      %1559 = vrot.lane.b32.xlu0 %v1356, 108
      %v1560 = vpop.permute.xlu0 %1559
      %1561 = vrot.lane.b32.xlu0 %v1358, 108
      %v1562 = vpop.permute.xlu0 %1561
      %1563 = vrot.lane.b32.xlu0 %v1360, 108
      %v1564 = vpop.permute.xlu0 %1563
      %1565 = vrot.lane.b32.xlu0 %v1362, 108
      %v1566 = vpop.permute.xlu0 %1565
      %1567 = vrot.lane.b32.xlu0 %v1364, 108
      %v1568 = vpop.permute.xlu0 %1567
      %1569 = vrot.lane.b32.xlu0 %v1366, 108
      %v1570 = vpop.permute.xlu0 %1569
      %1571 = vrot.lane.b32.xlu0 %v1368, 108
      %v1572 = vpop.permute.xlu0 %1571
      %1573 = vrot.lane.b32.xlu0 %v1370, 108
      %v1574 = vpop.permute.xlu0 %1573
      %1575 = vrot.lane.b32.xlu0 %v1372, 108
      %v1576 = vpop.permute.xlu0 %1575
      %1577 = vrot.lane.b32.xlu0 %v1374, 108
      %v1578 = vpop.permute.xlu0 %1577
      %1579 = vrot.lane.b32.xlu0 %v1376, 108
      %v1580 = vpop.permute.xlu0 %1579
      %1581 = vrot.lane.b32.xlu0 %v1378, 108
      %v1582 = vpop.permute.xlu0 %1581
      %1583 = vrot.lane.b32.xlu0 %v1380, 108
      %v1584 = vpop.permute.xlu0 %1583
      %1585 = vrot.lane.b32.xlu0 %v1382, 108
      %v1586 = vpop.permute.xlu0 %1585
      %1587 = vrot.lane.b32.xlu0 %v1384, 108
      %v1588 = vpop.permute.xlu0 %1587
      %1589 = vrot.lane.b32.xlu0 %v1386, 108
      %v1590 = vpop.permute.xlu0 %1589
      %1591 = vrot.lane.b32.xlu0 %v1388, 108
      %v1592 = vpop.permute.xlu0 %1591
      %1593 = vrot.lane.b32.xlu0 %v1390, 108
      %v1594 = vpop.permute.xlu0 %1593
      %1595 = vrot.lane.b32.xlu0 %v1392, 108
      %v1596 = vpop.permute.xlu0 %1595
      %1597 = vrot.lane.b32.xlu0 %v1394, 108
      %v1598 = vpop.permute.xlu0 %1597
      %1599 = vrot.lane.b32.xlu0 %v1396, 108
      %v1600 = vpop.permute.xlu0 %1599
      %1601 = vrot.lane.b32.xlu0 %v1398, 108
      %v1602 = vpop.permute.xlu0 %1601
      %1603 = vrot.lane.b32.xlu0 %v1400, 108
      %v1604 = vpop.permute.xlu0 %1603
      %1605 = vrot.lane.b32.xlu0 %v1526, 108
      %v1606 = vpop.permute.xlu0 %1605
      %1607 = vrot.lane.b32.xlu0 %v1528, 108
      %v1608 = vpop.permute.xlu0 %1607
      %1609 = vrot.lane.b32.xlu0 %v1527, 108
      %v1610 = vpop.permute.xlu0 %1609
      %vm1652 = vcmask 1044480
      %v1653 = vrot.slane %v1112, 3
      %v1654 = vrot.slane %v993, 3
      %v1655 = vsel %vm1652, %v1653, %v1654
      %v1656 = vrot.slane %v995, 3
      %v1657 = vsel %vm1652, %v1654, %v1656
      %v1658 = vrot.slane %v997, 3
      %v1659 = vsel %vm1652, %v1656, %v1658
      %v1660 = vrot.slane %v999, 3
      %v1661 = vsel %vm1652, %v1658, %v1660
      %v1662 = vrot.slane %v1001, 3
      %v1663 = vsel %vm1652, %v1660, %v1662
      %v1664 = vrot.slane %v1003, 3
      %v1665 = vsel %vm1652, %v1662, %v1664
      %v1666 = vrot.slane %v1005, 3
      %v1667 = vsel %vm1652, %v1664, %v1666
      %v1668 = vrot.slane %v1007, 3
      %v1669 = vsel %vm1652, %v1666, %v1668
      %v1670 = vrot.slane %v1009, 3
      %v1671 = vsel %vm1652, %v1668, %v1670
      %v1672 = vrot.slane %v1011, 3
      %v1673 = vsel %vm1652, %v1670, %v1672
      %v1674 = vrot.slane %v1013, 3
      %v1675 = vsel %vm1652, %v1672, %v1674
      %v1676 = vrot.slane %v1015, 3
      %v1677 = vsel %vm1652, %v1674, %v1676
      %v1678 = vrot.slane %v1017, 3
      %v1679 = vsel %vm1652, %v1676, %v1678
      %v1680 = vrot.slane %v1019, 3
      %v1681 = vsel %vm1652, %v1678, %v1680
      %v1682 = vrot.slane %v1021, 3
      %v1683 = vsel %vm1652, %v1680, %v1682
      %v1684 = vrot.slane %v1023, 3
      %v1685 = vsel %vm1652, %v1682, %v1684
      %v1686 = vrot.slane %v1025, 3
      %v1687 = vsel %vm1652, %v1684, %v1686
      %v1688 = vrot.slane %v1027, 3
      %v1689 = vsel %vm1652, %v1686, %v1688
      %v1690 = vrot.slane %v1029, 3
      %v1691 = vsel %vm1652, %v1688, %v1690
      %v1692 = vrot.slane %v1031, 3
      %v1693 = vsel %vm1652, %v1690, %v1692
      %v1694 = vrot.slane %v1033, 3
      %v1695 = vsel %vm1652, %v1692, %v1694
      %v1696 = vrot.slane %v1035, 3
      %v1697 = vsel %vm1652, %v1694, %v1696
      %v1698 = vrot.slane %v1037, 3
      %v1699 = vsel %vm1652, %v1696, %v1698
      %v1700 = vrot.slane %v1039, 3
      %v1701 = vsel %vm1652, %v1698, %v1700
      %v1702 = vrot.slane %v1041, 3
      %v1703 = vsel %vm1652, %v1700, %v1702
      %v1704 = vrot.slane %v1043, 3
      %v1705 = vsel %vm1652, %v1702, %v1704
      %v1706 = vrot.slane %v1045, 3
      %v1707 = vsel %vm1652, %v1704, %v1706
      %v1708 = vrot.slane %v1047, 3
      %v1709 = vsel %vm1652, %v1706, %v1708
      %v1710 = vrot.slane %v1049, 3
      %v1711 = vsel %vm1652, %v1708, %v1710
      %v1712 = vrot.slane %v1051, 3
      %v1713 = vsel %vm1652, %v1710, %v1712
      %v1714 = vrot.slane %v1053, 3
      %v1715 = vsel %vm1652, %v1712, %v1714
      %v1716 = vrot.slane %v1055, 3
      %v1717 = vsel %vm1652, %v1714, %v1716
      %v1718 = vrot.slane %v1057, 3
      %v1719 = vsel %vm1652, %v1716, %v1718
      %v1720 = vrot.slane %v1059, 3
      %v1721 = vsel %vm1652, %v1718, %v1720
      %v1722 = vrot.slane %v1061, 3
      %v1723 = vsel %vm1652, %v1720, %v1722
      %v1724 = vrot.slane %v1063, 3
      %v1725 = vsel %vm1652, %v1722, %v1724
      %v1726 = vrot.slane %v1065, 3
      %v1727 = vsel %vm1652, %v1724, %v1726
      %v1728 = vrot.slane %v1067, 3
      %v1729 = vsel %vm1652, %v1726, %v1728
      %v1730 = vrot.slane %v1069, 3
      %v1731 = vsel %vm1652, %v1728, %v1730
      %v1732 = vrot.slane %v1114, 3
      %v1733 = vsel %vm1652, %v1730, %v1732
      %1734 = vrot.lane.b32.xlu0 %v1655, 16
      %v1735 = vpop.permute.xlu0 %1734
      %1736 = vrot.lane.b32.xlu0 %v1657, 16
      %v1737 = vpop.permute.xlu0 %1736
      %1738 = vrot.lane.b32.xlu0 %v1659, 16
      %v1739 = vpop.permute.xlu0 %1738
      %1740 = vrot.lane.b32.xlu0 %v1661, 16
      %v1741 = vpop.permute.xlu0 %1740
      %1742 = vrot.lane.b32.xlu0 %v1663, 16
      %v1743 = vpop.permute.xlu0 %1742
      %1744 = vrot.lane.b32.xlu0 %v1665, 16
      %v1745 = vpop.permute.xlu0 %1744
      %1746 = vrot.lane.b32.xlu0 %v1667, 16
      %v1747 = vpop.permute.xlu0 %1746
      %1748 = vrot.lane.b32.xlu0 %v1669, 16
      %v1749 = vpop.permute.xlu0 %1748
      %1750 = vrot.lane.b32.xlu0 %v1671, 16
      %v1751 = vpop.permute.xlu0 %1750
      %1752 = vrot.lane.b32.xlu0 %v1673, 16
      %v1753 = vpop.permute.xlu0 %1752
      %1754 = vrot.lane.b32.xlu0 %v1675, 16
      %v1755 = vpop.permute.xlu0 %1754
      %1756 = vrot.lane.b32.xlu0 %v1677, 16
      %v1757 = vpop.permute.xlu0 %1756
      %1758 = vrot.lane.b32.xlu0 %v1679, 16
      %v1759 = vpop.permute.xlu0 %1758
      %1760 = vrot.lane.b32.xlu0 %v1681, 16
      %v1761 = vpop.permute.xlu0 %1760
      %1762 = vrot.lane.b32.xlu0 %v1683, 16
      %v1763 = vpop.permute.xlu0 %1762
      %1764 = vrot.lane.b32.xlu0 %v1685, 16
      %v1765 = vpop.permute.xlu0 %1764
      %1766 = vrot.lane.b32.xlu0 %v1687, 16
      %v1767 = vpop.permute.xlu0 %1766
      %1768 = vrot.lane.b32.xlu0 %v1689, 16
      %v1769 = vpop.permute.xlu0 %1768
      %1770 = vrot.lane.b32.xlu0 %v1691, 16
      %v1771 = vpop.permute.xlu0 %1770
      %1772 = vrot.lane.b32.xlu0 %v1693, 16
      %v1773 = vpop.permute.xlu0 %1772
      %1774 = vrot.lane.b32.xlu0 %v1695, 16
      %v1775 = vpop.permute.xlu0 %1774
      %1776 = vrot.lane.b32.xlu0 %v1697, 16
      %v1777 = vpop.permute.xlu0 %1776
      %1778 = vrot.lane.b32.xlu0 %v1699, 16
      %v1779 = vpop.permute.xlu0 %1778
      %1780 = vrot.lane.b32.xlu0 %v1701, 16
      %v1781 = vpop.permute.xlu0 %1780
      %1782 = vrot.lane.b32.xlu0 %v1703, 16
      %v1783 = vpop.permute.xlu0 %1782
      %1784 = vrot.lane.b32.xlu0 %v1705, 16
      %v1785 = vpop.permute.xlu0 %1784
      %1786 = vrot.lane.b32.xlu0 %v1707, 16
      %v1787 = vpop.permute.xlu0 %1786
      %1788 = vrot.lane.b32.xlu0 %v1709, 16
      %v1789 = vpop.permute.xlu0 %1788
      %1790 = vrot.lane.b32.xlu0 %v1711, 16
      %v1791 = vpop.permute.xlu0 %1790
      %1792 = vrot.lane.b32.xlu0 %v1713, 16
      %v1793 = vpop.permute.xlu0 %1792
      %1794 = vrot.lane.b32.xlu0 %v1715, 16
      %v1795 = vpop.permute.xlu0 %1794
      %1796 = vrot.lane.b32.xlu0 %v1717, 16
      %v1797 = vpop.permute.xlu0 %1796
      %1798 = vrot.lane.b32.xlu0 %v1719, 16
      %v1799 = vpop.permute.xlu0 %1798
      %1800 = vrot.lane.b32.xlu0 %v1721, 16
      %v1801 = vpop.permute.xlu0 %1800
      %1802 = vrot.lane.b32.xlu0 %v1723, 16
      %v1803 = vpop.permute.xlu0 %1802
      %1804 = vrot.lane.b32.xlu0 %v1725, 16
      %v1805 = vpop.permute.xlu0 %1804
      %1806 = vrot.lane.b32.xlu0 %v1727, 16
      %v1807 = vpop.permute.xlu0 %1806
      %1808 = vrot.lane.b32.xlu0 %v1729, 16
      %v1809 = vpop.permute.xlu0 %1808
      %1810 = vrot.lane.b32.xlu0 %v1731, 16
      %v1811 = vpop.permute.xlu0 %1810
      %1812 = vrot.lane.b32.xlu0 %v1733, 16
      %v1813 = vpop.permute.xlu0 %1812
      %1814 = vrot.lane.b32.xlu0 %v1732, 16
      %v1815 = vpop.permute.xlu0 %1814
      %vm1857 = vcmask 1043456
      %v1858 = vrot.slane %v1112, 4
      %v1859 = vrot.slane %v993, 4
      %v1860 = vsel %vm1857, %v1858, %v1859
      %v1861 = vrot.slane %v995, 4
      %v1862 = vsel %vm1857, %v1859, %v1861
      %v1863 = vrot.slane %v997, 4
      %v1864 = vsel %vm1857, %v1861, %v1863
      %v1865 = vrot.slane %v999, 4
      %v1866 = vsel %vm1857, %v1863, %v1865
      %v1867 = vrot.slane %v1001, 4
      %v1868 = vsel %vm1857, %v1865, %v1867
      %v1869 = vrot.slane %v1003, 4
      %v1870 = vsel %vm1857, %v1867, %v1869
      %v1871 = vrot.slane %v1005, 4
      %v1872 = vsel %vm1857, %v1869, %v1871
      %v1873 = vrot.slane %v1007, 4
      %v1874 = vsel %vm1857, %v1871, %v1873
      %v1875 = vrot.slane %v1009, 4
      %v1876 = vsel %vm1857, %v1873, %v1875
      %v1877 = vrot.slane %v1011, 4
      %v1878 = vsel %vm1857, %v1875, %v1877
      %v1879 = vrot.slane %v1013, 4
      %v1880 = vsel %vm1857, %v1877, %v1879
      %v1881 = vrot.slane %v1015, 4
      %v1882 = vsel %vm1857, %v1879, %v1881
      %v1883 = vrot.slane %v1017, 4
      %v1884 = vsel %vm1857, %v1881, %v1883
      %v1885 = vrot.slane %v1019, 4
      %v1886 = vsel %vm1857, %v1883, %v1885
      %v1887 = vrot.slane %v1021, 4
      %v1888 = vsel %vm1857, %v1885, %v1887
      %v1889 = vrot.slane %v1023, 4
      %v1890 = vsel %vm1857, %v1887, %v1889
      %v1891 = vrot.slane %v1025, 4
      %v1892 = vsel %vm1857, %v1889, %v1891
      %v1893 = vrot.slane %v1027, 4
      %v1894 = vsel %vm1857, %v1891, %v1893
      %v1895 = vrot.slane %v1029, 4
      %v1896 = vsel %vm1857, %v1893, %v1895
      %v1897 = vrot.slane %v1031, 4
      %v1898 = vsel %vm1857, %v1895, %v1897
      %v1899 = vrot.slane %v1033, 4
      %v1900 = vsel %vm1857, %v1897, %v1899
      %v1901 = vrot.slane %v1035, 4
      %v1902 = vsel %vm1857, %v1899, %v1901
      %v1903 = vrot.slane %v1037, 4
      %v1904 = vsel %vm1857, %v1901, %v1903
      %v1905 = vrot.slane %v1039, 4
      %v1906 = vsel %vm1857, %v1903, %v1905
      %v1907 = vrot.slane %v1041, 4
      %v1908 = vsel %vm1857, %v1905, %v1907
      %v1909 = vrot.slane %v1043, 4
      %v1910 = vsel %vm1857, %v1907, %v1909
      %v1911 = vrot.slane %v1045, 4
      %v1912 = vsel %vm1857, %v1909, %v1911
      %v1913 = vrot.slane %v1047, 4
      %v1914 = vsel %vm1857, %v1911, %v1913
      %v1915 = vrot.slane %v1049, 4
      %v1916 = vsel %vm1857, %v1913, %v1915
      %v1917 = vrot.slane %v1051, 4
      %v1918 = vsel %vm1857, %v1915, %v1917
      %v1919 = vrot.slane %v1053, 4
      %v1920 = vsel %vm1857, %v1917, %v1919
      %v1921 = vrot.slane %v1055, 4
      %v1922 = vsel %vm1857, %v1919, %v1921
      %v1923 = vrot.slane %v1057, 4
      %v1924 = vsel %vm1857, %v1921, %v1923
      %v1925 = vrot.slane %v1059, 4
      %v1926 = vsel %vm1857, %v1923, %v1925
      %v1927 = vrot.slane %v1061, 4
      %v1928 = vsel %vm1857, %v1925, %v1927
      %v1929 = vrot.slane %v1063, 4
      %v1930 = vsel %vm1857, %v1927, %v1929
      %v1931 = vrot.slane %v1065, 4
      %v1932 = vsel %vm1857, %v1929, %v1931
      %v1933 = vrot.slane %v1067, 4
      %v1934 = vsel %vm1857, %v1931, %v1933
      %v1935 = vrot.slane %v1069, 4
      %v1936 = vsel %vm1857, %v1933, %v1935
      %v1937 = vrot.slane %v1114, 4
      %v1938 = vsel %vm1857, %v1935, %v1937
      %1939 = vrot.lane.b32.xlu0 %v1860, 52
      %v1940 = vpop.permute.xlu0 %1939
      %1941 = vrot.lane.b32.xlu0 %v1862, 52
      %v1942 = vpop.permute.xlu0 %1941
      %1943 = vrot.lane.b32.xlu0 %v1864, 52
      %v1944 = vpop.permute.xlu0 %1943
      %1945 = vrot.lane.b32.xlu0 %v1866, 52
      %v1946 = vpop.permute.xlu0 %1945
      %1947 = vrot.lane.b32.xlu0 %v1868, 52
      %v1948 = vpop.permute.xlu0 %1947
      %1949 = vrot.lane.b32.xlu0 %v1870, 52
      %v1950 = vpop.permute.xlu0 %1949
      %1951 = vrot.lane.b32.xlu0 %v1872, 52
      %v1952 = vpop.permute.xlu0 %1951
      %1953 = vrot.lane.b32.xlu0 %v1874, 52
      %v1954 = vpop.permute.xlu0 %1953
      %1955 = vrot.lane.b32.xlu0 %v1876, 52
      %v1956 = vpop.permute.xlu0 %1955
      %1957 = vrot.lane.b32.xlu0 %v1878, 52
      %v1958 = vpop.permute.xlu0 %1957
      %1959 = vrot.lane.b32.xlu0 %v1880, 52
      %v1960 = vpop.permute.xlu0 %1959
      %1961 = vrot.lane.b32.xlu0 %v1882, 52
      %v1962 = vpop.permute.xlu0 %1961
      %1963 = vrot.lane.b32.xlu0 %v1884, 52
      %v1964 = vpop.permute.xlu0 %1963
      %1965 = vrot.lane.b32.xlu0 %v1886, 52
      %v1966 = vpop.permute.xlu0 %1965
      %1967 = vrot.lane.b32.xlu0 %v1888, 52
      %v1968 = vpop.permute.xlu0 %1967
      %1969 = vrot.lane.b32.xlu0 %v1890, 52
      %v1970 = vpop.permute.xlu0 %1969
      %1971 = vrot.lane.b32.xlu0 %v1892, 52
      %v1972 = vpop.permute.xlu0 %1971
      %1973 = vrot.lane.b32.xlu0 %v1894, 52
      %v1974 = vpop.permute.xlu0 %1973
      %1975 = vrot.lane.b32.xlu0 %v1896, 52
      %v1976 = vpop.permute.xlu0 %1975
      %1977 = vrot.lane.b32.xlu0 %v1898, 52
      %v1978 = vpop.permute.xlu0 %1977
      %1979 = vrot.lane.b32.xlu0 %v1900, 52
      %v1980 = vpop.permute.xlu0 %1979
      %1981 = vrot.lane.b32.xlu0 %v1902, 52
      %v1982 = vpop.permute.xlu0 %1981
      %1983 = vrot.lane.b32.xlu0 %v1904, 52
      %v1984 = vpop.permute.xlu0 %1983
      %1985 = vrot.lane.b32.xlu0 %v1906, 52
      %v1986 = vpop.permute.xlu0 %1985
      %1987 = vrot.lane.b32.xlu0 %v1908, 52
      %v1988 = vpop.permute.xlu0 %1987
      %1989 = vrot.lane.b32.xlu0 %v1910, 52
      %v1990 = vpop.permute.xlu0 %1989
      %1991 = vrot.lane.b32.xlu0 %v1912, 52
      %v1992 = vpop.permute.xlu0 %1991
      %1993 = vrot.lane.b32.xlu0 %v1914, 52
      %v1994 = vpop.permute.xlu0 %1993
      %1995 = vrot.lane.b32.xlu0 %v1916, 52
      %v1996 = vpop.permute.xlu0 %1995
      %1997 = vrot.lane.b32.xlu0 %v1918, 52
      %v1998 = vpop.permute.xlu0 %1997
      %1999 = vrot.lane.b32.xlu0 %v1920, 52
      %v2000 = vpop.permute.xlu0 %1999
      %2001 = vrot.lane.b32.xlu0 %v1922, 52
      %v2002 = vpop.permute.xlu0 %2001
      %2003 = vrot.lane.b32.xlu0 %v1924, 52
      %v2004 = vpop.permute.xlu0 %2003
      %2005 = vrot.lane.b32.xlu0 %v1926, 52
      %v2006 = vpop.permute.xlu0 %2005
      %2007 = vrot.lane.b32.xlu0 %v1928, 52
      %v2008 = vpop.permute.xlu0 %2007
      %2009 = vrot.lane.b32.xlu0 %v1930, 52
      %v2010 = vpop.permute.xlu0 %2009
      %2011 = vrot.lane.b32.xlu0 %v1932, 52
      %v2012 = vpop.permute.xlu0 %2011
      %2013 = vrot.lane.b32.xlu0 %v1934, 52
      %v2014 = vpop.permute.xlu0 %2013
      %2015 = vrot.lane.b32.xlu0 %v1936, 52
      %v2016 = vpop.permute.xlu0 %2015
      %2017 = vrot.lane.b32.xlu0 %v1938, 52
      %v2018 = vpop.permute.xlu0 %2017
      %2019 = vrot.lane.b32.xlu0 %v1937, 52
      %v2020 = vpop.permute.xlu0 %2019
      %v2062 = vrot.slane 0.0, 4
      %v2063 = vsel %vm1857, %v1937, %v2062
      %v2064 = vsel %vm1857, %v2062, %v2062
      %2065 = vrot.lane.b32.xlu0 %v1864, 88
      %v2066 = vpop.permute.xlu0 %2065
      %2067 = vrot.lane.b32.xlu0 %v1866, 88
      %v2068 = vpop.permute.xlu0 %2067
      %2069 = vrot.lane.b32.xlu0 %v1868, 88
      %v2070 = vpop.permute.xlu0 %2069
      %2071 = vrot.lane.b32.xlu0 %v1870, 88
      %v2072 = vpop.permute.xlu0 %2071
      %2073 = vrot.lane.b32.xlu0 %v1872, 88
      %v2074 = vpop.permute.xlu0 %2073
      %2075 = vrot.lane.b32.xlu0 %v1874, 88
      %v2076 = vpop.permute.xlu0 %2075
      %2077 = vrot.lane.b32.xlu0 %v1876, 88
      %v2078 = vpop.permute.xlu0 %2077
      %2079 = vrot.lane.b32.xlu0 %v1878, 88
      %v2080 = vpop.permute.xlu0 %2079
      %2081 = vrot.lane.b32.xlu0 %v1880, 88
      %v2082 = vpop.permute.xlu0 %2081
      %2083 = vrot.lane.b32.xlu0 %v1882, 88
      %v2084 = vpop.permute.xlu0 %2083
      %2085 = vrot.lane.b32.xlu0 %v1884, 88
      %v2086 = vpop.permute.xlu0 %2085
      %2087 = vrot.lane.b32.xlu0 %v1886, 88
      %v2088 = vpop.permute.xlu0 %2087
      %2089 = vrot.lane.b32.xlu0 %v1888, 88
      %v2090 = vpop.permute.xlu0 %2089
      %2091 = vrot.lane.b32.xlu0 %v1890, 88
      %v2092 = vpop.permute.xlu0 %2091
      %2093 = vrot.lane.b32.xlu0 %v1892, 88
      %v2094 = vpop.permute.xlu0 %2093
      %2095 = vrot.lane.b32.xlu0 %v1894, 88
      %v2096 = vpop.permute.xlu0 %2095
      %2097 = vrot.lane.b32.xlu0 %v1896, 88
      %v2098 = vpop.permute.xlu0 %2097
      %2099 = vrot.lane.b32.xlu0 %v1898, 88
      %v2100 = vpop.permute.xlu0 %2099
      %2101 = vrot.lane.b32.xlu0 %v1900, 88
      %v2102 = vpop.permute.xlu0 %2101
      %2103 = vrot.lane.b32.xlu0 %v1902, 88
      %v2104 = vpop.permute.xlu0 %2103
      %2105 = vrot.lane.b32.xlu0 %v1904, 88
      %v2106 = vpop.permute.xlu0 %2105
      %2107 = vrot.lane.b32.xlu0 %v1906, 88
      %v2108 = vpop.permute.xlu0 %2107
      %2109 = vrot.lane.b32.xlu0 %v1908, 88
      %v2110 = vpop.permute.xlu0 %2109
      %2111 = vrot.lane.b32.xlu0 %v1910, 88
      %v2112 = vpop.permute.xlu0 %2111
      %2113 = vrot.lane.b32.xlu0 %v1912, 88
      %v2114 = vpop.permute.xlu0 %2113
      %2115 = vrot.lane.b32.xlu0 %v1914, 88
      %v2116 = vpop.permute.xlu0 %2115
      %2117 = vrot.lane.b32.xlu0 %v1916, 88
      %v2118 = vpop.permute.xlu0 %2117
      %2119 = vrot.lane.b32.xlu0 %v1918, 88
      %v2120 = vpop.permute.xlu0 %2119
      %2121 = vrot.lane.b32.xlu0 %v1920, 88
      %v2122 = vpop.permute.xlu0 %2121
      %2123 = vrot.lane.b32.xlu0 %v1922, 88
      %v2124 = vpop.permute.xlu0 %2123
      %2125 = vrot.lane.b32.xlu0 %v1924, 88
      %v2126 = vpop.permute.xlu0 %2125
      %2127 = vrot.lane.b32.xlu0 %v1926, 88
      %v2128 = vpop.permute.xlu0 %2127
      %2129 = vrot.lane.b32.xlu0 %v1928, 88
      %v2130 = vpop.permute.xlu0 %2129
      %2131 = vrot.lane.b32.xlu0 %v1930, 88
      %v2132 = vpop.permute.xlu0 %2131
      %2133 = vrot.lane.b32.xlu0 %v1932, 88
      %v2134 = vpop.permute.xlu0 %2133
      %2135 = vrot.lane.b32.xlu0 %v1934, 88
      %v2136 = vpop.permute.xlu0 %2135
      %2137 = vrot.lane.b32.xlu0 %v1936, 88
      %v2138 = vpop.permute.xlu0 %2137
      %2139 = vrot.lane.b32.xlu0 %v1938, 88
      %v2140 = vpop.permute.xlu0 %2139
      %2141 = vrot.lane.b32.xlu0 %v2063, 88
      %v2142 = vpop.permute.xlu0 %2141
      %2143 = vrot.lane.b32.xlu0 %v2064, 88
      %v2144 = vpop.permute.xlu0 %2143
      %2145 = vrot.lane.b32.xlu0 %v2062, 88
      %v2146 = vpop.permute.xlu0 %2145
      %v2188 = vrot.slane %v995, 5
      %v2189 = vrot.slane %v997, 5
      %v2190 = vsel %vm990, %v2188, %v2189
      %v2191 = vrot.slane %v999, 5
      %v2192 = vsel %vm990, %v2189, %v2191
      %v2193 = vrot.slane %v1001, 5
      %v2194 = vsel %vm990, %v2191, %v2193
      %v2195 = vrot.slane %v1003, 5
      %v2196 = vsel %vm990, %v2193, %v2195
      %v2197 = vrot.slane %v1005, 5
      %v2198 = vsel %vm990, %v2195, %v2197
      %v2199 = vrot.slane %v1007, 5
      %v2200 = vsel %vm990, %v2197, %v2199
      %v2201 = vrot.slane %v1009, 5
      %v2202 = vsel %vm990, %v2199, %v2201
      %v2203 = vrot.slane %v1011, 5
      %v2204 = vsel %vm990, %v2201, %v2203
      %v2205 = vrot.slane %v1013, 5
      %v2206 = vsel %vm990, %v2203, %v2205
      %v2207 = vrot.slane %v1015, 5
      %v2208 = vsel %vm990, %v2205, %v2207
      %v2209 = vrot.slane %v1017, 5
      %v2210 = vsel %vm990, %v2207, %v2209
      %v2211 = vrot.slane %v1019, 5
      %v2212 = vsel %vm990, %v2209, %v2211
      %v2213 = vrot.slane %v1021, 5
      %v2214 = vsel %vm990, %v2211, %v2213
      %v2215 = vrot.slane %v1023, 5
      %v2216 = vsel %vm990, %v2213, %v2215
      %v2217 = vrot.slane %v1025, 5
      %v2218 = vsel %vm990, %v2215, %v2217
      %v2219 = vrot.slane %v1027, 5
      %v2220 = vsel %vm990, %v2217, %v2219
      %v2221 = vrot.slane %v1029, 5
      %v2222 = vsel %vm990, %v2219, %v2221
      %v2223 = vrot.slane %v1031, 5
      %v2224 = vsel %vm990, %v2221, %v2223
      %v2225 = vrot.slane %v1033, 5
      %v2226 = vsel %vm990, %v2223, %v2225
      %v2227 = vrot.slane %v1035, 5
      %v2228 = vsel %vm990, %v2225, %v2227
      %v2229 = vrot.slane %v1037, 5
      %v2230 = vsel %vm990, %v2227, %v2229
      %v2231 = vrot.slane %v1039, 5
      %v2232 = vsel %vm990, %v2229, %v2231
      %v2233 = vrot.slane %v1041, 5
      %v2234 = vsel %vm990, %v2231, %v2233
      %v2235 = vrot.slane %v1043, 5
      %v2236 = vsel %vm990, %v2233, %v2235
      %v2237 = vrot.slane %v1045, 5
      %v2238 = vsel %vm990, %v2235, %v2237
      %v2239 = vrot.slane %v1047, 5
      %v2240 = vsel %vm990, %v2237, %v2239
      %v2241 = vrot.slane %v1049, 5
      %v2242 = vsel %vm990, %v2239, %v2241
      %v2243 = vrot.slane %v1051, 5
      %v2244 = vsel %vm990, %v2241, %v2243
      %v2245 = vrot.slane %v1053, 5
      %v2246 = vsel %vm990, %v2243, %v2245
      %v2247 = vrot.slane %v1055, 5
      %v2248 = vsel %vm990, %v2245, %v2247
      %v2249 = vrot.slane %v1057, 5
      %v2250 = vsel %vm990, %v2247, %v2249
      %v2251 = vrot.slane %v1059, 5
      %v2252 = vsel %vm990, %v2249, %v2251
      %v2253 = vrot.slane %v1061, 5
      %v2254 = vsel %vm990, %v2251, %v2253
      %v2255 = vrot.slane %v1063, 5
      %v2256 = vsel %vm990, %v2253, %v2255
      %v2257 = vrot.slane %v1065, 5
      %v2258 = vsel %vm990, %v2255, %v2257
      %v2259 = vrot.slane %v1067, 5
      %v2260 = vsel %vm990, %v2257, %v2259
      %v2261 = vrot.slane %v1069, 5
      %v2262 = vsel %vm990, %v2259, %v2261
      %v2263 = vrot.slane %v1114, 5
      %v2264 = vsel %vm990, %v2261, %v2263
      %v2265 = vrot.slane 0.0, 5
      %v2266 = vsel %vm990, %v2263, %v2265
      %v2267 = vsel %vm990, %v2265, %v2265
      %2268 = vrot.lane.b32.xlu0 %v2190, 124
      %v2269 = vpop.permute.xlu0 %2268
      %2270 = vrot.lane.b32.xlu0 %v2192, 124
      %v2271 = vpop.permute.xlu0 %2270
      %2272 = vrot.lane.b32.xlu0 %v2194, 124
      %v2273 = vpop.permute.xlu0 %2272
      %2274 = vrot.lane.b32.xlu0 %v2196, 124
      %v2275 = vpop.permute.xlu0 %2274
      %2276 = vrot.lane.b32.xlu0 %v2198, 124
      %v2277 = vpop.permute.xlu0 %2276
      %2278 = vrot.lane.b32.xlu0 %v2200, 124
      %v2279 = vpop.permute.xlu0 %2278
      %2280 = vrot.lane.b32.xlu0 %v2202, 124
      %v2281 = vpop.permute.xlu0 %2280
      %2282 = vrot.lane.b32.xlu0 %v2204, 124
      %v2283 = vpop.permute.xlu0 %2282
      %2284 = vrot.lane.b32.xlu0 %v2206, 124
      %v2285 = vpop.permute.xlu0 %2284
      %2286 = vrot.lane.b32.xlu0 %v2208, 124
      %v2287 = vpop.permute.xlu0 %2286
      %2288 = vrot.lane.b32.xlu0 %v2210, 124
      %v2289 = vpop.permute.xlu0 %2288
      %2290 = vrot.lane.b32.xlu0 %v2212, 124
      %v2291 = vpop.permute.xlu0 %2290
      %2292 = vrot.lane.b32.xlu0 %v2214, 124
      %v2293 = vpop.permute.xlu0 %2292
      %2294 = vrot.lane.b32.xlu0 %v2216, 124
      %v2295 = vpop.permute.xlu0 %2294
      %2296 = vrot.lane.b32.xlu0 %v2218, 124
      %v2297 = vpop.permute.xlu0 %2296
      %2298 = vrot.lane.b32.xlu0 %v2220, 124
      %v2299 = vpop.permute.xlu0 %2298
      %2300 = vrot.lane.b32.xlu0 %v2222, 124
      %v2301 = vpop.permute.xlu0 %2300
      %2302 = vrot.lane.b32.xlu0 %v2224, 124
      %v2303 = vpop.permute.xlu0 %2302
      %2304 = vrot.lane.b32.xlu0 %v2226, 124
      %v2305 = vpop.permute.xlu0 %2304
      %2306 = vrot.lane.b32.xlu0 %v2228, 124
      %v2307 = vpop.permute.xlu0 %2306
      %2308 = vrot.lane.b32.xlu0 %v2230, 124
      %v2309 = vpop.permute.xlu0 %2308
      %2310 = vrot.lane.b32.xlu0 %v2232, 124
      %v2311 = vpop.permute.xlu0 %2310
      %2312 = vrot.lane.b32.xlu0 %v2234, 124
      %v2313 = vpop.permute.xlu0 %2312
      %2314 = vrot.lane.b32.xlu0 %v2236, 124
      %v2315 = vpop.permute.xlu0 %2314
      %2316 = vrot.lane.b32.xlu0 %v2238, 124
      %v2317 = vpop.permute.xlu0 %2316
      %2318 = vrot.lane.b32.xlu0 %v2240, 124
      %v2319 = vpop.permute.xlu0 %2318
      %2320 = vrot.lane.b32.xlu0 %v2242, 124
      %v2321 = vpop.permute.xlu0 %2320
      %2322 = vrot.lane.b32.xlu0 %v2244, 124
      %v2323 = vpop.permute.xlu0 %2322
      %2324 = vrot.lane.b32.xlu0 %v2246, 124
      %v2325 = vpop.permute.xlu0 %2324
      %2326 = vrot.lane.b32.xlu0 %v2248, 124
      %v2327 = vpop.permute.xlu0 %2326
      %2328 = vrot.lane.b32.xlu0 %v2250, 124
      %v2329 = vpop.permute.xlu0 %2328
      %2330 = vrot.lane.b32.xlu0 %v2252, 124
      %v2331 = vpop.permute.xlu0 %2330
      %2332 = vrot.lane.b32.xlu0 %v2254, 124
      %v2333 = vpop.permute.xlu0 %2332
      %2334 = vrot.lane.b32.xlu0 %v2256, 124
      %v2335 = vpop.permute.xlu0 %2334
      %2336 = vrot.lane.b32.xlu0 %v2258, 124
      %v2337 = vpop.permute.xlu0 %2336
      %2338 = vrot.lane.b32.xlu0 %v2260, 124
      %v2339 = vpop.permute.xlu0 %2338
      %2340 = vrot.lane.b32.xlu0 %v2262, 124
      %v2341 = vpop.permute.xlu0 %2340
      %2342 = vrot.lane.b32.xlu0 %v2264, 124
      %v2343 = vpop.permute.xlu0 %2342
      %2344 = vrot.lane.b32.xlu0 %v2266, 124
      %v2345 = vpop.permute.xlu0 %2344
      %2346 = vrot.lane.b32.xlu0 %v2267, 124
      %v2347 = vpop.permute.xlu0 %2346
      %vm2388 = vcmask 1041408
      %v2389 = vrot.slane %v995, 6
      %v2390 = vrot.slane %v997, 6
      %v2391 = vsel %vm2388, %v2389, %v2390
      %v2392 = vrot.slane %v999, 6
      %v2393 = vsel %vm2388, %v2390, %v2392
      %v2394 = vrot.slane %v1001, 6
      %v2395 = vsel %vm2388, %v2392, %v2394
      %v2396 = vrot.slane %v1003, 6
      %v2397 = vsel %vm2388, %v2394, %v2396
      %v2398 = vrot.slane %v1005, 6
      %v2399 = vsel %vm2388, %v2396, %v2398
      %v2400 = vrot.slane %v1007, 6
      %v2401 = vsel %vm2388, %v2398, %v2400
      %v2402 = vrot.slane %v1009, 6
      %v2403 = vsel %vm2388, %v2400, %v2402
      %v2404 = vrot.slane %v1011, 6
      %v2405 = vsel %vm2388, %v2402, %v2404
      %v2406 = vrot.slane %v1013, 6
      %v2407 = vsel %vm2388, %v2404, %v2406
      %v2408 = vrot.slane %v1015, 6
      %v2409 = vsel %vm2388, %v2406, %v2408
      %v2410 = vrot.slane %v1017, 6
      %v2411 = vsel %vm2388, %v2408, %v2410
      %v2412 = vrot.slane %v1019, 6
      %v2413 = vsel %vm2388, %v2410, %v2412
      %v2414 = vrot.slane %v1021, 6
      %v2415 = vsel %vm2388, %v2412, %v2414
      %v2416 = vrot.slane %v1023, 6
      %v2417 = vsel %vm2388, %v2414, %v2416
      %v2418 = vrot.slane %v1025, 6
      %v2419 = vsel %vm2388, %v2416, %v2418
      %v2420 = vrot.slane %v1027, 6
      %v2421 = vsel %vm2388, %v2418, %v2420
      %v2422 = vrot.slane %v1029, 6
      %v2423 = vsel %vm2388, %v2420, %v2422
      %v2424 = vrot.slane %v1031, 6
      %v2425 = vsel %vm2388, %v2422, %v2424
      %v2426 = vrot.slane %v1033, 6
      %v2427 = vsel %vm2388, %v2424, %v2426
      %v2428 = vrot.slane %v1035, 6
      %v2429 = vsel %vm2388, %v2426, %v2428
      %v2430 = vrot.slane %v1037, 6
      %v2431 = vsel %vm2388, %v2428, %v2430
      %v2432 = vrot.slane %v1039, 6
      %v2433 = vsel %vm2388, %v2430, %v2432
      %v2434 = vrot.slane %v1041, 6
      %v2435 = vsel %vm2388, %v2432, %v2434
      %v2436 = vrot.slane %v1043, 6
      %v2437 = vsel %vm2388, %v2434, %v2436
      %v2438 = vrot.slane %v1045, 6
      %v2439 = vsel %vm2388, %v2436, %v2438
      %v2440 = vrot.slane %v1047, 6
      %v2441 = vsel %vm2388, %v2438, %v2440
      %v2442 = vrot.slane %v1049, 6
      %v2443 = vsel %vm2388, %v2440, %v2442
      %v2444 = vrot.slane %v1051, 6
      %v2445 = vsel %vm2388, %v2442, %v2444
      %v2446 = vrot.slane %v1053, 6
      %v2447 = vsel %vm2388, %v2444, %v2446
      %v2448 = vrot.slane %v1055, 6
      %v2449 = vsel %vm2388, %v2446, %v2448
      %v2450 = vrot.slane %v1057, 6
      %v2451 = vsel %vm2388, %v2448, %v2450
      %v2452 = vrot.slane %v1059, 6
      %v2453 = vsel %vm2388, %v2450, %v2452
      %v2454 = vrot.slane %v1061, 6
      %v2455 = vsel %vm2388, %v2452, %v2454
      %v2456 = vrot.slane %v1063, 6
      %v2457 = vsel %vm2388, %v2454, %v2456
      %v2458 = vrot.slane %v1065, 6
      %v2459 = vsel %vm2388, %v2456, %v2458
      %v2460 = vrot.slane %v1067, 6
      %v2461 = vsel %vm2388, %v2458, %v2460
      %v2462 = vrot.slane %v1069, 6
      %v2463 = vsel %vm2388, %v2460, %v2462
      %v2464 = vrot.slane %v1114, 6
      %v2465 = vsel %vm2388, %v2462, %v2464
      %v2466 = vrot.slane 0.0, 6
      %v2467 = vsel %vm2388, %v2464, %v2466
      %v2468 = vsel %vm2388, %v2466, %v2466
      %2469 = vrot.lane.b32.xlu0 %v2391, 32
      %v2470 = vpop.permute.xlu0 %2469
      %2471 = vrot.lane.b32.xlu0 %v2393, 32
      %v2472 = vpop.permute.xlu0 %2471
      %2473 = vrot.lane.b32.xlu0 %v2395, 32
      %v2474 = vpop.permute.xlu0 %2473
      %2475 = vrot.lane.b32.xlu0 %v2397, 32
      %v2476 = vpop.permute.xlu0 %2475
      %2477 = vrot.lane.b32.xlu0 %v2399, 32
      %v2478 = vpop.permute.xlu0 %2477
      %2479 = vrot.lane.b32.xlu0 %v2401, 32
      %v2480 = vpop.permute.xlu0 %2479
      %2481 = vrot.lane.b32.xlu0 %v2403, 32
      %v2482 = vpop.permute.xlu0 %2481
      %2483 = vrot.lane.b32.xlu0 %v2405, 32
      %v2484 = vpop.permute.xlu0 %2483
      %2485 = vrot.lane.b32.xlu0 %v2407, 32
      %v2486 = vpop.permute.xlu0 %2485
      %2487 = vrot.lane.b32.xlu0 %v2409, 32
      %v2488 = vpop.permute.xlu0 %2487
      %2489 = vrot.lane.b32.xlu0 %v2411, 32
      %v2490 = vpop.permute.xlu0 %2489
      %2491 = vrot.lane.b32.xlu0 %v2413, 32
      %v2492 = vpop.permute.xlu0 %2491
      %2493 = vrot.lane.b32.xlu0 %v2415, 32
      %v2494 = vpop.permute.xlu0 %2493
      %2495 = vrot.lane.b32.xlu0 %v2417, 32
      %v2496 = vpop.permute.xlu0 %2495
      %2497 = vrot.lane.b32.xlu0 %v2419, 32
      %v2498 = vpop.permute.xlu0 %2497
      %2499 = vrot.lane.b32.xlu0 %v2421, 32
      %v2500 = vpop.permute.xlu0 %2499
      %2501 = vrot.lane.b32.xlu0 %v2423, 32
      %v2502 = vpop.permute.xlu0 %2501
      %2503 = vrot.lane.b32.xlu0 %v2425, 32
      %v2504 = vpop.permute.xlu0 %2503
      %2505 = vrot.lane.b32.xlu0 %v2427, 32
      %v2506 = vpop.permute.xlu0 %2505
      %2507 = vrot.lane.b32.xlu0 %v2429, 32
      %v2508 = vpop.permute.xlu0 %2507
      %2509 = vrot.lane.b32.xlu0 %v2431, 32
      %v2510 = vpop.permute.xlu0 %2509
      %2511 = vrot.lane.b32.xlu0 %v2433, 32
      %v2512 = vpop.permute.xlu0 %2511
      %2513 = vrot.lane.b32.xlu0 %v2435, 32
      %v2514 = vpop.permute.xlu0 %2513
      %2515 = vrot.lane.b32.xlu0 %v2437, 32
      %v2516 = vpop.permute.xlu0 %2515
      %2517 = vrot.lane.b32.xlu0 %v2439, 32
      %v2518 = vpop.permute.xlu0 %2517
      %2519 = vrot.lane.b32.xlu0 %v2441, 32
      %v2520 = vpop.permute.xlu0 %2519
      %2521 = vrot.lane.b32.xlu0 %v2443, 32
      %v2522 = vpop.permute.xlu0 %2521
      %2523 = vrot.lane.b32.xlu0 %v2445, 32
      %v2524 = vpop.permute.xlu0 %2523
      %2525 = vrot.lane.b32.xlu0 %v2447, 32
      %v2526 = vpop.permute.xlu0 %2525
      %2527 = vrot.lane.b32.xlu0 %v2449, 32
      %v2528 = vpop.permute.xlu0 %2527
      %2529 = vrot.lane.b32.xlu0 %v2451, 32
      %v2530 = vpop.permute.xlu0 %2529
      %2531 = vrot.lane.b32.xlu0 %v2453, 32
      %v2532 = vpop.permute.xlu0 %2531
      %2533 = vrot.lane.b32.xlu0 %v2455, 32
      %v2534 = vpop.permute.xlu0 %2533
      %2535 = vrot.lane.b32.xlu0 %v2457, 32
      %v2536 = vpop.permute.xlu0 %2535
      %2537 = vrot.lane.b32.xlu0 %v2459, 32
      %v2538 = vpop.permute.xlu0 %2537
      %2539 = vrot.lane.b32.xlu0 %v2461, 32
      %v2540 = vpop.permute.xlu0 %2539
      %2541 = vrot.lane.b32.xlu0 %v2463, 32
      %v2542 = vpop.permute.xlu0 %2541
      %2543 = vrot.lane.b32.xlu0 %v2465, 32
      %v2544 = vpop.permute.xlu0 %2543
      %2545 = vrot.lane.b32.xlu0 %v2467, 32
      %v2546 = vpop.permute.xlu0 %2545
      %2547 = vrot.lane.b32.xlu0 %v2468, 32
      %v2548 = vpop.permute.xlu0 %2547
      %vm2589 = vcmask 293888
      %v2590 = vsel %vm2589, 0.0, %v1198
      %v2591 = vsel %vm2589, 0.0, %v1200
      %v2592 = vsel %vm2589, %v1112, %v1202
      %v2593 = vsel %vm2589, %v993, %v1204
      %v2594 = vsel %vm2589, %v995, %v1206
      %v2595 = vsel %vm2589, %v997, %v1208
      %v2596 = vsel %vm2589, %v999, %v1210
      %v2597 = vsel %vm2589, %v1001, %v1212
      %v2598 = vsel %vm2589, %v1003, %v1214
      %v2599 = vsel %vm2589, %v1005, %v1216
      %v2600 = vsel %vm2589, %v1007, %v1218
      %v2601 = vsel %vm2589, %v1009, %v1220
      %v2602 = vsel %vm2589, %v1011, %v1222
      %v2603 = vsel %vm2589, %v1013, %v1224
      %v2604 = vsel %vm2589, %v1015, %v1226
      %v2605 = vsel %vm2589, %v1017, %v1228
      %v2606 = vsel %vm2589, %v1019, %v1230
      %v2607 = vsel %vm2589, %v1021, %v1232
      %v2608 = vsel %vm2589, %v1023, %v1234
      %v2609 = vsel %vm2589, %v1025, %v1236
      %v2610 = vsel %vm2589, %v1027, %v1238
      %v2611 = vsel %vm2589, %v1029, %v1240
      %v2612 = vsel %vm2589, %v1031, %v1242
      %v2613 = vsel %vm2589, %v1033, %v1244
      %v2614 = vsel %vm2589, %v1035, %v1246
      %v2615 = vsel %vm2589, %v1037, %v1248
      %v2616 = vsel %vm2589, %v1039, %v1250
      %v2617 = vsel %vm2589, %v1041, %v1252
      %v2618 = vsel %vm2589, %v1043, %v1254
      %v2619 = vsel %vm2589, %v1045, %v1256
      %v2620 = vsel %vm2589, %v1047, %v1258
      %v2621 = vsel %vm2589, %v1049, %v1260
      %v2622 = vsel %vm2589, %v1051, %v1262
      %v2623 = vsel %vm2589, %v1053, %v1264
      %v2624 = vsel %vm2589, %v1055, %v1266
      %v2625 = vsel %vm2589, %v1057, %v1268
      %v2626 = vsel %vm2589, %v1059, %v1270
      %v2627 = vsel %vm2589, %v1061, %v1272
      %v2628 = vsel %vm2589, %v1063, %v1274
      %v2629 = vsel %vm2589, %v1065, %v1276
      %v2630 = vsel %vm2589, %v1067, %v1278
      %vm2631 = vcmask 588800
      %v2632 = vsel %vm2631, %v2590, %v1402
      %v2633 = vsel %vm2631, %v2591, %v1404
      %v2634 = vsel %vm2631, %v2592, %v1406
      %v2635 = vsel %vm2631, %v2593, %v1408
      %v2636 = vsel %vm2631, %v2594, %v1410
      %v2637 = vsel %vm2631, %v2595, %v1412
      %v2638 = vsel %vm2631, %v2596, %v1414
      %v2639 = vsel %vm2631, %v2597, %v1416
      %v2640 = vsel %vm2631, %v2598, %v1418
      %v2641 = vsel %vm2631, %v2599, %v1420
      %v2642 = vsel %vm2631, %v2600, %v1422
      %v2643 = vsel %vm2631, %v2601, %v1424
      %v2644 = vsel %vm2631, %v2602, %v1426
      %v2645 = vsel %vm2631, %v2603, %v1428
      %v2646 = vsel %vm2631, %v2604, %v1430
      %v2647 = vsel %vm2631, %v2605, %v1432
      %v2648 = vsel %vm2631, %v2606, %v1434
      %v2649 = vsel %vm2631, %v2607, %v1436
      %v2650 = vsel %vm2631, %v2608, %v1438
      %v2651 = vsel %vm2631, %v2609, %v1440
      %v2652 = vsel %vm2631, %v2610, %v1442
      %v2653 = vsel %vm2631, %v2611, %v1444
      %v2654 = vsel %vm2631, %v2612, %v1446
      %v2655 = vsel %vm2631, %v2613, %v1448
      %v2656 = vsel %vm2631, %v2614, %v1450
      %v2657 = vsel %vm2631, %v2615, %v1452
      %v2658 = vsel %vm2631, %v2616, %v1454
      %v2659 = vsel %vm2631, %v2617, %v1456
      %v2660 = vsel %vm2631, %v2618, %v1458
      %v2661 = vsel %vm2631, %v2619, %v1460
      %v2662 = vsel %vm2631, %v2620, %v1462
      %v2663 = vsel %vm2631, %v2621, %v1464
      %v2664 = vsel %vm2631, %v2622, %v1466
      %v2665 = vsel %vm2631, %v2623, %v1468
      %v2666 = vsel %vm2631, %v2624, %v1470
      %v2667 = vsel %vm2631, %v2625, %v1472
      %v2668 = vsel %vm2631, %v2626, %v1474
      %v2669 = vsel %vm2631, %v2627, %v1476
      %v2670 = vsel %vm2631, %v2628, %v1478
      %v2671 = vsel %vm2631, %v2629, %v1480
      %v2672 = vsel %vm2631, %v2630, %v1482
      %vm2673 = vcmask 883712
      %v2674 = vsel %vm2673, %v2632, %v1530
      %v2675 = vsel %vm2673, %v2633, %v1532
      %v2676 = vsel %vm2673, %v2634, %v1534
      %v2677 = vsel %vm2673, %v2635, %v1536
      %v2678 = vsel %vm2673, %v2636, %v1538
      %v2679 = vsel %vm2673, %v2637, %v1540
      %v2680 = vsel %vm2673, %v2638, %v1542
      %v2681 = vsel %vm2673, %v2639, %v1544
      %v2682 = vsel %vm2673, %v2640, %v1546
      %v2683 = vsel %vm2673, %v2641, %v1548
      %v2684 = vsel %vm2673, %v2642, %v1550
      %v2685 = vsel %vm2673, %v2643, %v1552
      %v2686 = vsel %vm2673, %v2644, %v1554
      %v2687 = vsel %vm2673, %v2645, %v1556
      %v2688 = vsel %vm2673, %v2646, %v1558
      %v2689 = vsel %vm2673, %v2647, %v1560
      %v2690 = vsel %vm2673, %v2648, %v1562
      %v2691 = vsel %vm2673, %v2649, %v1564
      %v2692 = vsel %vm2673, %v2650, %v1566
      %v2693 = vsel %vm2673, %v2651, %v1568
      %v2694 = vsel %vm2673, %v2652, %v1570
      %v2695 = vsel %vm2673, %v2653, %v1572
      %v2696 = vsel %vm2673, %v2654, %v1574
      %v2697 = vsel %vm2673, %v2655, %v1576
      %v2698 = vsel %vm2673, %v2656, %v1578
      %v2699 = vsel %vm2673, %v2657, %v1580
      %v2700 = vsel %vm2673, %v2658, %v1582
      %v2701 = vsel %vm2673, %v2659, %v1584
      %v2702 = vsel %vm2673, %v2660, %v1586
      %v2703 = vsel %vm2673, %v2661, %v1588
      %v2704 = vsel %vm2673, %v2662, %v1590
      %v2705 = vsel %vm2673, %v2663, %v1592
      %v2706 = vsel %vm2673, %v2664, %v1594
      %v2707 = vsel %vm2673, %v2665, %v1596
      %v2708 = vsel %vm2673, %v2666, %v1598
      %v2709 = vsel %vm2673, %v2667, %v1600
      %v2710 = vsel %vm2673, %v2668, %v1602
      %v2711 = vsel %vm2673, %v2669, %v1604
      %v2712 = vsel %vm2673, %v2670, %v1606
      %v2713 = vsel %vm2673, %v2671, %v1608
      %v2714 = vsel %vm2673, %v2672, %v1610
      %vm2715 = vcmask 130048
      %v2716 = vsel %vm2715, %v1530, %v1735
      %v2717 = vsel %vm2715, %v1532, %v1737
      %v2718 = vsel %vm2715, %v1534, %v1739
      %v2719 = vsel %vm2715, %v1536, %v1741
      %v2720 = vsel %vm2715, %v1538, %v1743
      %v2721 = vsel %vm2715, %v1540, %v1745
      %v2722 = vsel %vm2715, %v1542, %v1747
      %v2723 = vsel %vm2715, %v1544, %v1749
      %v2724 = vsel %vm2715, %v1546, %v1751
      %v2725 = vsel %vm2715, %v1548, %v1753
      %v2726 = vsel %vm2715, %v1550, %v1755
      %v2727 = vsel %vm2715, %v1552, %v1757
      %v2728 = vsel %vm2715, %v1554, %v1759
      %v2729 = vsel %vm2715, %v1556, %v1761
      %v2730 = vsel %vm2715, %v1558, %v1763
      %v2731 = vsel %vm2715, %v1560, %v1765
      %v2732 = vsel %vm2715, %v1562, %v1767
      %v2733 = vsel %vm2715, %v1564, %v1769
      %v2734 = vsel %vm2715, %v1566, %v1771
      %v2735 = vsel %vm2715, %v1568, %v1773
      %v2736 = vsel %vm2715, %v1570, %v1775
      %v2737 = vsel %vm2715, %v1572, %v1777
      %v2738 = vsel %vm2715, %v1574, %v1779
      %v2739 = vsel %vm2715, %v1576, %v1781
      %v2740 = vsel %vm2715, %v1578, %v1783
      %v2741 = vsel %vm2715, %v1580, %v1785
      %v2742 = vsel %vm2715, %v1582, %v1787
      %v2743 = vsel %vm2715, %v1584, %v1789
      %v2744 = vsel %vm2715, %v1586, %v1791
      %v2745 = vsel %vm2715, %v1588, %v1793
      %v2746 = vsel %vm2715, %v1590, %v1795
      %v2747 = vsel %vm2715, %v1592, %v1797
      %v2748 = vsel %vm2715, %v1594, %v1799
      %v2749 = vsel %vm2715, %v1596, %v1801
      %v2750 = vsel %vm2715, %v1598, %v1803
      %v2751 = vsel %vm2715, %v1600, %v1805
      %v2752 = vsel %vm2715, %v1602, %v1807
      %v2753 = vsel %vm2715, %v1604, %v1809
      %v2754 = vsel %vm2715, %v1606, %v1811
      %v2755 = vsel %vm2715, %v1608, %v1813
      %v2756 = vsel %vm2715, %v1610, %v1815
      %vm2757 = vcmask 424960
      %v2758 = vsel %vm2757, %v2716, %v1940
      %v2759 = vsel %vm2757, %v2717, %v1942
      %v2760 = vsel %vm2757, %v2718, %v1944
      %v2761 = vsel %vm2757, %v2719, %v1946
      %v2762 = vsel %vm2757, %v2720, %v1948
      %v2763 = vsel %vm2757, %v2721, %v1950
      %v2764 = vsel %vm2757, %v2722, %v1952
      %v2765 = vsel %vm2757, %v2723, %v1954
      %v2766 = vsel %vm2757, %v2724, %v1956
      %v2767 = vsel %vm2757, %v2725, %v1958
      %v2768 = vsel %vm2757, %v2726, %v1960
      %v2769 = vsel %vm2757, %v2727, %v1962
      %v2770 = vsel %vm2757, %v2728, %v1964
      %v2771 = vsel %vm2757, %v2729, %v1966
      %v2772 = vsel %vm2757, %v2730, %v1968
      %v2773 = vsel %vm2757, %v2731, %v1970
      %v2774 = vsel %vm2757, %v2732, %v1972
      %v2775 = vsel %vm2757, %v2733, %v1974
      %v2776 = vsel %vm2757, %v2734, %v1976
      %v2777 = vsel %vm2757, %v2735, %v1978
      %v2778 = vsel %vm2757, %v2736, %v1980
      %v2779 = vsel %vm2757, %v2737, %v1982
      %v2780 = vsel %vm2757, %v2738, %v1984
      %v2781 = vsel %vm2757, %v2739, %v1986
      %v2782 = vsel %vm2757, %v2740, %v1988
      %v2783 = vsel %vm2757, %v2741, %v1990
      %v2784 = vsel %vm2757, %v2742, %v1992
      %v2785 = vsel %vm2757, %v2743, %v1994
      %v2786 = vsel %vm2757, %v2744, %v1996
      %v2787 = vsel %vm2757, %v2745, %v1998
      %v2788 = vsel %vm2757, %v2746, %v2000
      %v2789 = vsel %vm2757, %v2747, %v2002
      %v2790 = vsel %vm2757, %v2748, %v2004
      %v2791 = vsel %vm2757, %v2749, %v2006
      %v2792 = vsel %vm2757, %v2750, %v2008
      %v2793 = vsel %vm2757, %v2751, %v2010
      %v2794 = vsel %vm2757, %v2752, %v2012
      %v2795 = vsel %vm2757, %v2753, %v2014
      %v2796 = vsel %vm2757, %v2754, %v2016
      %v2797 = vsel %vm2757, %v2755, %v2018
      %v2798 = vsel %vm2757, %v2756, %v2020
      %vm2799 = vcmask 719872
      %v2800 = vsel %vm2799, %v2758, %v2066
      %v2801 = vsel %vm2799, %v2759, %v2068
      %v2802 = vsel %vm2799, %v2760, %v2070
      %v2803 = vsel %vm2799, %v2761, %v2072
      %v2804 = vsel %vm2799, %v2762, %v2074
      %v2805 = vsel %vm2799, %v2763, %v2076
      %v2806 = vsel %vm2799, %v2764, %v2078
      %v2807 = vsel %vm2799, %v2765, %v2080
      %v2808 = vsel %vm2799, %v2766, %v2082
      %v2809 = vsel %vm2799, %v2767, %v2084
      %v2810 = vsel %vm2799, %v2768, %v2086
      %v2811 = vsel %vm2799, %v2769, %v2088
      %v2812 = vsel %vm2799, %v2770, %v2090
      %v2813 = vsel %vm2799, %v2771, %v2092
      %v2814 = vsel %vm2799, %v2772, %v2094
      %v2815 = vsel %vm2799, %v2773, %v2096
      %v2816 = vsel %vm2799, %v2774, %v2098
      %v2817 = vsel %vm2799, %v2775, %v2100
      %v2818 = vsel %vm2799, %v2776, %v2102
      %v2819 = vsel %vm2799, %v2777, %v2104
      %v2820 = vsel %vm2799, %v2778, %v2106
      %v2821 = vsel %vm2799, %v2779, %v2108
      %v2822 = vsel %vm2799, %v2780, %v2110
      %v2823 = vsel %vm2799, %v2781, %v2112
      %v2824 = vsel %vm2799, %v2782, %v2114
      %v2825 = vsel %vm2799, %v2783, %v2116
      %v2826 = vsel %vm2799, %v2784, %v2118
      %v2827 = vsel %vm2799, %v2785, %v2120
      %v2828 = vsel %vm2799, %v2786, %v2122
      %v2829 = vsel %vm2799, %v2787, %v2124
      %v2830 = vsel %vm2799, %v2788, %v2126
      %v2831 = vsel %vm2799, %v2789, %v2128
      %v2832 = vsel %vm2799, %v2790, %v2130
      %v2833 = vsel %vm2799, %v2791, %v2132
      %v2834 = vsel %vm2799, %v2792, %v2134
      %v2835 = vsel %vm2799, %v2793, %v2136
      %v2836 = vsel %vm2799, %v2794, %v2138
      %v2837 = vsel %vm2799, %v2795, %v2140
      %v2838 = vsel %vm2799, %v2796, %v2142
      %v2839 = vsel %vm2799, %v2797, %v2144
      %v2840 = vsel %vm2799, %v2798, %v2146
      %vm2841 = vcmask 1014784
      %v2842 = vsel %vm2841, %v2800, %v2269
      %v2843 = vsel %vm2841, %v2801, %v2271
      %v2844 = vsel %vm2841, %v2802, %v2273
      %v2845 = vsel %vm2841, %v2803, %v2275
      %v2846 = vsel %vm2841, %v2804, %v2277
      %v2847 = vsel %vm2841, %v2805, %v2279
      %v2848 = vsel %vm2841, %v2806, %v2281
      %v2849 = vsel %vm2841, %v2807, %v2283
      %v2850 = vsel %vm2841, %v2808, %v2285
      %v2851 = vsel %vm2841, %v2809, %v2287
      %v2852 = vsel %vm2841, %v2810, %v2289
      %v2853 = vsel %vm2841, %v2811, %v2291
      %v2854 = vsel %vm2841, %v2812, %v2293
      %v2855 = vsel %vm2841, %v2813, %v2295
      %v2856 = vsel %vm2841, %v2814, %v2297
      %v2857 = vsel %vm2841, %v2815, %v2299
      %v2858 = vsel %vm2841, %v2816, %v2301
      %v2859 = vsel %vm2841, %v2817, %v2303
      %v2860 = vsel %vm2841, %v2818, %v2305
      %v2861 = vsel %vm2841, %v2819, %v2307
      %v2862 = vsel %vm2841, %v2820, %v2309
      %v2863 = vsel %vm2841, %v2821, %v2311
      %v2864 = vsel %vm2841, %v2822, %v2313
      %v2865 = vsel %vm2841, %v2823, %v2315
      %v2866 = vsel %vm2841, %v2824, %v2317
      %v2867 = vsel %vm2841, %v2825, %v2319
      %v2868 = vsel %vm2841, %v2826, %v2321
      %v2869 = vsel %vm2841, %v2827, %v2323
      %v2870 = vsel %vm2841, %v2828, %v2325
      %v2871 = vsel %vm2841, %v2829, %v2327
      %v2872 = vsel %vm2841, %v2830, %v2329
      %v2873 = vsel %vm2841, %v2831, %v2331
      %v2874 = vsel %vm2841, %v2832, %v2333
      %v2875 = vsel %vm2841, %v2833, %v2335
      %v2876 = vsel %vm2841, %v2834, %v2337
      %v2877 = vsel %vm2841, %v2835, %v2339
      %v2878 = vsel %vm2841, %v2836, %v2341
      %v2879 = vsel %vm2841, %v2837, %v2343
      %v2880 = vsel %vm2841, %v2838, %v2345
      %v2881 = vsel %vm2841, %v2839, %v2347
      %v2882 = vsel %vm2841, %v2840, %v2347
      %vm2883 = vcmask 261120
      %v2884 = vsel %vm2883, %v2269, %v2470
      %v2885 = vsel %vm2883, %v2271, %v2472
      %v2886 = vsel %vm2883, %v2273, %v2474
      %v2887 = vsel %vm2883, %v2275, %v2476
      %v2888 = vsel %vm2883, %v2277, %v2478
      %v2889 = vsel %vm2883, %v2279, %v2480
      %v2890 = vsel %vm2883, %v2281, %v2482
      %v2891 = vsel %vm2883, %v2283, %v2484
      %v2892 = vsel %vm2883, %v2285, %v2486
      %v2893 = vsel %vm2883, %v2287, %v2488
      %v2894 = vsel %vm2883, %v2289, %v2490
      %v2895 = vsel %vm2883, %v2291, %v2492
      %v2896 = vsel %vm2883, %v2293, %v2494
      %v2897 = vsel %vm2883, %v2295, %v2496
      %v2898 = vsel %vm2883, %v2297, %v2498
      %v2899 = vsel %vm2883, %v2299, %v2500
      %v2900 = vsel %vm2883, %v2301, %v2502
      %v2901 = vsel %vm2883, %v2303, %v2504
      %v2902 = vsel %vm2883, %v2305, %v2506
      %v2903 = vsel %vm2883, %v2307, %v2508
      %v2904 = vsel %vm2883, %v2309, %v2510
      %v2905 = vsel %vm2883, %v2311, %v2512
      %v2906 = vsel %vm2883, %v2313, %v2514
      %v2907 = vsel %vm2883, %v2315, %v2516
      %v2908 = vsel %vm2883, %v2317, %v2518
      %v2909 = vsel %vm2883, %v2319, %v2520
      %v2910 = vsel %vm2883, %v2321, %v2522
      %v2911 = vsel %vm2883, %v2323, %v2524
      %v2912 = vsel %vm2883, %v2325, %v2526
      %v2913 = vsel %vm2883, %v2327, %v2528
      %v2914 = vsel %vm2883, %v2329, %v2530
      %v2915 = vsel %vm2883, %v2331, %v2532
      %v2916 = vsel %vm2883, %v2333, %v2534
      %v2917 = vsel %vm2883, %v2335, %v2536
      %v2918 = vsel %vm2883, %v2337, %v2538
      %v2919 = vsel %vm2883, %v2339, %v2540
      %v2920 = vsel %vm2883, %v2341, %v2542
      %v2921 = vsel %vm2883, %v2343, %v2544
      %v2922 = vsel %vm2883, %v2345, %v2546
      %v2923 = vsel %vm2883, %v2347, %v2548
      %v2924 = vpack.c.bf16 %v2675, %v2674
      %v2925 = vpack.c.bf16 %v2843, %v2842
      %v2926 = vpack.c.bf16 %v2885, %v2884
      %v2927 = vpack.c.bf16 %v2677, %v2676
      %v2928 = vpack.c.bf16 %v2845, %v2844
      %v2929 = vpack.c.bf16 %v2887, %v2886
      %v2930 = vpack.c.bf16 %v2679, %v2678
      %v2931 = vpack.c.bf16 %v2847, %v2846
      %v2932 = vpack.c.bf16 %v2889, %v2888
      %v2933 = vpack.c.bf16 %v2681, %v2680
      %v2934 = vpack.c.bf16 %v2849, %v2848
      %v2935 = vpack.c.bf16 %v2891, %v2890
      %v2936 = vpack.c.bf16 %v2683, %v2682
      %v2937 = vpack.c.bf16 %v2851, %v2850
      %v2938 = vpack.c.bf16 %v2893, %v2892
      %v2939 = vpack.c.bf16 %v2685, %v2684
      %v2940 = vpack.c.bf16 %v2853, %v2852
      %v2941 = vpack.c.bf16 %v2895, %v2894
      %v2942 = vpack.c.bf16 %v2687, %v2686
      %v2943 = vpack.c.bf16 %v2855, %v2854
      %v2944 = vpack.c.bf16 %v2897, %v2896
      %v2945 = vpack.c.bf16 %v2689, %v2688
      %v2946 = vpack.c.bf16 %v2857, %v2856
      %v2947 = vpack.c.bf16 %v2899, %v2898
      %v2948 = vpack.c.bf16 %v2691, %v2690
      %v2949 = vpack.c.bf16 %v2859, %v2858
      %v2950 = vpack.c.bf16 %v2901, %v2900
      %v2951 = vpack.c.bf16 %v2693, %v2692
      %v2952 = vpack.c.bf16 %v2861, %v2860
      %v2953 = vpack.c.bf16 %v2903, %v2902
      %v2954 = vpack.c.bf16 %v2695, %v2694
      %v2955 = vpack.c.bf16 %v2863, %v2862
      %v2956 = vpack.c.bf16 %v2905, %v2904
      %v2957 = vpack.c.bf16 %v2697, %v2696
      %v2958 = vpack.c.bf16 %v2865, %v2864
      %v2959 = vpack.c.bf16 %v2907, %v2906
      %v2960 = vpack.c.bf16 %v2699, %v2698
      %v2961 = vpack.c.bf16 %v2867, %v2866
      %v2962 = vpack.c.bf16 %v2909, %v2908
      %v2963 = vpack.c.bf16 %v2701, %v2700
      %v2964 = vpack.c.bf16 %v2869, %v2868
      %v2965 = vpack.c.bf16 %v2911, %v2910
      %v2966 = vpack.c.bf16 %v2703, %v2702
      %v2967 = vpack.c.bf16 %v2871, %v2870
      %v2968 = vpack.c.bf16 %v2913, %v2912
      %v2969 = vpack.c.bf16 %v2705, %v2704
      %v2970 = vpack.c.bf16 %v2873, %v2872
      %v2971 = vpack.c.bf16 %v2915, %v2914
      %v2972 = vpack.c.bf16 %v2707, %v2706
      %v2973 = vpack.c.bf16 %v2875, %v2874
      %v2974 = vpack.c.bf16 %v2917, %v2916
      %v2975 = vpack.c.bf16 %v2709, %v2708
      %v2976 = vpack.c.bf16 %v2877, %v2876
      %v2977 = vpack.c.bf16 %v2919, %v2918
      %v2978 = vpack.c.bf16 %v2711, %v2710
      %v2979 = vpack.c.bf16 %v2879, %v2878
      %v2980 = vpack.c.bf16 %v2921, %v2920
      %v2981 = vpack.c.bf16 %v2713, %v2712
      %v2982 = vpack.c.bf16 %v2881, %v2880
      %v2983 = vpack.c.bf16 %v2923, %v2922
      %v2984 = vpack.c.bf16 %v2714, %v2714
      %v2985 = vpack.c.bf16 %v2882, %v2882
      %v2986 = vpack.c.bf16 %v2923, %v2923
      %v2987 = vld [vmem:[%s3] sm:$0xf]
      %v2988 = vld [vmem:[%s3 + $0x4] sm:$0xf]
      %v2989 = vld [vmem:[%s3 + $0x8] sm:$0xf]
      %v2990 = vld [vmem:[%s3 + $0xc] sm:$0xf]
      %v2991 = vld [vmem:[%s3 + $0x10] sm:$0xf]
      %v2992 = vld [vmem:[%s3 + $0x14] sm:$0xf]
      %v2993 = vld [vmem:[%s3 + $0x18] sm:$0xf]
      %v2994 = vld [vmem:[%s3 + $0x1c] sm:$0xf]
      %v2995 = vld [vmem:[%s3 + $0x20] sm:$0xf]
      %v2996 = vld [vmem:[%s3 + $0x24] sm:$0xf]
      %v2997 = vld [vmem:[%s3 + $0x28] sm:$0xf]
      %v2998 = vld [vmem:[%s3 + $0x2c] sm:$0xf]
      %v2999 = vld [vmem:[%s3 + $0x30] sm:$0xf]
      %v3000 = vld [vmem:[%s3 + $0x34] sm:$0xf]
      %v3001 = vld [vmem:[%s3 + $0x38] sm:$0xf]
      %v3002 = vld [vmem:[%s3 + $0x3c] sm:$0xf]
      %v3003 = vld [vmem:[%s3 + $0x40] sm:$0xf]
      %v3004 = vld [vmem:[%s3 + $0x44] sm:$0xf]
      %v3005 = vld [vmem:[%s3 + $0x48] sm:$0xf]
      %v3006 = vld [vmem:[%s3 + $0x4c] sm:$0xf]
      %v3007 = vld [vmem:[%s3 + $0x50] sm:$0xf]
      %v3008 = vld [vmem:[%s3 + $0x54] sm:$0xf]
      %v3009 = vld [vmem:[%s3 + $0x58] sm:$0xf]
      %v3010 = vld [vmem:[%s3 + $0x5c] sm:$0xf]
      %v3011 = vld [vmem:[%s3 + $0x60] sm:$0xf]
      %v3012 = vld [vmem:[%s3 + $0x64] sm:$0xf]
      %v3013 = vld [vmem:[%s3 + $0x68] sm:$0xf]
      %v3014 = vld [vmem:[%s3 + $0x6c] sm:$0xf]
      %v3015 = vld [vmem:[%s3 + $0x70] sm:$0xf]
      %v3016 = vld [vmem:[%s3 + $0x74] sm:$0xf]
      %v3017 = vld [vmem:[%s3 + $0x78] sm:$0xf]
      %v3018 = vld [vmem:[%s3 + $0x7c] sm:$0xf]
      %v3019 = vld [vmem:[%s3 + $0x80] sm:$0xf]
      %v3020 = vld [vmem:[%s3 + $0x84] sm:$0xf]
      %v3021 = vld [vmem:[%s3 + $0x88] sm:$0xf]
      %v3022 = vld [vmem:[%s3 + $0x8c] sm:$0xf]
      %v3023 = vld [vmem:[%s3 + $0x90] sm:$0xf]
      %v3024 = vld [vmem:[%s3 + $0x94] sm:$0xf]
      %v3025 = vld [vmem:[%s3 + $0x98] sm:$0xf]
      %v3026 = vld [vmem:[%s3 + $0x9c] sm:$0xf]
      %v3027 = vld [vmem:[%s3 + $0xa0] sm:$0x3]
      %v3028 = vld [vmem:[%s4] sm:$0x1]
      %v3030 = vlaneseq
      %v3031 = vshrl.u32 %v3030, 7
      %v3032 = vsub.s32 0, %v3031
      %v3033 = vrot.slane %v3028, %v3032
      %v3076 = vunpack.c.l.b16 %v2987
      %v3077 = vunpack.c.l.b16 %v2988
      %v3078 = vunpack.c.l.b16 %v2989
      %v3079 = vunpack.c.l.b16 %v2990
      %v3080 = vunpack.c.l.b16 %v2991
      %v3081 = vunpack.c.l.b16 %v2992
      %v3082 = vunpack.c.l.b16 %v2993
      %v3083 = vunpack.c.l.b16 %v2994
      %v3084 = vunpack.c.l.b16 %v2995
      %v3085 = vunpack.c.l.b16 %v2996
      %v3086 = vunpack.c.l.b16 %v2997
      %v3087 = vunpack.c.l.b16 %v2998
      %v3088 = vunpack.c.l.b16 %v2999
      %v3089 = vunpack.c.l.b16 %v3000
      %v3090 = vunpack.c.l.b16 %v3001
      %v3091 = vunpack.c.l.b16 %v3002
      %v3092 = vunpack.c.l.b16 %v3003
      %v3093 = vunpack.c.l.b16 %v3004
      %v3094 = vunpack.c.l.b16 %v3005
      %v3095 = vunpack.c.l.b16 %v3006
      %v3096 = vunpack.c.l.b16 %v3007
      %v3097 = vunpack.c.l.b16 %v3008
      %v3098 = vunpack.c.l.b16 %v3009
      %v3099 = vunpack.c.l.b16 %v3010
      %v3100 = vunpack.c.l.b16 %v3011
      %v3101 = vunpack.c.l.b16 %v3012
      %v3102 = vunpack.c.l.b16 %v3013
      %v3103 = vunpack.c.l.b16 %v3014
      %v3104 = vunpack.c.l.b16 %v3015
      %v3105 = vunpack.c.l.b16 %v3016
      %v3106 = vunpack.c.l.b16 %v3017
      %v3107 = vunpack.c.l.b16 %v3018
      %v3108 = vunpack.c.l.b16 %v3019
      %v3109 = vunpack.c.l.b16 %v3020
      %v3110 = vunpack.c.l.b16 %v3021
      %v3111 = vunpack.c.l.b16 %v3022
      %v3112 = vunpack.c.l.b16 %v3023
      %v3113 = vunpack.c.l.b16 %v3024
      %v3114 = vunpack.c.l.b16 %v3025
      %v3115 = vunpack.c.l.b16 %v3026
      %v3116 = vunpack.c.l.b16 %v3027
      %v3117 = vpack.c.b16 %v3077, %v3076
      %v3118 = vpack.c.b16 %v3079, %v3078
      %v3119 = vpack.c.b16 %v3081, %v3080
      %v3120 = vpack.c.b16 %v3083, %v3082
      %v3121 = vpack.c.b16 %v3085, %v3084
      %v3122 = vpack.c.b16 %v3087, %v3086
      %v3123 = vpack.c.b16 %v3089, %v3088
      %v3124 = vpack.c.b16 %v3091, %v3090
      %v3125 = vpack.c.b16 %v3093, %v3092
      %v3126 = vpack.c.b16 %v3095, %v3094
      %v3127 = vpack.c.b16 %v3097, %v3096
      %v3128 = vpack.c.b16 %v3099, %v3098
      %v3129 = vpack.c.b16 %v3101, %v3100
      %v3130 = vpack.c.b16 %v3103, %v3102
      %v3131 = vpack.c.b16 %v3105, %v3104
      %v3132 = vpack.c.b16 %v3107, %v3106
      %v3133 = vpack.c.b16 %v3109, %v3108
      %v3134 = vpack.c.b16 %v3111, %v3110
      %v3135 = vpack.c.b16 %v3113, %v3112
      %v3136 = vpack.c.b16 %v3115, %v3114
      %v3137 = vpack.c.b16 %v3116, %v3116
      %vm3158 = vcmask 556032
      %v3160 = vsel %vm3158, %v2926, 0
      %v3163 = vsel %vm3158, %v2929, 0
      %v3166 = vsel %vm3158, %v2932, 0
      %v3169 = vsel %vm3158, %v2935, 0
      %v3172 = vsel %vm3158, %v2938, 0
      %v3175 = vsel %vm3158, %v2941, 0
      %v3178 = vsel %vm3158, %v2944, 0
      %v3181 = vsel %vm3158, %v2947, 0
      %v3184 = vsel %vm3158, %v2950, 0
      %v3187 = vsel %vm3158, %v2953, 0
      %v3190 = vsel %vm3158, %v2956, 0
      %v3193 = vsel %vm3158, %v2959, 0
      %v3196 = vsel %vm3158, %v2962, 0
      %v3199 = vsel %vm3158, %v2965, 0
      %v3202 = vsel %vm3158, %v2968, 0
      %v3205 = vsel %vm3158, %v2971, 0
      %v3208 = vsel %vm3158, %v2974, 0
      %v3211 = vsel %vm3158, %v2977, 0
      %v3214 = vsel %vm3158, %v2980, 0
      %v3217 = vsel %vm3158, %v2983, 0
      %v3220 = vsel %vm3158, %v2986, 0
      %v3223 = vsel %vm2388, %v3137, 0
      %3225 = vmatprep.subr.bf16.mxu0 0
      %3226 = vmatpush1.bf16.msra.mxu0 %v3117
      %3227 = vmatprep.subr.bf16.mxu0 0
      %3228 = vmatpush1.bf16.msra.mxu0 %v3118
      %3229 = vmatprep.subr.bf16.mxu0 0
      %3230 = vmatpush1.bf16.msra.mxu0 %v3119
      %3231 = vmatprep.subr.bf16.mxu0 0
      %3232 = vmatpush1.bf16.msra.mxu0 %v3120
      %3233 = vmatprep.subr.bf16.mxu0 0
      %3234 = vmatpush1.bf16.msra.mxu0 %v3121
      %3235 = vmatprep.subr.bf16.mxu0 0
      %3236 = vmatpush1.bf16.msra.mxu0 %v3122
      %3237 = vmatprep.subr.bf16.mxu0 0
      %3238 = vmatpush1.bf16.msra.mxu0 %v3123
      %3239 = vmatprep.subr.bf16.mxu0 0
      %3240 = vmatpush1.bf16.msra.mxu0 %v3124
      %3241 = vmatprep.subr.bf16.mxu0 0
      %3242 = vmatpush1.bf16.msra.mxu0 %v3125
      %3243 = vmatprep.subr.bf16.mxu0 0
      %3244 = vmatpush1.bf16.msra.mxu0 %v3126
      %3245 = vmatprep.subr.bf16.mxu0 0
      %3246 = vmatpush1.bf16.msra.mxu0 %v3127
      %3247 = vmatprep.subr.bf16.mxu0 0
      %3248 = vmatpush1.bf16.msra.mxu0 %v3128
      %3249 = vmatprep.subr.bf16.mxu0 0
      %3250 = vmatpush1.bf16.msra.mxu0 %v3129
      %3251 = vmatprep.subr.bf16.mxu0 0
      %3252 = vmatpush1.bf16.msra.mxu0 %v3130
      %3253 = vmatprep.subr.bf16.mxu0 0
      %3254 = vmatpush1.bf16.msra.mxu0 %v3131
      %3255 = vmatprep.subr.bf16.mxu0 0
      %3256 = vmatpush1.bf16.msra.mxu0 %v3132
      %3257 = vmatprep.mubr.bf16.mxu0 %v2925
      %3258 = vmatmul.mubr.bf16.gmra.mrb[0].mxu0 %v2924
      %v3259 = vpop.f32.mrb[0].mxu0
      %v3260 = vadd.f32 %v3033, %v3259
      %v3261 = vpop.f32.mrb[0].mxu0
      %v3262 = vpop.f32.mrb[0].mxu0
      %v3263 = vadd.f32 %v3033, %v3262
      %v3264 = vpop.f32.mrb[0].mxu0
      %3265 = vmatprep.mubr.bf16.mxu0 %v2928
      %3266 = vmatmul.mubr.bf16.gmra.mrb[0].mxu0 %v2927
      %v3267 = vpop.f32.mrb[0].mxu0
      %v3268 = vadd.f32 %v3033, %v3267
      %v3269 = vpop.f32.mrb[0].mxu0
      %v3270 = vpop.f32.mrb[0].mxu0
      %v3271 = vadd.f32 %v3033, %v3270
      %v3272 = vpop.f32.mrb[0].mxu0
      %3273 = vmatprep.mubr.bf16.mxu0 %v2931
      %3274 = vmatmul.mubr.bf16.gmra.mrb[0].mxu0 %v2930
      %v3275 = vpop.f32.mrb[0].mxu0
      %v3276 = vadd.f32 %v3033, %v3275
      %v3277 = vpop.f32.mrb[0].mxu0
      %v3278 = vpop.f32.mrb[0].mxu0
      %v3279 = vadd.f32 %v3033, %v3278
      %v3280 = vpop.f32.mrb[0].mxu0
      %3281 = vmatprep.mubr.bf16.mxu0 %v2934
      %3282 = vmatmul.mubr.bf16.gmra.mrb[0].mxu0 %v2933
      %v3283 = vpop.f32.mrb[0].mxu0
      %v3284 = vadd.f32 %v3033, %v3283
      %v3285 = vpop.f32.mrb[0].mxu0
      %v3286 = vpop.f32.mrb[0].mxu0
      %v3287 = vadd.f32 %v3033, %v3286
      %v3288 = vpop.f32.mrb[0].mxu0
      %3289 = vmatprep.mubr.bf16.mxu0 %v2937
      %3290 = vmatmul.mubr.bf16.gmra.mrb[0].mxu0 %v2936
      %v3291 = vpop.f32.mrb[0].mxu0
      %v3292 = vadd.f32 %v3033, %v3291
      %v3293 = vpop.f32.mrb[0].mxu0
      %v3294 = vpop.f32.mrb[0].mxu0
      %v3295 = vadd.f32 %v3033, %v3294
      %v3296 = vpop.f32.mrb[0].mxu0
      %3297 = vmatprep.mubr.bf16.mxu0 %v2940
      %3298 = vmatmul.mubr.bf16.gmra.mrb[0].mxu0 %v2939
      %v3299 = vpop.f32.mrb[0].mxu0
      %v3300 = vadd.f32 %v3033, %v3299
      %v3301 = vpop.f32.mrb[0].mxu0
      %v3302 = vpop.f32.mrb[0].mxu0
      %v3303 = vadd.f32 %v3033, %v3302
      %v3304 = vpop.f32.mrb[0].mxu0
      %3305 = vmatprep.mubr.bf16.mxu0 %v2943
      %3306 = vmatmul.mubr.bf16.gmra.mrb[0].mxu0 %v2942
      %v3307 = vpop.f32.mrb[0].mxu0
      %v3308 = vadd.f32 %v3033, %v3307
      %v3309 = vpop.f32.mrb[0].mxu0
      %v3310 = vpop.f32.mrb[0].mxu0
      %v3311 = vadd.f32 %v3033, %v3310
      %v3312 = vpop.f32.mrb[0].mxu0
      %3313 = vmatprep.mubr.bf16.mxu0 %v2946
      %3314 = vmatmul.mubr.bf16.gmra.mrb[0].mxu0 %v2945
      %v3315 = vpop.f32.mrb[0].mxu0
      %v3316 = vadd.f32 %v3033, %v3315
      %v3317 = vpop.f32.mrb[0].mxu0
      %v3318 = vpop.f32.mrb[0].mxu0
      %v3319 = vadd.f32 %v3033, %v3318
      %v3320 = vpop.f32.mrb[0].mxu0
      %3321 = vmatprep.mubr.bf16.mxu0 %v2949
      %3322 = vmatmul.mubr.bf16.gmra.mrb[0].mxu0 %v2948
      %v3323 = vpop.f32.mrb[0].mxu0
      %v3324 = vadd.f32 %v3033, %v3323
      %v3325 = vpop.f32.mrb[0].mxu0
      %v3326 = vpop.f32.mrb[0].mxu0
      %v3327 = vadd.f32 %v3033, %v3326
      %v3328 = vpop.f32.mrb[0].mxu0
      %3329 = vmatprep.mubr.bf16.mxu0 %v2952
      %3330 = vmatmul.mubr.bf16.gmra.mrb[0].mxu0 %v2951
      %v3331 = vpop.f32.mrb[0].mxu0
      %v3332 = vadd.f32 %v3033, %v3331
      %v3333 = vpop.f32.mrb[0].mxu0
      %v3334 = vpop.f32.mrb[0].mxu0
      %v3335 = vadd.f32 %v3033, %v3334
      %v3336 = vpop.f32.mrb[0].mxu0
      %3337 = vmatprep.mubr.bf16.mxu0 %v2955
      %3338 = vmatmul.mubr.bf16.gmra.mrb[0].mxu0 %v2954
      %v3339 = vpop.f32.mrb[0].mxu0
      %v3340 = vadd.f32 %v3033, %v3339
      %v3341 = vpop.f32.mrb[0].mxu0
      %v3342 = vpop.f32.mrb[0].mxu0
      %v3343 = vadd.f32 %v3033, %v3342
      %v3344 = vpop.f32.mrb[0].mxu0
      %3345 = vmatprep.mubr.bf16.mxu0 %v2958
      %3346 = vmatmul.mubr.bf16.gmra.mrb[0].mxu0 %v2957
      %v3347 = vpop.f32.mrb[0].mxu0
      %v3348 = vadd.f32 %v3033, %v3347
      %v3349 = vpop.f32.mrb[0].mxu0
      %v3350 = vpop.f32.mrb[0].mxu0
      %v3351 = vadd.f32 %v3033, %v3350
      %v3352 = vpop.f32.mrb[0].mxu0
      %3353 = vmatprep.mubr.bf16.mxu0 %v2961
      %3354 = vmatmul.mubr.bf16.gmra.mrb[0].mxu0 %v2960
      %v3355 = vpop.f32.mrb[0].mxu0
      %v3356 = vadd.f32 %v3033, %v3355
      %v3357 = vpop.f32.mrb[0].mxu0
      %v3358 = vpop.f32.mrb[0].mxu0
      %v3359 = vadd.f32 %v3033, %v3358
      %v3360 = vpop.f32.mrb[0].mxu0
      %3361 = vmatprep.mubr.bf16.mxu0 %v2964
      %3362 = vmatmul.mubr.bf16.gmra.mrb[0].mxu0 %v2963
      %v3363 = vpop.f32.mrb[0].mxu0
      %v3364 = vadd.f32 %v3033, %v3363
      %v3365 = vpop.f32.mrb[0].mxu0
      %v3366 = vpop.f32.mrb[0].mxu0
      %v3367 = vadd.f32 %v3033, %v3366
      %v3368 = vpop.f32.mrb[0].mxu0
      %3369 = vmatprep.mubr.bf16.mxu0 %v2967
      %3370 = vmatmul.mubr.bf16.gmra.mrb[0].mxu0 %v2966
      %v3371 = vpop.f32.mrb[0].mxu0
      %v3372 = vadd.f32 %v3033, %v3371
      %v3373 = vpop.f32.mrb[0].mxu0
      %v3374 = vpop.f32.mrb[0].mxu0
      %v3375 = vadd.f32 %v3033, %v3374
      %v3376 = vpop.f32.mrb[0].mxu0
      %3377 = vmatprep.mubr.bf16.mxu0 %v2970
      %3378 = vmatmul.mubr.bf16.gmra.mrb[0].mxu0 %v2969
      %v3379 = vpop.f32.mrb[0].mxu0
      %v3380 = vadd.f32 %v3033, %v3379
      %v3381 = vpop.f32.mrb[0].mxu0
      %v3382 = vpop.f32.mrb[0].mxu0
      %v3383 = vadd.f32 %v3033, %v3382
      %v3384 = vpop.f32.mrb[0].mxu0
      %3385 = vmatprep.mubr.bf16.mxu0 %v2973
      %3386 = vmatmul.mubr.bf16.gmra.mrb[0].mxu0 %v2972
      %v3387 = vpop.f32.mrb[0].mxu0
      %v3388 = vadd.f32 %v3033, %v3387
      %v3389 = vpop.f32.mrb[0].mxu0
      %v3390 = vpop.f32.mrb[0].mxu0
      %v3391 = vadd.f32 %v3033, %v3390
      %v3392 = vpop.f32.mrb[0].mxu0
      %3393 = vmatprep.mubr.bf16.mxu0 %v2976
      %3394 = vmatmul.mubr.bf16.gmra.mrb[0].mxu0 %v2975
      %v3395 = vpop.f32.mrb[0].mxu0
      %v3396 = vadd.f32 %v3033, %v3395
      %v3397 = vpop.f32.mrb[0].mxu0
      %v3398 = vpop.f32.mrb[0].mxu0
      %v3399 = vadd.f32 %v3033, %v3398
      %v3400 = vpop.f32.mrb[0].mxu0
      %3401 = vmatprep.mubr.bf16.mxu0 %v2979
      %3402 = vmatmul.mubr.bf16.gmra.mrb[0].mxu0 %v2978
      %v3403 = vpop.f32.mrb[0].mxu0
      %v3404 = vadd.f32 %v3033, %v3403
      %v3405 = vpop.f32.mrb[0].mxu0
      %v3406 = vpop.f32.mrb[0].mxu0
      %v3407 = vadd.f32 %v3033, %v3406
      %v3408 = vpop.f32.mrb[0].mxu0
      %3409 = vmatprep.mubr.bf16.mxu0 %v2982
      %3410 = vmatmul.mubr.bf16.gmra.mrb[0].mxu0 %v2981
      %v3411 = vpop.f32.mrb[0].mxu0
      %v3412 = vadd.f32 %v3033, %v3411
      %v3413 = vpop.f32.mrb[0].mxu0
      %v3414 = vpop.f32.mrb[0].mxu0
      %v3415 = vadd.f32 %v3033, %v3414
      %v3416 = vpop.f32.mrb[0].mxu0
      %3417 = vmatprep.mubr.bf16.mxu0 %v2985
      %3418 = vmatmul.mubr.bf16.gmra.mrb[0].mxu0 %v2984
      %v3419 = vpop.f32.mrb[0].mxu0
      %v3420 = vadd.f32 %v3033, %v3419
      %v3421 = vpop.f32.mrb[0].mxu0
      %v3422 = vpop.f32.mrb[0].mxu0
      %v3423 = vpop.f32.mrb[0].mxu0
      %3424 = vdwg.mxu0
      %3425 = vmatprep.subr.bf16.mxu0 0
      %3426 = vmatpush1.bf16.msra.mxu0 %v3133
      %3427 = vmatprep.subr.bf16.mxu0 0
      %3428 = vmatpush1.bf16.msra.mxu0 %v3134
      %3429 = vmatprep.subr.bf16.mxu0 0
      %3430 = vmatpush1.bf16.msra.mxu0 %v3135
      %3431 = vmatprep.subr.bf16.mxu0 0
      %3432 = vmatpush1.bf16.msra.mxu0 %v3136
      %3433 = vmatprep.subr.bf16.mxu0 0
      %3434 = vmatpush1.bf16.msra.mxu0 %v3223
      %3435 = vmatprep.subr.bf16.mxu0 0
      %3436 = vmatpush1.bf16.msra.mxu0 0
      %3437 = vmatprep.subr.bf16.mxu0 0
      %3438 = vmatpush1.bf16.msra.mxu0 0
      %3439 = vmatprep.subr.bf16.mxu0 0
      %3440 = vmatpush1.bf16.msra.mxu0 0
      %3441 = vmatprep.subr.bf16.mxu0 0
      %3442 = vmatpush1.bf16.msra.mxu0 0
      %3443 = vmatprep.subr.bf16.mxu0 0
      %3444 = vmatpush1.bf16.msra.mxu0 0
      %3445 = vmatprep.subr.bf16.mxu0 0
      %3446 = vmatpush1.bf16.msra.mxu0 0
      %3447 = vmatprep.subr.bf16.mxu0 0
      %3448 = vmatpush1.bf16.msra.mxu0 0
      %3449 = vmatprep.subr.bf16.mxu0 0
      %3450 = vmatpush1.bf16.msra.mxu0 0
      %3451 = vmatprep.subr.bf16.mxu0 0
      %3452 = vmatpush1.bf16.msra.mxu0 0
      %3453 = vmatprep.subr.bf16.mxu0 0
      %3454 = vmatpush1.bf16.msra.mxu0 0
      %3455 = vmatprep.subr.bf16.mxu0 0
      %3456 = vmatpush1.bf16.msra.mxu0 0
      %3457 = vmatprep.mubr.bf16.mxu0 0
      %3458 = vmatmul.mubr.bf16.gmra.mrb[0].mxu0 %v3160
      %v3459 = vpop.f32.mrb[0].mxu0
      %v3460 = vadd.f32 %v3260, %v3459
      %v3461 = vpop.f32.mrb[0].mxu0
      %v3462 = vpop.f32.mrb[0].mxu0
      %v3463 = vadd.f32 %v3263, %v3462
      %v3464 = vpop.f32.mrb[0].mxu0
      %3465 = vmatprep.mubr.bf16.mxu0 0
      %3466 = vmatmul.mubr.bf16.gmra.mrb[0].mxu0 %v3163
      %v3467 = vpop.f32.mrb[0].mxu0
      %v3468 = vadd.f32 %v3268, %v3467
      %v3469 = vpop.f32.mrb[0].mxu0
      %v3470 = vpop.f32.mrb[0].mxu0
      %v3471 = vadd.f32 %v3271, %v3470
      %v3472 = vpop.f32.mrb[0].mxu0
      %3473 = vmatprep.mubr.bf16.mxu0 0
      %3474 = vmatmul.mubr.bf16.gmra.mrb[0].mxu0 %v3166
      %v3475 = vpop.f32.mrb[0].mxu0
      %v3476 = vadd.f32 %v3276, %v3475
      %v3477 = vpop.f32.mrb[0].mxu0
      %v3478 = vpop.f32.mrb[0].mxu0
      %v3479 = vadd.f32 %v3279, %v3478
      %v3480 = vpop.f32.mrb[0].mxu0
      %3481 = vmatprep.mubr.bf16.mxu0 0
      %3482 = vmatmul.mubr.bf16.gmra.mrb[0].mxu0 %v3169
      %v3483 = vpop.f32.mrb[0].mxu0
      %v3484 = vadd.f32 %v3284, %v3483
      %v3485 = vpop.f32.mrb[0].mxu0
      %v3486 = vpop.f32.mrb[0].mxu0
      %v3487 = vadd.f32 %v3287, %v3486
      %v3488 = vpop.f32.mrb[0].mxu0
      %3489 = vmatprep.mubr.bf16.mxu0 0
      %3490 = vmatmul.mubr.bf16.gmra.mrb[0].mxu0 %v3172
      %v3491 = vpop.f32.mrb[0].mxu0
      %v3492 = vadd.f32 %v3292, %v3491
      %v3493 = vpop.f32.mrb[0].mxu0
      %v3494 = vpop.f32.mrb[0].mxu0
      %v3495 = vadd.f32 %v3295, %v3494
      %v3496 = vpop.f32.mrb[0].mxu0
      %3497 = vmatprep.mubr.bf16.mxu0 0
      %3498 = vmatmul.mubr.bf16.gmra.mrb[0].mxu0 %v3175
      %v3499 = vpop.f32.mrb[0].mxu0
      %v3500 = vadd.f32 %v3300, %v3499
      %v3501 = vpop.f32.mrb[0].mxu0
      %v3502 = vpop.f32.mrb[0].mxu0
      %v3503 = vadd.f32 %v3303, %v3502
      %v3504 = vpop.f32.mrb[0].mxu0
      %3505 = vmatprep.mubr.bf16.mxu0 0
      %3506 = vmatmul.mubr.bf16.gmra.mrb[0].mxu0 %v3178
      %v3507 = vpop.f32.mrb[0].mxu0
      %v3508 = vadd.f32 %v3308, %v3507
      %v3509 = vpop.f32.mrb[0].mxu0
      %v3510 = vpop.f32.mrb[0].mxu0
      %v3511 = vadd.f32 %v3311, %v3510
      %v3512 = vpop.f32.mrb[0].mxu0
      %3513 = vmatprep.mubr.bf16.mxu0 0
      %3514 = vmatmul.mubr.bf16.gmra.mrb[0].mxu0 %v3181
      %v3515 = vpop.f32.mrb[0].mxu0
      %v3516 = vadd.f32 %v3316, %v3515
      %v3517 = vpop.f32.mrb[0].mxu0
      %v3518 = vpop.f32.mrb[0].mxu0
      %v3519 = vadd.f32 %v3319, %v3518
      %v3520 = vpop.f32.mrb[0].mxu0
      %3521 = vmatprep.mubr.bf16.mxu0 0
      %3522 = vmatmul.mubr.bf16.gmra.mrb[0].mxu0 %v3184
      %v3523 = vpop.f32.mrb[0].mxu0
      %v3524 = vadd.f32 %v3324, %v3523
      %v3525 = vpop.f32.mrb[0].mxu0
      %v3526 = vpop.f32.mrb[0].mxu0
      %v3527 = vadd.f32 %v3327, %v3526
      %v3528 = vpop.f32.mrb[0].mxu0
      %3529 = vmatprep.mubr.bf16.mxu0 0
      %3530 = vmatmul.mubr.bf16.gmra.mrb[0].mxu0 %v3187
      %v3531 = vpop.f32.mrb[0].mxu0
      %v3532 = vadd.f32 %v3332, %v3531
      %v3533 = vpop.f32.mrb[0].mxu0
      %v3534 = vpop.f32.mrb[0].mxu0
      %v3535 = vadd.f32 %v3335, %v3534
      %v3536 = vpop.f32.mrb[0].mxu0
      %3537 = vmatprep.mubr.bf16.mxu0 0
      %3538 = vmatmul.mubr.bf16.gmra.mrb[0].mxu0 %v3190
      %v3539 = vpop.f32.mrb[0].mxu0
      %v3540 = vadd.f32 %v3340, %v3539
      %v3541 = vpop.f32.mrb[0].mxu0
      %v3542 = vpop.f32.mrb[0].mxu0
      %v3543 = vadd.f32 %v3343, %v3542
      %v3544 = vpop.f32.mrb[0].mxu0
      %3545 = vmatprep.mubr.bf16.mxu0 0
      %3546 = vmatmul.mubr.bf16.gmra.mrb[0].mxu0 %v3193
      %v3547 = vpop.f32.mrb[0].mxu0
      %v3548 = vadd.f32 %v3348, %v3547
      %v3549 = vpop.f32.mrb[0].mxu0
      %v3550 = vpop.f32.mrb[0].mxu0
      %v3551 = vadd.f32 %v3351, %v3550
      %v3552 = vpop.f32.mrb[0].mxu0
      %3553 = vmatprep.mubr.bf16.mxu0 0
      %3554 = vmatmul.mubr.bf16.gmra.mrb[0].mxu0 %v3196
      %v3555 = vpop.f32.mrb[0].mxu0
      %v3556 = vadd.f32 %v3356, %v3555
      %v3557 = vpop.f32.mrb[0].mxu0
      %v3558 = vpop.f32.mrb[0].mxu0
      %v3559 = vadd.f32 %v3359, %v3558
      %v3560 = vpop.f32.mrb[0].mxu0
      %3561 = vmatprep.mubr.bf16.mxu0 0
      %3562 = vmatmul.mubr.bf16.gmra.mrb[0].mxu0 %v3199
      %v3563 = vpop.f32.mrb[0].mxu0
      %v3564 = vadd.f32 %v3364, %v3563
      %v3565 = vpop.f32.mrb[0].mxu0
      %v3566 = vpop.f32.mrb[0].mxu0
      %v3567 = vadd.f32 %v3367, %v3566
      %v3568 = vpop.f32.mrb[0].mxu0
      %3569 = vmatprep.mubr.bf16.mxu0 0
      %3570 = vmatmul.mubr.bf16.gmra.mrb[0].mxu0 %v3202
      %v3571 = vpop.f32.mrb[0].mxu0
      %v3572 = vadd.f32 %v3372, %v3571
      %v3573 = vpop.f32.mrb[0].mxu0
      %v3574 = vpop.f32.mrb[0].mxu0
      %v3575 = vadd.f32 %v3375, %v3574
      %v3576 = vpop.f32.mrb[0].mxu0
      %3577 = vmatprep.mubr.bf16.mxu0 0
      %3578 = vmatmul.mubr.bf16.gmra.mrb[0].mxu0 %v3205
      %v3579 = vpop.f32.mrb[0].mxu0
      %v3580 = vadd.f32 %v3380, %v3579
      %v3581 = vpop.f32.mrb[0].mxu0
      %v3582 = vpop.f32.mrb[0].mxu0
      %v3583 = vadd.f32 %v3383, %v3582
      %v3584 = vpop.f32.mrb[0].mxu0
      %3585 = vmatprep.mubr.bf16.mxu0 0
      %3586 = vmatmul.mubr.bf16.gmra.mrb[0].mxu0 %v3208
      %v3587 = vpop.f32.mrb[0].mxu0
      %v3588 = vadd.f32 %v3388, %v3587
      %v3589 = vpop.f32.mrb[0].mxu0
      %v3590 = vpop.f32.mrb[0].mxu0
      %v3591 = vadd.f32 %v3391, %v3590
      %v3592 = vpop.f32.mrb[0].mxu0
      %3593 = vmatprep.mubr.bf16.mxu0 0
      %3594 = vmatmul.mubr.bf16.gmra.mrb[0].mxu0 %v3211
      %v3595 = vpop.f32.mrb[0].mxu0
      %v3596 = vadd.f32 %v3396, %v3595
      %v3597 = vpop.f32.mrb[0].mxu0
      %v3598 = vpop.f32.mrb[0].mxu0
      %v3599 = vadd.f32 %v3399, %v3598
      %v3600 = vpop.f32.mrb[0].mxu0
      %3601 = vmatprep.mubr.bf16.mxu0 0
      %3602 = vmatmul.mubr.bf16.gmra.mrb[0].mxu0 %v3214
      %v3603 = vpop.f32.mrb[0].mxu0
      %v3604 = vadd.f32 %v3404, %v3603
      %v3605 = vpop.f32.mrb[0].mxu0
      %v3606 = vpop.f32.mrb[0].mxu0
      %v3607 = vadd.f32 %v3407, %v3606
      %v3608 = vpop.f32.mrb[0].mxu0
      %3609 = vmatprep.mubr.bf16.mxu0 0
      %3610 = vmatmul.mubr.bf16.gmra.mrb[0].mxu0 %v3217
      %v3611 = vpop.f32.mrb[0].mxu0
      %v3612 = vadd.f32 %v3412, %v3611
      %v3613 = vpop.f32.mrb[0].mxu0
      %v3614 = vpop.f32.mrb[0].mxu0
      %v3615 = vadd.f32 %v3415, %v3614
      %v3616 = vpop.f32.mrb[0].mxu0
      %3617 = vmatprep.mubr.bf16.mxu0 0
      %3618 = vmatmul.mubr.bf16.gmra.mrb[0].mxu0 %v3220
      %v3619 = vpop.f32.mrb[0].mxu0
      %v3620 = vadd.f32 %v3420, %v3619
      %v3621 = vpop.f32.mrb[0].mxu0
      %v3622 = vpop.f32.mrb[0].mxu0
      %v3623 = vpop.f32.mrb[0].mxu0
      %3624 = vdwg.mxu0
      %v3625 = vld [vmem:[%s5] sm:$0xff]
      %v3626 = vld [vmem:[%s5 + $0x8] sm:$0xff]
      %v3627 = vld [vmem:[%s5 + $0x10] sm:$0xff]
      %v3628 = vld [vmem:[%s5 + $0x18] sm:$0xff]
      %v3629 = vld [vmem:[%s5 + $0x20] sm:$0xff]
      %v3630 = vld [vmem:[%s5 + $0x28] sm:$0xff]
      %v3631 = vld [vmem:[%s5 + $0x30] sm:$0xff]
      %v3632 = vld [vmem:[%s5 + $0x38] sm:$0xff]
      %v3633 = vld [vmem:[%s5 + $0x40] sm:$0xff]
      %v3634 = vld [vmem:[%s5 + $0x48] sm:$0xff]
      %v3635 = vld [vmem:[%s5 + $0x50] sm:$0xff]
      %v3636 = vld [vmem:[%s5 + $0x58] sm:$0xff]
      %v3637 = vld [vmem:[%s5 + $0x60] sm:$0xff]
      %v3638 = vld [vmem:[%s5 + $0x68] sm:$0xff]
      %v3639 = vld [vmem:[%s5 + $0x70] sm:$0xff]
      %v3640 = vld [vmem:[%s5 + $0x78] sm:$0xff]
      %v3641 = vld [vmem:[%s5 + $0x80] sm:$0xff]
      %v3642 = vld [vmem:[%s5 + $0x88] sm:$0xff]
      %v3643 = vld [vmem:[%s5 + $0x90] sm:$0xff]
      %v3644 = vld [vmem:[%s5 + $0x98] sm:$0xff]
      %v3645 = vld [vmem:[%s5 + $0xa0] sm:$0xff]
      %v3646 = vld [vmem:[%s5 + $0xa8] sm:$0xff]
      %v3647 = vld [vmem:[%s5 + $0xb0] sm:$0xff]
      %v3648 = vld [vmem:[%s5 + $0xb8] sm:$0xff]
      %v3649 = vld [vmem:[%s5 + $0xc0] sm:$0xff]
      %v3650 = vld [vmem:[%s5 + $0xc8] sm:$0xff]
      %v3651 = vld [vmem:[%s5 + $0xd0] sm:$0xff]
      %v3652 = vld [vmem:[%s5 + $0xd8] sm:$0xff]
      %v3653 = vld [vmem:[%s5 + $0xe0] sm:$0xff]
      %v3654 = vld [vmem:[%s5 + $0xe8] sm:$0xff]
      %v3655 = vld [vmem:[%s5 + $0xf0] sm:$0xff]
      %v3656 = vld [vmem:[%s5 + $0xf8] sm:$0xff]
      %v3657 = vld [vmem:[%s5 + $0x100] sm:$0xff]
      %v3658 = vld [vmem:[%s5 + $0x108] sm:$0xff]
      %v3659 = vld [vmem:[%s5 + $0x110] sm:$0xff]
      %v3660 = vld [vmem:[%s5 + $0x118] sm:$0xff]
      %v3661 = vld [vmem:[%s5 + $0x120] sm:$0xff]
      %v3662 = vld [vmem:[%s5 + $0x128] sm:$0xff]
      %v3663 = vld [vmem:[%s5 + $0x130] sm:$0xff]
      %v3664 = vld [vmem:[%s5 + $0x138] sm:$0xff]
      %v3665 = vld [vmem:[%s5 + $0x140] sm:$0xf]
      %v3666 = vmul.f32 %v3625, %v702
      %v3667 = vmul.f32 %v3626, %v703
      %v3668 = vmul.f32 %v3627, %v704
      %v3669 = vmul.f32 %v3628, %v705
      %v3670 = vmul.f32 %v3629, %v706
      %v3671 = vmul.f32 %v3630, %v707
      %v3672 = vmul.f32 %v3631, %v708
      %v3673 = vmul.f32 %v3632, %v709
      %v3674 = vmul.f32 %v3633, %v710
      %v3675 = vmul.f32 %v3634, %v711
      %v3676 = vmul.f32 %v3635, %v712
      %v3677 = vmul.f32 %v3636, %v713
      %v3678 = vmul.f32 %v3637, %v714
      %v3679 = vmul.f32 %v3638, %v715
      %v3680 = vmul.f32 %v3639, %v716
      %v3681 = vmul.f32 %v3640, %v717
      %v3682 = vmul.f32 %v3641, %v718
      %v3683 = vmul.f32 %v3642, %v719
      %v3684 = vmul.f32 %v3643, %v720
      %v3685 = vmul.f32 %v3644, %v721
      %v3686 = vmul.f32 %v3645, %v722
      %v3687 = vmul.f32 %v3646, %v723
      %v3688 = vmul.f32 %v3647, %v724
      %v3689 = vmul.f32 %v3648, %v725
      %v3690 = vmul.f32 %v3649, %v726
      %v3691 = vmul.f32 %v3650, %v727
      %v3692 = vmul.f32 %v3651, %v728
      %v3693 = vmul.f32 %v3652, %v729
      %v3694 = vmul.f32 %v3653, %v730
      %v3695 = vmul.f32 %v3654, %v731
      %v3696 = vmul.f32 %v3655, %v732
      %v3697 = vmul.f32 %v3656, %v733
      %v3698 = vmul.f32 %v3657, %v734
      %v3699 = vmul.f32 %v3658, %v735
      %v3700 = vmul.f32 %v3659, %v736
      %v3701 = vmul.f32 %v3660, %v737
      %v3702 = vmul.f32 %v3661, %v738
      %v3703 = vmul.f32 %v3662, %v739
      %v3704 = vmul.f32 %v3663, %v740
      %v3705 = vmul.f32 %v3664, %v741
      %v3706 = vmul.f32 %v3665, %v742
      %v3707 = vadd.f32 %v3460, %v3666
      %v3708 = vadd.f32 %v3463, %v3667
      %v3709 = vadd.f32 %v3468, %v3668
      %v3710 = vadd.f32 %v3471, %v3669
      %v3711 = vadd.f32 %v3476, %v3670
      %v3712 = vadd.f32 %v3479, %v3671
      %v3713 = vadd.f32 %v3484, %v3672
      %v3714 = vadd.f32 %v3487, %v3673
      %v3715 = vadd.f32 %v3492, %v3674
      %v3716 = vadd.f32 %v3495, %v3675
      %v3717 = vadd.f32 %v3500, %v3676
      %v3718 = vadd.f32 %v3503, %v3677
      %v3719 = vadd.f32 %v3508, %v3678
      %v3720 = vadd.f32 %v3511, %v3679
      %v3721 = vadd.f32 %v3516, %v3680
      %v3722 = vadd.f32 %v3519, %v3681
      %v3723 = vadd.f32 %v3524, %v3682
      %v3724 = vadd.f32 %v3527, %v3683
      %v3725 = vadd.f32 %v3532, %v3684
      %v3726 = vadd.f32 %v3535, %v3685
      %v3727 = vadd.f32 %v3540, %v3686
      %v3728 = vadd.f32 %v3543, %v3687
      %v3729 = vadd.f32 %v3548, %v3688
      %v3730 = vadd.f32 %v3551, %v3689
      %v3731 = vadd.f32 %v3556, %v3690
      %v3732 = vadd.f32 %v3559, %v3691
      %v3733 = vadd.f32 %v3564, %v3692
      %v3734 = vadd.f32 %v3567, %v3693
      %v3735 = vadd.f32 %v3572, %v3694
      %v3736 = vadd.f32 %v3575, %v3695
      %v3737 = vadd.f32 %v3580, %v3696
      %v3738 = vadd.f32 %v3583, %v3697
      %v3739 = vadd.f32 %v3588, %v3698
      %v3740 = vadd.f32 %v3591, %v3699
      %v3741 = vadd.f32 %v3596, %v3700
      %v3742 = vadd.f32 %v3599, %v3701
      %v3743 = vadd.f32 %v3604, %v3702
      %v3744 = vadd.f32 %v3607, %v3703
      %v3745 = vadd.f32 %v3612, %v3704
      %v3746 = vadd.f32 %v3615, %v3705
      %v3747 = vadd.f32 %v3620, %v3706
      %v3748 = vxor.u32 %v3707, 2147483648
      %v3749 = vxor.u32 %v3708, 2147483648
      %v3750 = vxor.u32 %v3709, 2147483648
      %v3751 = vxor.u32 %v3710, 2147483648
      %v3752 = vxor.u32 %v3711, 2147483648
      %v3753 = vxor.u32 %v3712, 2147483648
      %v3754 = vxor.u32 %v3713, 2147483648
      %v3755 = vxor.u32 %v3714, 2147483648
      %v3756 = vxor.u32 %v3715, 2147483648
      %v3757 = vxor.u32 %v3716, 2147483648
      %v3758 = vxor.u32 %v3717, 2147483648
      %v3759 = vxor.u32 %v3718, 2147483648
      %v3760 = vxor.u32 %v3719, 2147483648
      %v3761 = vxor.u32 %v3720, 2147483648
      %v3762 = vxor.u32 %v3721, 2147483648
      %v3763 = vxor.u32 %v3722, 2147483648
      %v3764 = vxor.u32 %v3723, 2147483648
      %v3765 = vxor.u32 %v3724, 2147483648
      %v3766 = vxor.u32 %v3725, 2147483648
      %v3767 = vxor.u32 %v3726, 2147483648
      %v3768 = vxor.u32 %v3727, 2147483648
      %v3769 = vxor.u32 %v3728, 2147483648
      %v3770 = vxor.u32 %v3729, 2147483648
      %v3771 = vxor.u32 %v3730, 2147483648
      %v3772 = vxor.u32 %v3731, 2147483648
      %v3773 = vxor.u32 %v3732, 2147483648
      %v3774 = vxor.u32 %v3733, 2147483648
      %v3775 = vxor.u32 %v3734, 2147483648
      %v3776 = vxor.u32 %v3735, 2147483648
      %v3777 = vxor.u32 %v3736, 2147483648
      %v3778 = vxor.u32 %v3737, 2147483648
      %v3779 = vxor.u32 %v3738, 2147483648
      %v3780 = vxor.u32 %v3739, 2147483648
      %v3781 = vxor.u32 %v3740, 2147483648
      %v3782 = vxor.u32 %v3741, 2147483648
      %v3783 = vxor.u32 %v3742, 2147483648
      %v3784 = vxor.u32 %v3743, 2147483648
      %v3785 = vxor.u32 %v3744, 2147483648
      %v3786 = vxor.u32 %v3745, 2147483648
      %v3787 = vxor.u32 %v3746, 2147483648
      %v3788 = vxor.u32 %v3747, 2147483648
      %v3789 = vmul.f32 %v3748, 1.442695
      %v3790 = vpow.pop %v3789
      %v3791 = vmul.f32 %v3749, 1.442695
      %v3792 = vpow.pop %v3791
      %v3793 = vmul.f32 %v3750, 1.442695
      %v3794 = vpow.pop %v3793
      %v3795 = vmul.f32 %v3751, 1.442695
      %v3796 = vpow.pop %v3795
      %v3797 = vmul.f32 %v3752, 1.442695
      %v3798 = vpow.pop %v3797
      %v3799 = vmul.f32 %v3753, 1.442695
      %v3800 = vpow.pop %v3799
      %v3801 = vmul.f32 %v3754, 1.442695
      %v3802 = vpow.pop %v3801
      %v3803 = vmul.f32 %v3755, 1.442695
      %v3804 = vpow.pop %v3803
      %v3805 = vmul.f32 %v3756, 1.442695
      %v3806 = vpow.pop %v3805
      %v3807 = vmul.f32 %v3757, 1.442695
      %v3808 = vpow.pop %v3807
      %v3809 = vmul.f32 %v3758, 1.442695
      %v3810 = vpow.pop %v3809
      %v3811 = vmul.f32 %v3759, 1.442695
      %v3812 = vpow.pop %v3811
      %v3813 = vmul.f32 %v3760, 1.442695
      %v3814 = vpow.pop %v3813
      %v3815 = vmul.f32 %v3761, 1.442695
      %v3816 = vpow.pop %v3815
      %v3817 = vmul.f32 %v3762, 1.442695
      %v3818 = vpow.pop %v3817
      %v3819 = vmul.f32 %v3763, 1.442695
      %v3820 = vpow.pop %v3819
      %v3821 = vmul.f32 %v3764, 1.442695
      %v3822 = vpow.pop %v3821
      %v3823 = vmul.f32 %v3765, 1.442695
      %v3824 = vpow.pop %v3823
      %v3825 = vmul.f32 %v3766, 1.442695
      %v3826 = vpow.pop %v3825
      %v3827 = vmul.f32 %v3767, 1.442695
      %v3828 = vpow.pop %v3827
      %v3829 = vmul.f32 %v3768, 1.442695
      %v3830 = vpow.pop %v3829
      %v3831 = vmul.f32 %v3769, 1.442695
      %v3832 = vpow.pop %v3831
      %v3833 = vmul.f32 %v3770, 1.442695
      %v3834 = vpow.pop %v3833
      %v3835 = vmul.f32 %v3771, 1.442695
      %v3836 = vpow.pop %v3835
      %v3837 = vmul.f32 %v3772, 1.442695
      %v3838 = vpow.pop %v3837
      %v3839 = vmul.f32 %v3773, 1.442695
      %v3840 = vpow.pop %v3839
      %v3841 = vmul.f32 %v3774, 1.442695
      %v3842 = vpow.pop %v3841
      %v3843 = vmul.f32 %v3775, 1.442695
      %v3844 = vpow.pop %v3843
      %v3845 = vmul.f32 %v3776, 1.442695
      %v3846 = vpow.pop %v3845
      %v3847 = vmul.f32 %v3777, 1.442695
      %v3848 = vpow.pop %v3847
      %v3849 = vmul.f32 %v3778, 1.442695
      %v3850 = vpow.pop %v3849
      %v3851 = vmul.f32 %v3779, 1.442695
      %v3852 = vpow.pop %v3851
      %v3853 = vmul.f32 %v3780, 1.442695
      %v3854 = vpow.pop %v3853
      %v3855 = vmul.f32 %v3781, 1.442695
      %v3856 = vpow.pop %v3855
      %v3857 = vmul.f32 %v3782, 1.442695
      %v3858 = vpow.pop %v3857
      %v3859 = vmul.f32 %v3783, 1.442695
      %v3860 = vpow.pop %v3859
      %v3861 = vmul.f32 %v3784, 1.442695
      %v3862 = vpow.pop %v3861
      %v3863 = vmul.f32 %v3785, 1.442695
      %v3864 = vpow.pop %v3863
      %v3865 = vmul.f32 %v3786, 1.442695
      %v3866 = vpow.pop %v3865
      %v3867 = vmul.f32 %v3787, 1.442695
      %v3868 = vpow.pop %v3867
      %v3869 = vmul.f32 %v3788, 1.442695
      %v3870 = vpow.pop %v3869
      %v3871 = vadd.f32 %v3790, 1.0
      %v3872 = vadd.f32 %v3792, 1.0
      %v3873 = vadd.f32 %v3794, 1.0
      %v3874 = vadd.f32 %v3796, 1.0
      %v3875 = vadd.f32 %v3798, 1.0
      %v3876 = vadd.f32 %v3800, 1.0
      %v3877 = vadd.f32 %v3802, 1.0
      %v3878 = vadd.f32 %v3804, 1.0
      %v3879 = vadd.f32 %v3806, 1.0
      %v3880 = vadd.f32 %v3808, 1.0
      %v3881 = vadd.f32 %v3810, 1.0
      %v3882 = vadd.f32 %v3812, 1.0
      %v3883 = vadd.f32 %v3814, 1.0
      %v3884 = vadd.f32 %v3816, 1.0
      %v3885 = vadd.f32 %v3818, 1.0
      %v3886 = vadd.f32 %v3820, 1.0
      %v3887 = vadd.f32 %v3822, 1.0
      %v3888 = vadd.f32 %v3824, 1.0
      %v3889 = vadd.f32 %v3826, 1.0
      %v3890 = vadd.f32 %v3828, 1.0
      %v3891 = vadd.f32 %v3830, 1.0
      %v3892 = vadd.f32 %v3832, 1.0
      %v3893 = vadd.f32 %v3834, 1.0
      %v3894 = vadd.f32 %v3836, 1.0
      %v3895 = vadd.f32 %v3838, 1.0
      %v3896 = vadd.f32 %v3840, 1.0
      %v3897 = vadd.f32 %v3842, 1.0
      %v3898 = vadd.f32 %v3844, 1.0
      %v3899 = vadd.f32 %v3846, 1.0
      %v3900 = vadd.f32 %v3848, 1.0
      %v3901 = vadd.f32 %v3850, 1.0
      %v3902 = vadd.f32 %v3852, 1.0
      %v3903 = vadd.f32 %v3854, 1.0
      %v3904 = vadd.f32 %v3856, 1.0
      %v3905 = vadd.f32 %v3858, 1.0
      %v3906 = vadd.f32 %v3860, 1.0
      %v3907 = vadd.f32 %v3862, 1.0
      %v3908 = vadd.f32 %v3864, 1.0
      %v3909 = vadd.f32 %v3866, 1.0
      %v3910 = vadd.f32 %v3868, 1.0
      %v3911 = vadd.f32 %v3870, 1.0
      %v3912 = vrcp.pop %v3871
      %v3913 = vmul.f32 1.0, %v3912
      %v3914 = vrcp.pop %v3872
      %v3915 = vmul.f32 1.0, %v3914
      %v3916 = vrcp.pop %v3873
      %v3917 = vmul.f32 1.0, %v3916
      %v3918 = vrcp.pop %v3874
      %v3919 = vmul.f32 1.0, %v3918
      %v3920 = vrcp.pop %v3875
      %v3921 = vmul.f32 1.0, %v3920
      %v3922 = vrcp.pop %v3876
      %v3923 = vmul.f32 1.0, %v3922
      %v3924 = vrcp.pop %v3877
      %v3925 = vmul.f32 1.0, %v3924
      %v3926 = vrcp.pop %v3878
      %v3927 = vmul.f32 1.0, %v3926
      %v3928 = vrcp.pop %v3879
      %v3929 = vmul.f32 1.0, %v3928
      %v3930 = vrcp.pop %v3880
      %v3931 = vmul.f32 1.0, %v3930
      %v3932 = vrcp.pop %v3881
      %v3933 = vmul.f32 1.0, %v3932
      %v3934 = vrcp.pop %v3882
      %v3935 = vmul.f32 1.0, %v3934
      %v3936 = vrcp.pop %v3883
      %v3937 = vmul.f32 1.0, %v3936
      %v3938 = vrcp.pop %v3884
      %v3939 = vmul.f32 1.0, %v3938
      %v3940 = vrcp.pop %v3885
      %v3941 = vmul.f32 1.0, %v3940
      %v3942 = vrcp.pop %v3886
      %v3943 = vmul.f32 1.0, %v3942
      %v3944 = vrcp.pop %v3887
      %v3945 = vmul.f32 1.0, %v3944
      %v3946 = vrcp.pop %v3888
      %v3947 = vmul.f32 1.0, %v3946
      %v3948 = vrcp.pop %v3889
      %v3949 = vmul.f32 1.0, %v3948
      %v3950 = vrcp.pop %v3890
      %v3951 = vmul.f32 1.0, %v3950
      %v3952 = vrcp.pop %v3891
      %v3953 = vmul.f32 1.0, %v3952
      %v3954 = vrcp.pop %v3892
      %v3955 = vmul.f32 1.0, %v3954
      %v3956 = vrcp.pop %v3893
      %v3957 = vmul.f32 1.0, %v3956
      %v3958 = vrcp.pop %v3894
      %v3959 = vmul.f32 1.0, %v3958
      %v3960 = vrcp.pop %v3895
      %v3961 = vmul.f32 1.0, %v3960
      %v3962 = vrcp.pop %v3896
      %v3963 = vmul.f32 1.0, %v3962
      %v3964 = vrcp.pop %v3897
      %v3965 = vmul.f32 1.0, %v3964
      %v3966 = vrcp.pop %v3898
      %v3967 = vmul.f32 1.0, %v3966
      %v3968 = vrcp.pop %v3899
      %v3969 = vmul.f32 1.0, %v3968
      %v3970 = vrcp.pop %v3900
      %v3971 = vmul.f32 1.0, %v3970
      %v3972 = vrcp.pop %v3901
      %v3973 = vmul.f32 1.0, %v3972
      %v3974 = vrcp.pop %v3902
      %v3975 = vmul.f32 1.0, %v3974
      %v3976 = vrcp.pop %v3903
      %v3977 = vmul.f32 1.0, %v3976
      %v3978 = vrcp.pop %v3904
      %v3979 = vmul.f32 1.0, %v3978
      %v3980 = vrcp.pop %v3905
      %v3981 = vmul.f32 1.0, %v3980
      %v3982 = vrcp.pop %v3906
      %v3983 = vmul.f32 1.0, %v3982
      %v3984 = vrcp.pop %v3907
      %v3985 = vmul.f32 1.0, %v3984
      %v3986 = vrcp.pop %v3908
      %v3987 = vmul.f32 1.0, %v3986
      %v3988 = vrcp.pop %v3909
      %v3989 = vmul.f32 1.0, %v3988
      %v3990 = vrcp.pop %v3910
      %v3991 = vmul.f32 1.0, %v3990
      %v3992 = vrcp.pop %v3911
      %v3993 = vmul.f32 1.0, %v3992
      %v3994 = vld [vmem:[%s6] sm:$0xff]
      %v3995 = vld [vmem:[%s6 + $0x8] sm:$0xff]
      %v3996 = vld [vmem:[%s6 + $0x10] sm:$0xff]
      %v3997 = vld [vmem:[%s6 + $0x18] sm:$0xff]
      %v3998 = vld [vmem:[%s6 + $0x20] sm:$0xff]
      %v3999 = vld [vmem:[%s6 + $0x28] sm:$0xff]
      %v4000 = vld [vmem:[%s6 + $0x30] sm:$0xff]
      %v4001 = vld [vmem:[%s6 + $0x38] sm:$0xff]
      %v4002 = vld [vmem:[%s6 + $0x40] sm:$0xff]
      %v4003 = vld [vmem:[%s6 + $0x48] sm:$0xff]
      %v4004 = vld [vmem:[%s6 + $0x50] sm:$0xff]
      %v4005 = vld [vmem:[%s6 + $0x58] sm:$0xff]
      %v4006 = vld [vmem:[%s6 + $0x60] sm:$0xff]
      %v4007 = vld [vmem:[%s6 + $0x68] sm:$0xff]
      %v4008 = vld [vmem:[%s6 + $0x70] sm:$0xff]
      %v4009 = vld [vmem:[%s6 + $0x78] sm:$0xff]
      %v4010 = vld [vmem:[%s6 + $0x80] sm:$0xff]
      %v4011 = vld [vmem:[%s6 + $0x88] sm:$0xff]
      %v4012 = vld [vmem:[%s6 + $0x90] sm:$0xff]
      %v4013 = vld [vmem:[%s6 + $0x98] sm:$0xff]
      %v4014 = vld [vmem:[%s6 + $0xa0] sm:$0xff]
      %v4015 = vld [vmem:[%s6 + $0xa8] sm:$0xff]
      %v4016 = vld [vmem:[%s6 + $0xb0] sm:$0xff]
      %v4017 = vld [vmem:[%s6 + $0xb8] sm:$0xff]
      %v4018 = vld [vmem:[%s6 + $0xc0] sm:$0xff]
      %v4019 = vld [vmem:[%s6 + $0xc8] sm:$0xff]
      %v4020 = vld [vmem:[%s6 + $0xd0] sm:$0xff]
      %v4021 = vld [vmem:[%s6 + $0xd8] sm:$0xff]
      %v4022 = vld [vmem:[%s6 + $0xe0] sm:$0xff]
      %v4023 = vld [vmem:[%s6 + $0xe8] sm:$0xff]
      %v4024 = vld [vmem:[%s6 + $0xf0] sm:$0xff]
      %v4025 = vld [vmem:[%s6 + $0xf8] sm:$0xff]
      %v4026 = vld [vmem:[%s6 + $0x100] sm:$0xff]
      %v4027 = vld [vmem:[%s6 + $0x108] sm:$0xff]
      %v4028 = vld [vmem:[%s6 + $0x110] sm:$0xff]
      %v4029 = vld [vmem:[%s6 + $0x118] sm:$0xff]
      %v4030 = vld [vmem:[%s6 + $0x120] sm:$0xff]
      %v4031 = vld [vmem:[%s6 + $0x128] sm:$0xff]
      %v4032 = vld [vmem:[%s6 + $0x130] sm:$0xff]
      %v4033 = vld [vmem:[%s6 + $0x138] sm:$0xff]
      %v4034 = vld [vmem:[%s6 + $0x140] sm:$0xf]
      %v4035 = vmul.f32 %v3994, %v702
      %v4036 = vmul.f32 %v3995, %v703
      %v4037 = vmul.f32 %v3996, %v704
      %v4038 = vmul.f32 %v3997, %v705
      %v4039 = vmul.f32 %v3998, %v706
      %v4040 = vmul.f32 %v3999, %v707
      %v4041 = vmul.f32 %v4000, %v708
      %v4042 = vmul.f32 %v4001, %v709
      %v4043 = vmul.f32 %v4002, %v710
      %v4044 = vmul.f32 %v4003, %v711
      %v4045 = vmul.f32 %v4004, %v712
      %v4046 = vmul.f32 %v4005, %v713
      %v4047 = vmul.f32 %v4006, %v714
      %v4048 = vmul.f32 %v4007, %v715
      %v4049 = vmul.f32 %v4008, %v716
      %v4050 = vmul.f32 %v4009, %v717
      %v4051 = vmul.f32 %v4010, %v718
      %v4052 = vmul.f32 %v4011, %v719
      %v4053 = vmul.f32 %v4012, %v720
      %v4054 = vmul.f32 %v4013, %v721
      %v4055 = vmul.f32 %v4014, %v722
      %v4056 = vmul.f32 %v4015, %v723
      %v4057 = vmul.f32 %v4016, %v724
      %v4058 = vmul.f32 %v4017, %v725
      %v4059 = vmul.f32 %v4018, %v726
      %v4060 = vmul.f32 %v4019, %v727
      %v4061 = vmul.f32 %v4020, %v728
      %v4062 = vmul.f32 %v4021, %v729
      %v4063 = vmul.f32 %v4022, %v730
      %v4064 = vmul.f32 %v4023, %v731
      %v4065 = vmul.f32 %v4024, %v732
      %v4066 = vmul.f32 %v4025, %v733
      %v4067 = vmul.f32 %v4026, %v734
      %v4068 = vmul.f32 %v4027, %v735
      %v4069 = vmul.f32 %v4028, %v736
      %v4070 = vmul.f32 %v4029, %v737
      %v4071 = vmul.f32 %v4030, %v738
      %v4072 = vmul.f32 %v4031, %v739
      %v4073 = vmul.f32 %v4032, %v740
      %v4074 = vmul.f32 %v4033, %v741
      %v4075 = vmul.f32 %v4034, %v742
      %4117 = vrot.lane.b32.xlu0 %v4035, 32
      %v4118 = vpop.permute.xlu0 %4117
      %4119 = vrot.lane.b32.xlu0 %v4036, 32
      %v4120 = vpop.permute.xlu0 %4119
      %4121 = vrot.lane.b32.xlu0 %v4037, 32
      %v4122 = vpop.permute.xlu0 %4121
      %4123 = vrot.lane.b32.xlu0 %v4038, 32
      %v4124 = vpop.permute.xlu0 %4123
      %4125 = vrot.lane.b32.xlu0 %v4039, 32
      %v4126 = vpop.permute.xlu0 %4125
      %4127 = vrot.lane.b32.xlu0 %v4040, 32
      %v4128 = vpop.permute.xlu0 %4127
      %4129 = vrot.lane.b32.xlu0 %v4041, 32
      %v4130 = vpop.permute.xlu0 %4129
      %4131 = vrot.lane.b32.xlu0 %v4042, 32
      %v4132 = vpop.permute.xlu0 %4131
      %4133 = vrot.lane.b32.xlu0 %v4043, 32
      %v4134 = vpop.permute.xlu0 %4133
      %4135 = vrot.lane.b32.xlu0 %v4044, 32
      %v4136 = vpop.permute.xlu0 %4135
      %4137 = vrot.lane.b32.xlu0 %v4045, 32
      %v4138 = vpop.permute.xlu0 %4137
      %4139 = vrot.lane.b32.xlu0 %v4046, 32
      %v4140 = vpop.permute.xlu0 %4139
      %4141 = vrot.lane.b32.xlu0 %v4047, 32
      %v4142 = vpop.permute.xlu0 %4141
      %4143 = vrot.lane.b32.xlu0 %v4048, 32
      %v4144 = vpop.permute.xlu0 %4143
      %4145 = vrot.lane.b32.xlu0 %v4049, 32
      %v4146 = vpop.permute.xlu0 %4145
      %4147 = vrot.lane.b32.xlu0 %v4050, 32
      %v4148 = vpop.permute.xlu0 %4147
      %4149 = vrot.lane.b32.xlu0 %v4051, 32
      %v4150 = vpop.permute.xlu0 %4149
      %4151 = vrot.lane.b32.xlu0 %v4052, 32
      %v4152 = vpop.permute.xlu0 %4151
      %4153 = vrot.lane.b32.xlu0 %v4053, 32
      %v4154 = vpop.permute.xlu0 %4153
      %4155 = vrot.lane.b32.xlu0 %v4054, 32
      %v4156 = vpop.permute.xlu0 %4155
      %4157 = vrot.lane.b32.xlu0 %v4055, 32
      %v4158 = vpop.permute.xlu0 %4157
      %4159 = vrot.lane.b32.xlu0 %v4056, 32
      %v4160 = vpop.permute.xlu0 %4159
      %4161 = vrot.lane.b32.xlu0 %v4057, 32
      %v4162 = vpop.permute.xlu0 %4161
      %4163 = vrot.lane.b32.xlu0 %v4058, 32
      %v4164 = vpop.permute.xlu0 %4163
      %4165 = vrot.lane.b32.xlu0 %v4059, 32
      %v4166 = vpop.permute.xlu0 %4165
      %4167 = vrot.lane.b32.xlu0 %v4060, 32
      %v4168 = vpop.permute.xlu0 %4167
      %4169 = vrot.lane.b32.xlu0 %v4061, 32
      %v4170 = vpop.permute.xlu0 %4169
      %4171 = vrot.lane.b32.xlu0 %v4062, 32
      %v4172 = vpop.permute.xlu0 %4171
      %4173 = vrot.lane.b32.xlu0 %v4063, 32
      %v4174 = vpop.permute.xlu0 %4173
      %4175 = vrot.lane.b32.xlu0 %v4064, 32
      %v4176 = vpop.permute.xlu0 %4175
      %4177 = vrot.lane.b32.xlu0 %v4065, 32
      %v4178 = vpop.permute.xlu0 %4177
      %4179 = vrot.lane.b32.xlu0 %v4066, 32
      %v4180 = vpop.permute.xlu0 %4179
      %4181 = vrot.lane.b32.xlu0 %v4067, 32
      %v4182 = vpop.permute.xlu0 %4181
      %4183 = vrot.lane.b32.xlu0 %v4068, 32
      %v4184 = vpop.permute.xlu0 %4183
      %4185 = vrot.lane.b32.xlu0 %v4069, 32
      %v4186 = vpop.permute.xlu0 %4185
      %4187 = vrot.lane.b32.xlu0 %v4070, 32
      %v4188 = vpop.permute.xlu0 %4187
      %4189 = vrot.lane.b32.xlu0 %v4071, 32
      %v4190 = vpop.permute.xlu0 %4189
      %4191 = vrot.lane.b32.xlu0 %v4072, 32
      %v4192 = vpop.permute.xlu0 %4191
      %4193 = vrot.lane.b32.xlu0 %v4073, 32
      %v4194 = vpop.permute.xlu0 %4193
      %4195 = vrot.lane.b32.xlu0 %v4074, 32
      %v4196 = vpop.permute.xlu0 %4195
      %4197 = vrot.lane.b32.xlu0 %v4075, 32
      %v4198 = vpop.permute.xlu0 %4197
      %v4240 = vadd.f32 %v3460, %v4118
      %v4241 = vadd.f32 %v3463, %v4120
      %v4242 = vadd.f32 %v3468, %v4122
      %v4243 = vadd.f32 %v3471, %v4124
      %v4244 = vadd.f32 %v3476, %v4126
      %v4245 = vadd.f32 %v3479, %v4128
      %v4246 = vadd.f32 %v3484, %v4130
      %v4247 = vadd.f32 %v3487, %v4132
      %v4248 = vadd.f32 %v3492, %v4134
      %v4249 = vadd.f32 %v3495, %v4136
      %v4250 = vadd.f32 %v3500, %v4138
      %v4251 = vadd.f32 %v3503, %v4140
      %v4252 = vadd.f32 %v3508, %v4142
      %v4253 = vadd.f32 %v3511, %v4144
      %v4254 = vadd.f32 %v3516, %v4146
      %v4255 = vadd.f32 %v3519, %v4148
      %v4256 = vadd.f32 %v3524, %v4150
      %v4257 = vadd.f32 %v3527, %v4152
      %v4258 = vadd.f32 %v3532, %v4154
      %v4259 = vadd.f32 %v3535, %v4156
      %v4260 = vadd.f32 %v3540, %v4158
      %v4261 = vadd.f32 %v3543, %v4160
      %v4262 = vadd.f32 %v3548, %v4162
      %v4263 = vadd.f32 %v3551, %v4164
      %v4264 = vadd.f32 %v3556, %v4166
      %v4265 = vadd.f32 %v3559, %v4168
      %v4266 = vadd.f32 %v3564, %v4170
      %v4267 = vadd.f32 %v3567, %v4172
      %v4268 = vadd.f32 %v3572, %v4174
      %v4269 = vadd.f32 %v3575, %v4176
      %v4270 = vadd.f32 %v3580, %v4178
      %v4271 = vadd.f32 %v3583, %v4180
      %v4272 = vadd.f32 %v3588, %v4182
      %v4273 = vadd.f32 %v3591, %v4184
      %v4274 = vadd.f32 %v3596, %v4186
      %v4275 = vadd.f32 %v3599, %v4188
      %v4276 = vadd.f32 %v3604, %v4190
      %v4277 = vadd.f32 %v3607, %v4192
      %v4278 = vadd.f32 %v3612, %v4194
      %v4279 = vadd.f32 %v3615, %v4196
      %v4280 = vadd.f32 %v3620, %v4198
      %v4281 = vxor.u32 %v4240, 2147483648
      %v4282 = vxor.u32 %v4241, 2147483648
      %v4283 = vxor.u32 %v4242, 2147483648
      %v4284 = vxor.u32 %v4243, 2147483648
      %v4285 = vxor.u32 %v4244, 2147483648
      %v4286 = vxor.u32 %v4245, 2147483648
      %v4287 = vxor.u32 %v4246, 2147483648
      %v4288 = vxor.u32 %v4247, 2147483648
      %v4289 = vxor.u32 %v4248, 2147483648
      %v4290 = vxor.u32 %v4249, 2147483648
      %v4291 = vxor.u32 %v4250, 2147483648
      %v4292 = vxor.u32 %v4251, 2147483648
      %v4293 = vxor.u32 %v4252, 2147483648
      %v4294 = vxor.u32 %v4253, 2147483648
      %v4295 = vxor.u32 %v4254, 2147483648
      %v4296 = vxor.u32 %v4255, 2147483648
      %v4297 = vxor.u32 %v4256, 2147483648
      %v4298 = vxor.u32 %v4257, 2147483648
      %v4299 = vxor.u32 %v4258, 2147483648
      %v4300 = vxor.u32 %v4259, 2147483648
      %v4301 = vxor.u32 %v4260, 2147483648
      %v4302 = vxor.u32 %v4261, 2147483648
      %v4303 = vxor.u32 %v4262, 2147483648
      %v4304 = vxor.u32 %v4263, 2147483648
      %v4305 = vxor.u32 %v4264, 2147483648
      %v4306 = vxor.u32 %v4265, 2147483648
      %v4307 = vxor.u32 %v4266, 2147483648
      %v4308 = vxor.u32 %v4267, 2147483648
      %v4309 = vxor.u32 %v4268, 2147483648
      %v4310 = vxor.u32 %v4269, 2147483648
      %v4311 = vxor.u32 %v4270, 2147483648
      %v4312 = vxor.u32 %v4271, 2147483648
      %v4313 = vxor.u32 %v4272, 2147483648
      %v4314 = vxor.u32 %v4273, 2147483648
      %v4315 = vxor.u32 %v4274, 2147483648
      %v4316 = vxor.u32 %v4275, 2147483648
      %v4317 = vxor.u32 %v4276, 2147483648
      %v4318 = vxor.u32 %v4277, 2147483648
      %v4319 = vxor.u32 %v4278, 2147483648
      %v4320 = vxor.u32 %v4279, 2147483648
      %v4321 = vxor.u32 %v4280, 2147483648
      %v4322 = vmul.f32 %v4281, 1.442695
      %v4323 = vpow.pop %v4322
      %v4324 = vmul.f32 %v4282, 1.442695
      %v4325 = vpow.pop %v4324
      %v4326 = vmul.f32 %v4283, 1.442695
      %v4327 = vpow.pop %v4326
      %v4328 = vmul.f32 %v4284, 1.442695
      %v4329 = vpow.pop %v4328
      %v4330 = vmul.f32 %v4285, 1.442695
      %v4331 = vpow.pop %v4330
      %v4332 = vmul.f32 %v4286, 1.442695
      %v4333 = vpow.pop %v4332
      %v4334 = vmul.f32 %v4287, 1.442695
      %v4335 = vpow.pop %v4334
      %v4336 = vmul.f32 %v4288, 1.442695
      %v4337 = vpow.pop %v4336
      %v4338 = vmul.f32 %v4289, 1.442695
      %v4339 = vpow.pop %v4338
      %v4340 = vmul.f32 %v4290, 1.442695
      %v4341 = vpow.pop %v4340
      %v4342 = vmul.f32 %v4291, 1.442695
      %v4343 = vpow.pop %v4342
      %v4344 = vmul.f32 %v4292, 1.442695
      %v4345 = vpow.pop %v4344
      %v4346 = vmul.f32 %v4293, 1.442695
      %v4347 = vpow.pop %v4346
      %v4348 = vmul.f32 %v4294, 1.442695
      %v4349 = vpow.pop %v4348
      %v4350 = vmul.f32 %v4295, 1.442695
      %v4351 = vpow.pop %v4350
      %v4352 = vmul.f32 %v4296, 1.442695
      %v4353 = vpow.pop %v4352
      %v4354 = vmul.f32 %v4297, 1.442695
      %v4355 = vpow.pop %v4354
      %v4356 = vmul.f32 %v4298, 1.442695
      %v4357 = vpow.pop %v4356
      %v4358 = vmul.f32 %v4299, 1.442695
      %v4359 = vpow.pop %v4358
      %v4360 = vmul.f32 %v4300, 1.442695
      %v4361 = vpow.pop %v4360
      %v4362 = vmul.f32 %v4301, 1.442695
      %v4363 = vpow.pop %v4362
      %v4364 = vmul.f32 %v4302, 1.442695
      %v4365 = vpow.pop %v4364
      %v4366 = vmul.f32 %v4303, 1.442695
      %v4367 = vpow.pop %v4366
      %v4368 = vmul.f32 %v4304, 1.442695
      %v4369 = vpow.pop %v4368
      %v4370 = vmul.f32 %v4305, 1.442695
      %v4371 = vpow.pop %v4370
      %v4372 = vmul.f32 %v4306, 1.442695
      %v4373 = vpow.pop %v4372
      %v4374 = vmul.f32 %v4307, 1.442695
      %v4375 = vpow.pop %v4374
      %v4376 = vmul.f32 %v4308, 1.442695
      %v4377 = vpow.pop %v4376
      %v4378 = vmul.f32 %v4309, 1.442695
      %v4379 = vpow.pop %v4378
      %v4380 = vmul.f32 %v4310, 1.442695
      %v4381 = vpow.pop %v4380
      %v4382 = vmul.f32 %v4311, 1.442695
      %v4383 = vpow.pop %v4382
      %v4384 = vmul.f32 %v4312, 1.442695
      %v4385 = vpow.pop %v4384
      %v4386 = vmul.f32 %v4313, 1.442695
      %v4387 = vpow.pop %v4386
      %v4388 = vmul.f32 %v4314, 1.442695
      %v4389 = vpow.pop %v4388
      %v4390 = vmul.f32 %v4315, 1.442695
      %v4391 = vpow.pop %v4390
      %v4392 = vmul.f32 %v4316, 1.442695
      %v4393 = vpow.pop %v4392
      %v4394 = vmul.f32 %v4317, 1.442695
      %v4395 = vpow.pop %v4394
      %v4396 = vmul.f32 %v4318, 1.442695
      %v4397 = vpow.pop %v4396
      %v4398 = vmul.f32 %v4319, 1.442695
      %v4399 = vpow.pop %v4398
      %v4400 = vmul.f32 %v4320, 1.442695
      %v4401 = vpow.pop %v4400
      %v4402 = vmul.f32 %v4321, 1.442695
      %v4403 = vpow.pop %v4402
      %v4404 = vadd.f32 %v4323, 1.0
      %v4405 = vadd.f32 %v4325, 1.0
      %v4406 = vadd.f32 %v4327, 1.0
      %v4407 = vadd.f32 %v4329, 1.0
      %v4408 = vadd.f32 %v4331, 1.0
      %v4409 = vadd.f32 %v4333, 1.0
      %v4410 = vadd.f32 %v4335, 1.0
      %v4411 = vadd.f32 %v4337, 1.0
      %v4412 = vadd.f32 %v4339, 1.0
      %v4413 = vadd.f32 %v4341, 1.0
      %v4414 = vadd.f32 %v4343, 1.0
      %v4415 = vadd.f32 %v4345, 1.0
      %v4416 = vadd.f32 %v4347, 1.0
      %v4417 = vadd.f32 %v4349, 1.0
      %v4418 = vadd.f32 %v4351, 1.0
      %v4419 = vadd.f32 %v4353, 1.0
      %v4420 = vadd.f32 %v4355, 1.0
      %v4421 = vadd.f32 %v4357, 1.0
      %v4422 = vadd.f32 %v4359, 1.0
      %v4423 = vadd.f32 %v4361, 1.0
      %v4424 = vadd.f32 %v4363, 1.0
      %v4425 = vadd.f32 %v4365, 1.0
      %v4426 = vadd.f32 %v4367, 1.0
      %v4427 = vadd.f32 %v4369, 1.0
      %v4428 = vadd.f32 %v4371, 1.0
      %v4429 = vadd.f32 %v4373, 1.0
      %v4430 = vadd.f32 %v4375, 1.0
      %v4431 = vadd.f32 %v4377, 1.0
      %v4432 = vadd.f32 %v4379, 1.0
      %v4433 = vadd.f32 %v4381, 1.0
      %v4434 = vadd.f32 %v4383, 1.0
      %v4435 = vadd.f32 %v4385, 1.0
      %v4436 = vadd.f32 %v4387, 1.0
      %v4437 = vadd.f32 %v4389, 1.0
      %v4438 = vadd.f32 %v4391, 1.0
      %v4439 = vadd.f32 %v4393, 1.0
      %v4440 = vadd.f32 %v4395, 1.0
      %v4441 = vadd.f32 %v4397, 1.0
      %v4442 = vadd.f32 %v4399, 1.0
      %v4443 = vadd.f32 %v4401, 1.0
      %v4444 = vadd.f32 %v4403, 1.0
      %v4445 = vrcp.pop %v4404
      %v4446 = vmul.f32 1.0, %v4445
      %v4447 = vrcp.pop %v4405
      %v4448 = vmul.f32 1.0, %v4447
      %v4449 = vrcp.pop %v4406
      %v4450 = vmul.f32 1.0, %v4449
      %v4451 = vrcp.pop %v4407
      %v4452 = vmul.f32 1.0, %v4451
      %v4453 = vrcp.pop %v4408
      %v4454 = vmul.f32 1.0, %v4453
      %v4455 = vrcp.pop %v4409
      %v4456 = vmul.f32 1.0, %v4455
      %v4457 = vrcp.pop %v4410
      %v4458 = vmul.f32 1.0, %v4457
      %v4459 = vrcp.pop %v4411
      %v4460 = vmul.f32 1.0, %v4459
      %v4461 = vrcp.pop %v4412
      %v4462 = vmul.f32 1.0, %v4461
      %v4463 = vrcp.pop %v4413
      %v4464 = vmul.f32 1.0, %v4463
      %v4465 = vrcp.pop %v4414
      %v4466 = vmul.f32 1.0, %v4465
      %v4467 = vrcp.pop %v4415
      %v4468 = vmul.f32 1.0, %v4467
      %v4469 = vrcp.pop %v4416
      %v4470 = vmul.f32 1.0, %v4469
      %v4471 = vrcp.pop %v4417
      %v4472 = vmul.f32 1.0, %v4471
      %v4473 = vrcp.pop %v4418
      %v4474 = vmul.f32 1.0, %v4473
      %v4475 = vrcp.pop %v4419
      %v4476 = vmul.f32 1.0, %v4475
      %v4477 = vrcp.pop %v4420
      %v4478 = vmul.f32 1.0, %v4477
      %v4479 = vrcp.pop %v4421
      %v4480 = vmul.f32 1.0, %v4479
      %v4481 = vrcp.pop %v4422
      %v4482 = vmul.f32 1.0, %v4481
      %v4483 = vrcp.pop %v4423
      %v4484 = vmul.f32 1.0, %v4483
      %v4485 = vrcp.pop %v4424
      %v4486 = vmul.f32 1.0, %v4485
      %v4487 = vrcp.pop %v4425
      %v4488 = vmul.f32 1.0, %v4487
      %v4489 = vrcp.pop %v4426
      %v4490 = vmul.f32 1.0, %v4489
      %v4491 = vrcp.pop %v4427
      %v4492 = vmul.f32 1.0, %v4491
      %v4493 = vrcp.pop %v4428
      %v4494 = vmul.f32 1.0, %v4493
      %v4495 = vrcp.pop %v4429
      %v4496 = vmul.f32 1.0, %v4495
      %v4497 = vrcp.pop %v4430
      %v4498 = vmul.f32 1.0, %v4497
      %v4499 = vrcp.pop %v4431
      %v4500 = vmul.f32 1.0, %v4499
      %v4501 = vrcp.pop %v4432
      %v4502 = vmul.f32 1.0, %v4501
      %v4503 = vrcp.pop %v4433
      %v4504 = vmul.f32 1.0, %v4503
      %v4505 = vrcp.pop %v4434
      %v4506 = vmul.f32 1.0, %v4505
      %v4507 = vrcp.pop %v4435
      %v4508 = vmul.f32 1.0, %v4507
      %v4509 = vrcp.pop %v4436
      %v4510 = vmul.f32 1.0, %v4509
      %v4511 = vrcp.pop %v4437
      %v4512 = vmul.f32 1.0, %v4511
      %v4513 = vrcp.pop %v4438
      %v4514 = vmul.f32 1.0, %v4513
      %v4515 = vrcp.pop %v4439
      %v4516 = vmul.f32 1.0, %v4515
      %v4517 = vrcp.pop %v4440
      %v4518 = vmul.f32 1.0, %v4517
      %v4519 = vrcp.pop %v4441
      %v4520 = vmul.f32 1.0, %v4519
      %v4521 = vrcp.pop %v4442
      %v4522 = vmul.f32 1.0, %v4521
      %v4523 = vrcp.pop %v4443
      %v4524 = vmul.f32 1.0, %v4523
      %v4525 = vrcp.pop %v4444
      %v4526 = vmul.f32 1.0, %v4525
      %4568 = vrot.lane.b32.xlu0 %v702, 32
      %v4569 = vpop.permute.xlu0 %4568
      %4570 = vrot.lane.b32.xlu0 %v703, 32
      %v4571 = vpop.permute.xlu0 %4570
      %4572 = vrot.lane.b32.xlu0 %v704, 32
      %v4573 = vpop.permute.xlu0 %4572
      %4574 = vrot.lane.b32.xlu0 %v705, 32
      %v4575 = vpop.permute.xlu0 %4574
      %4576 = vrot.lane.b32.xlu0 %v706, 32
      %v4577 = vpop.permute.xlu0 %4576
      %4578 = vrot.lane.b32.xlu0 %v707, 32
      %v4579 = vpop.permute.xlu0 %4578
      %4580 = vrot.lane.b32.xlu0 %v708, 32
      %v4581 = vpop.permute.xlu0 %4580
      %4582 = vrot.lane.b32.xlu0 %v709, 32
      %v4583 = vpop.permute.xlu0 %4582
      %4584 = vrot.lane.b32.xlu0 %v710, 32
      %v4585 = vpop.permute.xlu0 %4584
      %4586 = vrot.lane.b32.xlu0 %v711, 32
      %v4587 = vpop.permute.xlu0 %4586
      %4588 = vrot.lane.b32.xlu0 %v712, 32
      %v4589 = vpop.permute.xlu0 %4588
      %4590 = vrot.lane.b32.xlu0 %v713, 32
      %v4591 = vpop.permute.xlu0 %4590
      %4592 = vrot.lane.b32.xlu0 %v714, 32
      %v4593 = vpop.permute.xlu0 %4592
      %4594 = vrot.lane.b32.xlu0 %v715, 32
      %v4595 = vpop.permute.xlu0 %4594
      %4596 = vrot.lane.b32.xlu0 %v716, 32
      %v4597 = vpop.permute.xlu0 %4596
      %4598 = vrot.lane.b32.xlu0 %v717, 32
      %v4599 = vpop.permute.xlu0 %4598
      %4600 = vrot.lane.b32.xlu0 %v718, 32
      %v4601 = vpop.permute.xlu0 %4600
      %4602 = vrot.lane.b32.xlu0 %v719, 32
      %v4603 = vpop.permute.xlu0 %4602
      %4604 = vrot.lane.b32.xlu0 %v720, 32
      %v4605 = vpop.permute.xlu0 %4604
      %4606 = vrot.lane.b32.xlu0 %v721, 32
      %v4607 = vpop.permute.xlu0 %4606
      %4608 = vrot.lane.b32.xlu0 %v722, 32
      %v4609 = vpop.permute.xlu0 %4608
      %4610 = vrot.lane.b32.xlu0 %v723, 32
      %v4611 = vpop.permute.xlu0 %4610
      %4612 = vrot.lane.b32.xlu0 %v724, 32
      %v4613 = vpop.permute.xlu0 %4612
      %4614 = vrot.lane.b32.xlu0 %v725, 32
      %v4615 = vpop.permute.xlu0 %4614
      %4616 = vrot.lane.b32.xlu0 %v726, 32
      %v4617 = vpop.permute.xlu0 %4616
      %4618 = vrot.lane.b32.xlu0 %v727, 32
      %v4619 = vpop.permute.xlu0 %4618
      %4620 = vrot.lane.b32.xlu0 %v728, 32
      %v4621 = vpop.permute.xlu0 %4620
      %4622 = vrot.lane.b32.xlu0 %v729, 32
      %v4623 = vpop.permute.xlu0 %4622
      %4624 = vrot.lane.b32.xlu0 %v730, 32
      %v4625 = vpop.permute.xlu0 %4624
      %4626 = vrot.lane.b32.xlu0 %v731, 32
      %v4627 = vpop.permute.xlu0 %4626
      %4628 = vrot.lane.b32.xlu0 %v732, 32
      %v4629 = vpop.permute.xlu0 %4628
      %4630 = vrot.lane.b32.xlu0 %v733, 32
      %v4631 = vpop.permute.xlu0 %4630
      %4632 = vrot.lane.b32.xlu0 %v734, 32
      %v4633 = vpop.permute.xlu0 %4632
      %4634 = vrot.lane.b32.xlu0 %v735, 32
      %v4635 = vpop.permute.xlu0 %4634
      %4636 = vrot.lane.b32.xlu0 %v736, 32
      %v4637 = vpop.permute.xlu0 %4636
      %4638 = vrot.lane.b32.xlu0 %v737, 32
      %v4639 = vpop.permute.xlu0 %4638
      %4640 = vrot.lane.b32.xlu0 %v738, 32
      %v4641 = vpop.permute.xlu0 %4640
      %4642 = vrot.lane.b32.xlu0 %v739, 32
      %v4643 = vpop.permute.xlu0 %4642
      %4644 = vrot.lane.b32.xlu0 %v740, 32
      %v4645 = vpop.permute.xlu0 %4644
      %4646 = vrot.lane.b32.xlu0 %v741, 32
      %v4647 = vpop.permute.xlu0 %4646
      %4648 = vrot.lane.b32.xlu0 %v742, 32
      %v4649 = vpop.permute.xlu0 %4648
      %v4691 = vmul.f32 %v4446, %v4569
      %v4692 = vmul.f32 %v4448, %v4571
      %v4693 = vmul.f32 %v4450, %v4573
      %v4694 = vmul.f32 %v4452, %v4575
      %v4695 = vmul.f32 %v4454, %v4577
      %v4696 = vmul.f32 %v4456, %v4579
      %v4697 = vmul.f32 %v4458, %v4581
      %v4698 = vmul.f32 %v4460, %v4583
      %v4699 = vmul.f32 %v4462, %v4585
      %v4700 = vmul.f32 %v4464, %v4587
      %v4701 = vmul.f32 %v4466, %v4589
      %v4702 = vmul.f32 %v4468, %v4591
      %v4703 = vmul.f32 %v4470, %v4593
      %v4704 = vmul.f32 %v4472, %v4595
      %v4705 = vmul.f32 %v4474, %v4597
      %v4706 = vmul.f32 %v4476, %v4599
      %v4707 = vmul.f32 %v4478, %v4601
      %v4708 = vmul.f32 %v4480, %v4603
      %v4709 = vmul.f32 %v4482, %v4605
      %v4710 = vmul.f32 %v4484, %v4607
      %v4711 = vmul.f32 %v4486, %v4609
      %v4712 = vmul.f32 %v4488, %v4611
      %v4713 = vmul.f32 %v4490, %v4613
      %v4714 = vmul.f32 %v4492, %v4615
      %v4715 = vmul.f32 %v4494, %v4617
      %v4716 = vmul.f32 %v4496, %v4619
      %v4717 = vmul.f32 %v4498, %v4621
      %v4718 = vmul.f32 %v4500, %v4623
      %v4719 = vmul.f32 %v4502, %v4625
      %v4720 = vmul.f32 %v4504, %v4627
      %v4721 = vmul.f32 %v4506, %v4629
      %v4722 = vmul.f32 %v4508, %v4631
      %v4723 = vmul.f32 %v4510, %v4633
      %v4724 = vmul.f32 %v4512, %v4635
      %v4725 = vmul.f32 %v4514, %v4637
      %v4726 = vmul.f32 %v4516, %v4639
      %v4727 = vmul.f32 %v4518, %v4641
      %v4728 = vmul.f32 %v4520, %v4643
      %v4729 = vmul.f32 %v4522, %v4645
      %v4730 = vmul.f32 %v4524, %v4647
      %v4731 = vmul.f32 %v4526, %v4649
      %v4732 = vtanh.pop %v3460
      %v4733 = vtanh.pop %v3463
      %v4734 = vtanh.pop %v3468
      %v4735 = vtanh.pop %v3471
      %v4736 = vtanh.pop %v3476
      %v4737 = vtanh.pop %v3479
      %v4738 = vtanh.pop %v3484
      %v4739 = vtanh.pop %v3487
      %v4740 = vtanh.pop %v3492
      %v4741 = vtanh.pop %v3495
      %v4742 = vtanh.pop %v3500
      %v4743 = vtanh.pop %v3503
      %v4744 = vtanh.pop %v3508
      %v4745 = vtanh.pop %v3511
      %v4746 = vtanh.pop %v3516
      %v4747 = vtanh.pop %v3519
      %v4748 = vtanh.pop %v3524
      %v4749 = vtanh.pop %v3527
      %v4750 = vtanh.pop %v3532
      %v4751 = vtanh.pop %v3535
      %v4752 = vtanh.pop %v3540
      %v4753 = vtanh.pop %v3543
      %v4754 = vtanh.pop %v3548
      %v4755 = vtanh.pop %v3551
      %v4756 = vtanh.pop %v3556
      %v4757 = vtanh.pop %v3559
      %v4758 = vtanh.pop %v3564
      %v4759 = vtanh.pop %v3567
      %v4760 = vtanh.pop %v3572
      %v4761 = vtanh.pop %v3575
      %v4762 = vtanh.pop %v3580
      %v4763 = vtanh.pop %v3583
      %v4764 = vtanh.pop %v3588
      %v4765 = vtanh.pop %v3591
      %v4766 = vtanh.pop %v3596
      %v4767 = vtanh.pop %v3599
      %v4768 = vtanh.pop %v3604
      %v4769 = vtanh.pop %v3607
      %v4770 = vtanh.pop %v3612
      %v4771 = vtanh.pop %v3615
      %v4772 = vtanh.pop %v3620
      %4814 = vrot.lane.b32.xlu0 %v4732, 64
      %v4815 = vpop.permute.xlu0 %4814
      %4816 = vrot.lane.b32.xlu0 %v4733, 64
      %v4817 = vpop.permute.xlu0 %4816
      %4818 = vrot.lane.b32.xlu0 %v4734, 64
      %v4819 = vpop.permute.xlu0 %4818
      %4820 = vrot.lane.b32.xlu0 %v4735, 64
      %v4821 = vpop.permute.xlu0 %4820
      %4822 = vrot.lane.b32.xlu0 %v4736, 64
      %v4823 = vpop.permute.xlu0 %4822
      %4824 = vrot.lane.b32.xlu0 %v4737, 64
      %v4825 = vpop.permute.xlu0 %4824
      %4826 = vrot.lane.b32.xlu0 %v4738, 64
      %v4827 = vpop.permute.xlu0 %4826
      %4828 = vrot.lane.b32.xlu0 %v4739, 64
      %v4829 = vpop.permute.xlu0 %4828
      %4830 = vrot.lane.b32.xlu0 %v4740, 64
      %v4831 = vpop.permute.xlu0 %4830
      %4832 = vrot.lane.b32.xlu0 %v4741, 64
      %v4833 = vpop.permute.xlu0 %4832
      %4834 = vrot.lane.b32.xlu0 %v4742, 64
      %v4835 = vpop.permute.xlu0 %4834
      %4836 = vrot.lane.b32.xlu0 %v4743, 64
      %v4837 = vpop.permute.xlu0 %4836
      %4838 = vrot.lane.b32.xlu0 %v4744, 64
      %v4839 = vpop.permute.xlu0 %4838
      %4840 = vrot.lane.b32.xlu0 %v4745, 64
      %v4841 = vpop.permute.xlu0 %4840
      %4842 = vrot.lane.b32.xlu0 %v4746, 64
      %v4843 = vpop.permute.xlu0 %4842
      %4844 = vrot.lane.b32.xlu0 %v4747, 64
      %v4845 = vpop.permute.xlu0 %4844
      %4846 = vrot.lane.b32.xlu0 %v4748, 64
      %v4847 = vpop.permute.xlu0 %4846
      %4848 = vrot.lane.b32.xlu0 %v4749, 64
      %v4849 = vpop.permute.xlu0 %4848
      %4850 = vrot.lane.b32.xlu0 %v4750, 64
      %v4851 = vpop.permute.xlu0 %4850
      %4852 = vrot.lane.b32.xlu0 %v4751, 64
      %v4853 = vpop.permute.xlu0 %4852
      %4854 = vrot.lane.b32.xlu0 %v4752, 64
      %v4855 = vpop.permute.xlu0 %4854
      %4856 = vrot.lane.b32.xlu0 %v4753, 64
      %v4857 = vpop.permute.xlu0 %4856
      %4858 = vrot.lane.b32.xlu0 %v4754, 64
      %v4859 = vpop.permute.xlu0 %4858
      %4860 = vrot.lane.b32.xlu0 %v4755, 64
      %v4861 = vpop.permute.xlu0 %4860
      %4862 = vrot.lane.b32.xlu0 %v4756, 64
      %v4863 = vpop.permute.xlu0 %4862
      %4864 = vrot.lane.b32.xlu0 %v4757, 64
      %v4865 = vpop.permute.xlu0 %4864
      %4866 = vrot.lane.b32.xlu0 %v4758, 64
      %v4867 = vpop.permute.xlu0 %4866
      %4868 = vrot.lane.b32.xlu0 %v4759, 64
      %v4869 = vpop.permute.xlu0 %4868
      %4870 = vrot.lane.b32.xlu0 %v4760, 64
      %v4871 = vpop.permute.xlu0 %4870
      %4872 = vrot.lane.b32.xlu0 %v4761, 64
      %v4873 = vpop.permute.xlu0 %4872
      %4874 = vrot.lane.b32.xlu0 %v4762, 64
      %v4875 = vpop.permute.xlu0 %4874
      %4876 = vrot.lane.b32.xlu0 %v4763, 64
      %v4877 = vpop.permute.xlu0 %4876
      %4878 = vrot.lane.b32.xlu0 %v4764, 64
      %v4879 = vpop.permute.xlu0 %4878
      %4880 = vrot.lane.b32.xlu0 %v4765, 64
      %v4881 = vpop.permute.xlu0 %4880
      %4882 = vrot.lane.b32.xlu0 %v4766, 64
      %v4883 = vpop.permute.xlu0 %4882
      %4884 = vrot.lane.b32.xlu0 %v4767, 64
      %v4885 = vpop.permute.xlu0 %4884
      %4886 = vrot.lane.b32.xlu0 %v4768, 64
      %v4887 = vpop.permute.xlu0 %4886
      %4888 = vrot.lane.b32.xlu0 %v4769, 64
      %v4889 = vpop.permute.xlu0 %4888
      %4890 = vrot.lane.b32.xlu0 %v4770, 64
      %v4891 = vpop.permute.xlu0 %4890
      %4892 = vrot.lane.b32.xlu0 %v4771, 64
      %v4893 = vpop.permute.xlu0 %4892
      %4894 = vrot.lane.b32.xlu0 %v4772, 64
      %v4895 = vpop.permute.xlu0 %4894
      %v4937 = vmul.f32 %v3913, %v4815
      %v4938 = vmul.f32 %v3915, %v4817
      %v4939 = vmul.f32 %v3917, %v4819
      %v4940 = vmul.f32 %v3919, %v4821
      %v4941 = vmul.f32 %v3921, %v4823
      %v4942 = vmul.f32 %v3923, %v4825
      %v4943 = vmul.f32 %v3925, %v4827
      %v4944 = vmul.f32 %v3927, %v4829
      %v4945 = vmul.f32 %v3929, %v4831
      %v4946 = vmul.f32 %v3931, %v4833
      %v4947 = vmul.f32 %v3933, %v4835
      %v4948 = vmul.f32 %v3935, %v4837
      %v4949 = vmul.f32 %v3937, %v4839
      %v4950 = vmul.f32 %v3939, %v4841
      %v4951 = vmul.f32 %v3941, %v4843
      %v4952 = vmul.f32 %v3943, %v4845
      %v4953 = vmul.f32 %v3945, %v4847
      %v4954 = vmul.f32 %v3947, %v4849
      %v4955 = vmul.f32 %v3949, %v4851
      %v4956 = vmul.f32 %v3951, %v4853
      %v4957 = vmul.f32 %v3953, %v4855
      %v4958 = vmul.f32 %v3955, %v4857
      %v4959 = vmul.f32 %v3957, %v4859
      %v4960 = vmul.f32 %v3959, %v4861
      %v4961 = vmul.f32 %v3961, %v4863
      %v4962 = vmul.f32 %v3963, %v4865
      %v4963 = vmul.f32 %v3965, %v4867
      %v4964 = vmul.f32 %v3967, %v4869
      %v4965 = vmul.f32 %v3969, %v4871
      %v4966 = vmul.f32 %v3971, %v4873
      %v4967 = vmul.f32 %v3973, %v4875
      %v4968 = vmul.f32 %v3975, %v4877
      %v4969 = vmul.f32 %v3977, %v4879
      %v4970 = vmul.f32 %v3979, %v4881
      %v4971 = vmul.f32 %v3981, %v4883
      %v4972 = vmul.f32 %v3983, %v4885
      %v4973 = vmul.f32 %v3985, %v4887
      %v4974 = vmul.f32 %v3987, %v4889
      %v4975 = vmul.f32 %v3989, %v4891
      %v4976 = vmul.f32 %v3991, %v4893
      %v4977 = vmul.f32 %v3993, %v4895
      %5019 = vrot.lane.b32.xlu0 %v4937, 32
      %v5020 = vpop.permute.xlu0 %5019
      %5021 = vrot.lane.b32.xlu0 %v4938, 32
      %v5022 = vpop.permute.xlu0 %5021
      %5023 = vrot.lane.b32.xlu0 %v4939, 32
      %v5024 = vpop.permute.xlu0 %5023
      %5025 = vrot.lane.b32.xlu0 %v4940, 32
      %v5026 = vpop.permute.xlu0 %5025
      %5027 = vrot.lane.b32.xlu0 %v4941, 32
      %v5028 = vpop.permute.xlu0 %5027
      %5029 = vrot.lane.b32.xlu0 %v4942, 32
      %v5030 = vpop.permute.xlu0 %5029
      %5031 = vrot.lane.b32.xlu0 %v4943, 32
      %v5032 = vpop.permute.xlu0 %5031
      %5033 = vrot.lane.b32.xlu0 %v4944, 32
      %v5034 = vpop.permute.xlu0 %5033
      %5035 = vrot.lane.b32.xlu0 %v4945, 32
      %v5036 = vpop.permute.xlu0 %5035
      %5037 = vrot.lane.b32.xlu0 %v4946, 32
      %v5038 = vpop.permute.xlu0 %5037
      %5039 = vrot.lane.b32.xlu0 %v4947, 32
      %v5040 = vpop.permute.xlu0 %5039
      %5041 = vrot.lane.b32.xlu0 %v4948, 32
      %v5042 = vpop.permute.xlu0 %5041
      %5043 = vrot.lane.b32.xlu0 %v4949, 32
      %v5044 = vpop.permute.xlu0 %5043
      %5045 = vrot.lane.b32.xlu0 %v4950, 32
      %v5046 = vpop.permute.xlu0 %5045
      %5047 = vrot.lane.b32.xlu0 %v4951, 32
      %v5048 = vpop.permute.xlu0 %5047
      %5049 = vrot.lane.b32.xlu0 %v4952, 32
      %v5050 = vpop.permute.xlu0 %5049
      %5051 = vrot.lane.b32.xlu0 %v4953, 32
      %v5052 = vpop.permute.xlu0 %5051
      %5053 = vrot.lane.b32.xlu0 %v4954, 32
      %v5054 = vpop.permute.xlu0 %5053
      %5055 = vrot.lane.b32.xlu0 %v4955, 32
      %v5056 = vpop.permute.xlu0 %5055
      %5057 = vrot.lane.b32.xlu0 %v4956, 32
      %v5058 = vpop.permute.xlu0 %5057
      %5059 = vrot.lane.b32.xlu0 %v4957, 32
      %v5060 = vpop.permute.xlu0 %5059
      %5061 = vrot.lane.b32.xlu0 %v4958, 32
      %v5062 = vpop.permute.xlu0 %5061
      %5063 = vrot.lane.b32.xlu0 %v4959, 32
      %v5064 = vpop.permute.xlu0 %5063
      %5065 = vrot.lane.b32.xlu0 %v4960, 32
      %v5066 = vpop.permute.xlu0 %5065
      %5067 = vrot.lane.b32.xlu0 %v4961, 32
      %v5068 = vpop.permute.xlu0 %5067
      %5069 = vrot.lane.b32.xlu0 %v4962, 32
      %v5070 = vpop.permute.xlu0 %5069
      %5071 = vrot.lane.b32.xlu0 %v4963, 32
      %v5072 = vpop.permute.xlu0 %5071
      %5073 = vrot.lane.b32.xlu0 %v4964, 32
      %v5074 = vpop.permute.xlu0 %5073
      %5075 = vrot.lane.b32.xlu0 %v4965, 32
      %v5076 = vpop.permute.xlu0 %5075
      %5077 = vrot.lane.b32.xlu0 %v4966, 32
      %v5078 = vpop.permute.xlu0 %5077
      %5079 = vrot.lane.b32.xlu0 %v4967, 32
      %v5080 = vpop.permute.xlu0 %5079
      %5081 = vrot.lane.b32.xlu0 %v4968, 32
      %v5082 = vpop.permute.xlu0 %5081
      %5083 = vrot.lane.b32.xlu0 %v4969, 32
      %v5084 = vpop.permute.xlu0 %5083
      %5085 = vrot.lane.b32.xlu0 %v4970, 32
      %v5086 = vpop.permute.xlu0 %5085
      %5087 = vrot.lane.b32.xlu0 %v4971, 32
      %v5088 = vpop.permute.xlu0 %5087
      %5089 = vrot.lane.b32.xlu0 %v4972, 32
      %v5090 = vpop.permute.xlu0 %5089
      %5091 = vrot.lane.b32.xlu0 %v4973, 32
      %v5092 = vpop.permute.xlu0 %5091
      %5093 = vrot.lane.b32.xlu0 %v4974, 32
      %v5094 = vpop.permute.xlu0 %5093
      %5095 = vrot.lane.b32.xlu0 %v4975, 32
      %v5096 = vpop.permute.xlu0 %5095
      %5097 = vrot.lane.b32.xlu0 %v4976, 32
      %v5098 = vpop.permute.xlu0 %5097
      %5099 = vrot.lane.b32.xlu0 %v4977, 32
      %v5100 = vpop.permute.xlu0 %5099
      %v5142 = vadd.f32 %v4691, %v5020
      %v5143 = vadd.f32 %v4692, %v5022
      %v5144 = vadd.f32 %v4693, %v5024
      %v5145 = vadd.f32 %v4694, %v5026
      %v5146 = vadd.f32 %v4695, %v5028
      %v5147 = vadd.f32 %v4696, %v5030
      %v5148 = vadd.f32 %v4697, %v5032
      %v5149 = vadd.f32 %v4698, %v5034
      %v5150 = vadd.f32 %v4699, %v5036
      %v5151 = vadd.f32 %v4700, %v5038
      %v5152 = vadd.f32 %v4701, %v5040
      %v5153 = vadd.f32 %v4702, %v5042
      %v5154 = vadd.f32 %v4703, %v5044
      %v5155 = vadd.f32 %v4704, %v5046
      %v5156 = vadd.f32 %v4705, %v5048
      %v5157 = vadd.f32 %v4706, %v5050
      %v5158 = vadd.f32 %v4707, %v5052
      %v5159 = vadd.f32 %v4708, %v5054
      %v5160 = vadd.f32 %v4709, %v5056
      %v5161 = vadd.f32 %v4710, %v5058
      %v5162 = vadd.f32 %v4711, %v5060
      %v5163 = vadd.f32 %v4712, %v5062
      %v5164 = vadd.f32 %v4713, %v5064
      %v5165 = vadd.f32 %v4714, %v5066
      %v5166 = vadd.f32 %v4715, %v5068
      %v5167 = vadd.f32 %v4716, %v5070
      %v5168 = vadd.f32 %v4717, %v5072
      %v5169 = vadd.f32 %v4718, %v5074
      %v5170 = vadd.f32 %v4719, %v5076
      %v5171 = vadd.f32 %v4720, %v5078
      %v5172 = vadd.f32 %v4721, %v5080
      %v5173 = vadd.f32 %v4722, %v5082
      %v5174 = vadd.f32 %v4723, %v5084
      %v5175 = vadd.f32 %v4724, %v5086
      %v5176 = vadd.f32 %v4725, %v5088
      %v5177 = vadd.f32 %v4726, %v5090
      %v5178 = vadd.f32 %v4727, %v5092
      %v5179 = vadd.f32 %v4728, %v5094
      %v5180 = vadd.f32 %v4729, %v5096
      %v5181 = vadd.f32 %v4730, %v5098
      %v5182 = vadd.f32 %v4731, %v5100
      %v5183 = vld [vmem:[%s7] sm:$0xff]
      %v5184 = vld [vmem:[%s7 + $0x8] sm:$0xff]
      %v5185 = vld [vmem:[%s7 + $0x10] sm:$0xff]
      %v5186 = vld [vmem:[%s7 + $0x18] sm:$0xff]
      %v5187 = vld [vmem:[%s7 + $0x20] sm:$0xff]
      %v5188 = vld [vmem:[%s7 + $0x28] sm:$0xff]
      %v5189 = vld [vmem:[%s7 + $0x30] sm:$0xff]
      %v5190 = vld [vmem:[%s7 + $0x38] sm:$0xff]
      %v5191 = vld [vmem:[%s7 + $0x40] sm:$0xff]
      %v5192 = vld [vmem:[%s7 + $0x48] sm:$0xff]
      %v5193 = vld [vmem:[%s7 + $0x50] sm:$0xff]
      %v5194 = vld [vmem:[%s7 + $0x58] sm:$0xff]
      %v5195 = vld [vmem:[%s7 + $0x60] sm:$0xff]
      %v5196 = vld [vmem:[%s7 + $0x68] sm:$0xff]
      %v5197 = vld [vmem:[%s7 + $0x70] sm:$0xff]
      %v5198 = vld [vmem:[%s7 + $0x78] sm:$0xff]
      %v5199 = vld [vmem:[%s7 + $0x80] sm:$0xff]
      %v5200 = vld [vmem:[%s7 + $0x88] sm:$0xff]
      %v5201 = vld [vmem:[%s7 + $0x90] sm:$0xff]
      %v5202 = vld [vmem:[%s7 + $0x98] sm:$0xff]
      %v5203 = vld [vmem:[%s7 + $0xa0] sm:$0xff]
      %v5204 = vld [vmem:[%s7 + $0xa8] sm:$0xff]
      %v5205 = vld [vmem:[%s7 + $0xb0] sm:$0xff]
      %v5206 = vld [vmem:[%s7 + $0xb8] sm:$0xff]
      %v5207 = vld [vmem:[%s7 + $0xc0] sm:$0xff]
      %v5208 = vld [vmem:[%s7 + $0xc8] sm:$0xff]
      %v5209 = vld [vmem:[%s7 + $0xd0] sm:$0xff]
      %v5210 = vld [vmem:[%s7 + $0xd8] sm:$0xff]
      %v5211 = vld [vmem:[%s7 + $0xe0] sm:$0xff]
      %v5212 = vld [vmem:[%s7 + $0xe8] sm:$0xff]
      %v5213 = vld [vmem:[%s7 + $0xf0] sm:$0xff]
      %v5214 = vld [vmem:[%s7 + $0xf8] sm:$0xff]
      %v5215 = vld [vmem:[%s7 + $0x100] sm:$0xff]
      %v5216 = vld [vmem:[%s7 + $0x108] sm:$0xff]
      %v5217 = vld [vmem:[%s7 + $0x110] sm:$0xff]
      %v5218 = vld [vmem:[%s7 + $0x118] sm:$0xff]
      %v5219 = vld [vmem:[%s7 + $0x120] sm:$0xff]
      %v5220 = vld [vmem:[%s7 + $0x128] sm:$0xff]
      %v5221 = vld [vmem:[%s7 + $0x130] sm:$0xff]
      %v5222 = vld [vmem:[%s7 + $0x138] sm:$0xff]
      %v5223 = vld [vmem:[%s7 + $0x140] sm:$0xf]
      %5265 = vrot.lane.b32.xlu0 %v5142, 96
      %v5266 = vpop.permute.xlu0 %5265
      %5267 = vrot.lane.b32.xlu0 %v5143, 96
      %v5268 = vpop.permute.xlu0 %5267
      %5269 = vrot.lane.b32.xlu0 %v5144, 96
      %v5270 = vpop.permute.xlu0 %5269
      %5271 = vrot.lane.b32.xlu0 %v5145, 96
      %v5272 = vpop.permute.xlu0 %5271
      %5273 = vrot.lane.b32.xlu0 %v5146, 96
      %v5274 = vpop.permute.xlu0 %5273
      %5275 = vrot.lane.b32.xlu0 %v5147, 96
      %v5276 = vpop.permute.xlu0 %5275
      %5277 = vrot.lane.b32.xlu0 %v5148, 96
      %v5278 = vpop.permute.xlu0 %5277
      %5279 = vrot.lane.b32.xlu0 %v5149, 96
      %v5280 = vpop.permute.xlu0 %5279
      %5281 = vrot.lane.b32.xlu0 %v5150, 96
      %v5282 = vpop.permute.xlu0 %5281
      %5283 = vrot.lane.b32.xlu0 %v5151, 96
      %v5284 = vpop.permute.xlu0 %5283
      %5285 = vrot.lane.b32.xlu0 %v5152, 96
      %v5286 = vpop.permute.xlu0 %5285
      %5287 = vrot.lane.b32.xlu0 %v5153, 96
      %v5288 = vpop.permute.xlu0 %5287
      %5289 = vrot.lane.b32.xlu0 %v5154, 96
      %v5290 = vpop.permute.xlu0 %5289
      %5291 = vrot.lane.b32.xlu0 %v5155, 96
      %v5292 = vpop.permute.xlu0 %5291
      %5293 = vrot.lane.b32.xlu0 %v5156, 96
      %v5294 = vpop.permute.xlu0 %5293
      %5295 = vrot.lane.b32.xlu0 %v5157, 96
      %v5296 = vpop.permute.xlu0 %5295
      %5297 = vrot.lane.b32.xlu0 %v5158, 96
      %v5298 = vpop.permute.xlu0 %5297
      %5299 = vrot.lane.b32.xlu0 %v5159, 96
      %v5300 = vpop.permute.xlu0 %5299
      %5301 = vrot.lane.b32.xlu0 %v5160, 96
      %v5302 = vpop.permute.xlu0 %5301
      %5303 = vrot.lane.b32.xlu0 %v5161, 96
      %v5304 = vpop.permute.xlu0 %5303
      %5305 = vrot.lane.b32.xlu0 %v5162, 96
      %v5306 = vpop.permute.xlu0 %5305
      %5307 = vrot.lane.b32.xlu0 %v5163, 96
      %v5308 = vpop.permute.xlu0 %5307
      %5309 = vrot.lane.b32.xlu0 %v5164, 96
      %v5310 = vpop.permute.xlu0 %5309
      %5311 = vrot.lane.b32.xlu0 %v5165, 96
      %v5312 = vpop.permute.xlu0 %5311
      %5313 = vrot.lane.b32.xlu0 %v5166, 96
      %v5314 = vpop.permute.xlu0 %5313
      %5315 = vrot.lane.b32.xlu0 %v5167, 96
      %v5316 = vpop.permute.xlu0 %5315
      %5317 = vrot.lane.b32.xlu0 %v5168, 96
      %v5318 = vpop.permute.xlu0 %5317
      %5319 = vrot.lane.b32.xlu0 %v5169, 96
      %v5320 = vpop.permute.xlu0 %5319
      %5321 = vrot.lane.b32.xlu0 %v5170, 96
      %v5322 = vpop.permute.xlu0 %5321
      %5323 = vrot.lane.b32.xlu0 %v5171, 96
      %v5324 = vpop.permute.xlu0 %5323
      %5325 = vrot.lane.b32.xlu0 %v5172, 96
      %v5326 = vpop.permute.xlu0 %5325
      %5327 = vrot.lane.b32.xlu0 %v5173, 96
      %v5328 = vpop.permute.xlu0 %5327
      %5329 = vrot.lane.b32.xlu0 %v5174, 96
      %v5330 = vpop.permute.xlu0 %5329
      %5331 = vrot.lane.b32.xlu0 %v5175, 96
      %v5332 = vpop.permute.xlu0 %5331
      %5333 = vrot.lane.b32.xlu0 %v5176, 96
      %v5334 = vpop.permute.xlu0 %5333
      %5335 = vrot.lane.b32.xlu0 %v5177, 96
      %v5336 = vpop.permute.xlu0 %5335
      %5337 = vrot.lane.b32.xlu0 %v5178, 96
      %v5338 = vpop.permute.xlu0 %5337
      %5339 = vrot.lane.b32.xlu0 %v5179, 96
      %v5340 = vpop.permute.xlu0 %5339
      %5341 = vrot.lane.b32.xlu0 %v5180, 96
      %v5342 = vpop.permute.xlu0 %5341
      %5343 = vrot.lane.b32.xlu0 %v5181, 96
      %v5344 = vpop.permute.xlu0 %5343
      %5345 = vrot.lane.b32.xlu0 %v5182, 96
      %v5346 = vpop.permute.xlu0 %5345
      %v5388 = vmul.f32 %v5183, %v5266
      %v5389 = vmul.f32 %v5184, %v5268
      %v5390 = vmul.f32 %v5185, %v5270
      %v5391 = vmul.f32 %v5186, %v5272
      %v5392 = vmul.f32 %v5187, %v5274
      %v5393 = vmul.f32 %v5188, %v5276
      %v5394 = vmul.f32 %v5189, %v5278
      %v5395 = vmul.f32 %v5190, %v5280
      %v5396 = vmul.f32 %v5191, %v5282
      %v5397 = vmul.f32 %v5192, %v5284
      %v5398 = vmul.f32 %v5193, %v5286
      %v5399 = vmul.f32 %v5194, %v5288
      %v5400 = vmul.f32 %v5195, %v5290
      %v5401 = vmul.f32 %v5196, %v5292
      %v5402 = vmul.f32 %v5197, %v5294
      %v5403 = vmul.f32 %v5198, %v5296
      %v5404 = vmul.f32 %v5199, %v5298
      %v5405 = vmul.f32 %v5200, %v5300
      %v5406 = vmul.f32 %v5201, %v5302
      %v5407 = vmul.f32 %v5202, %v5304
      %v5408 = vmul.f32 %v5203, %v5306
      %v5409 = vmul.f32 %v5204, %v5308
      %v5410 = vmul.f32 %v5205, %v5310
      %v5411 = vmul.f32 %v5206, %v5312
      %v5412 = vmul.f32 %v5207, %v5314
      %v5413 = vmul.f32 %v5208, %v5316
      %v5414 = vmul.f32 %v5209, %v5318
      %v5415 = vmul.f32 %v5210, %v5320
      %v5416 = vmul.f32 %v5211, %v5322
      %v5417 = vmul.f32 %v5212, %v5324
      %v5418 = vmul.f32 %v5213, %v5326
      %v5419 = vmul.f32 %v5214, %v5328
      %v5420 = vmul.f32 %v5215, %v5330
      %v5421 = vmul.f32 %v5216, %v5332
      %v5422 = vmul.f32 %v5217, %v5334
      %v5423 = vmul.f32 %v5218, %v5336
      %v5424 = vmul.f32 %v5219, %v5338
      %v5425 = vmul.f32 %v5220, %v5340
      %v5426 = vmul.f32 %v5221, %v5342
      %v5427 = vmul.f32 %v5222, %v5344
      %v5428 = vmul.f32 %v5223, %v5346
      %5470 = vrot.lane.b32.xlu0 %v5388, 96
      %v5471 = vpop.permute.xlu0 %5470
      %5472 = vrot.lane.b32.xlu0 %v5389, 96
      %v5473 = vpop.permute.xlu0 %5472
      %5474 = vrot.lane.b32.xlu0 %v5390, 96
      %v5475 = vpop.permute.xlu0 %5474
      %5476 = vrot.lane.b32.xlu0 %v5391, 96
      %v5477 = vpop.permute.xlu0 %5476
      %5478 = vrot.lane.b32.xlu0 %v5392, 96
      %v5479 = vpop.permute.xlu0 %5478
      %5480 = vrot.lane.b32.xlu0 %v5393, 96
      %v5481 = vpop.permute.xlu0 %5480
      %5482 = vrot.lane.b32.xlu0 %v5394, 96
      %v5483 = vpop.permute.xlu0 %5482
      %5484 = vrot.lane.b32.xlu0 %v5395, 96
      %v5485 = vpop.permute.xlu0 %5484
      %5486 = vrot.lane.b32.xlu0 %v5396, 96
      %v5487 = vpop.permute.xlu0 %5486
      %5488 = vrot.lane.b32.xlu0 %v5397, 96
      %v5489 = vpop.permute.xlu0 %5488
      %5490 = vrot.lane.b32.xlu0 %v5398, 96
      %v5491 = vpop.permute.xlu0 %5490
      %5492 = vrot.lane.b32.xlu0 %v5399, 96
      %v5493 = vpop.permute.xlu0 %5492
      %5494 = vrot.lane.b32.xlu0 %v5400, 96
      %v5495 = vpop.permute.xlu0 %5494
      %5496 = vrot.lane.b32.xlu0 %v5401, 96
      %v5497 = vpop.permute.xlu0 %5496
      %5498 = vrot.lane.b32.xlu0 %v5402, 96
      %v5499 = vpop.permute.xlu0 %5498
      %5500 = vrot.lane.b32.xlu0 %v5403, 96
      %v5501 = vpop.permute.xlu0 %5500
      %5502 = vrot.lane.b32.xlu0 %v5404, 96
      %v5503 = vpop.permute.xlu0 %5502
      %5504 = vrot.lane.b32.xlu0 %v5405, 96
      %v5505 = vpop.permute.xlu0 %5504
      %5506 = vrot.lane.b32.xlu0 %v5406, 96
      %v5507 = vpop.permute.xlu0 %5506
      %5508 = vrot.lane.b32.xlu0 %v5407, 96
      %v5509 = vpop.permute.xlu0 %5508
      %5510 = vrot.lane.b32.xlu0 %v5408, 96
      %v5511 = vpop.permute.xlu0 %5510
      %5512 = vrot.lane.b32.xlu0 %v5409, 96
      %v5513 = vpop.permute.xlu0 %5512
      %5514 = vrot.lane.b32.xlu0 %v5410, 96
      %v5515 = vpop.permute.xlu0 %5514
      %5516 = vrot.lane.b32.xlu0 %v5411, 96
      %v5517 = vpop.permute.xlu0 %5516
      %5518 = vrot.lane.b32.xlu0 %v5412, 96
      %v5519 = vpop.permute.xlu0 %5518
      %5520 = vrot.lane.b32.xlu0 %v5413, 96
      %v5521 = vpop.permute.xlu0 %5520
      %5522 = vrot.lane.b32.xlu0 %v5414, 96
      %v5523 = vpop.permute.xlu0 %5522
      %5524 = vrot.lane.b32.xlu0 %v5415, 96
      %v5525 = vpop.permute.xlu0 %5524
      %5526 = vrot.lane.b32.xlu0 %v5416, 96
      %v5527 = vpop.permute.xlu0 %5526
      %5528 = vrot.lane.b32.xlu0 %v5417, 96
      %v5529 = vpop.permute.xlu0 %5528
      %5530 = vrot.lane.b32.xlu0 %v5418, 96
      %v5531 = vpop.permute.xlu0 %5530
      %5532 = vrot.lane.b32.xlu0 %v5419, 96
      %v5533 = vpop.permute.xlu0 %5532
      %5534 = vrot.lane.b32.xlu0 %v5420, 96
      %v5535 = vpop.permute.xlu0 %5534
      %5536 = vrot.lane.b32.xlu0 %v5421, 96
      %v5537 = vpop.permute.xlu0 %5536
      %5538 = vrot.lane.b32.xlu0 %v5422, 96
      %v5539 = vpop.permute.xlu0 %5538
      %5540 = vrot.lane.b32.xlu0 %v5423, 96
      %v5541 = vpop.permute.xlu0 %5540
      %5542 = vrot.lane.b32.xlu0 %v5424, 96
      %v5543 = vpop.permute.xlu0 %5542
      %5544 = vrot.lane.b32.xlu0 %v5425, 96
      %v5545 = vpop.permute.xlu0 %5544
      %5546 = vrot.lane.b32.xlu0 %v5426, 96
      %v5547 = vpop.permute.xlu0 %5546
      %5548 = vrot.lane.b32.xlu0 %v5427, 96
      %v5549 = vpop.permute.xlu0 %5548
      %5550 = vrot.lane.b32.xlu0 %v5428, 96
      %v5551 = vpop.permute.xlu0 %5550
      %v5593 = vadd.f32 %v3460, %v5471
      %v5594 = vadd.f32 %v3463, %v5473
      %v5595 = vadd.f32 %v3468, %v5475
      %v5596 = vadd.f32 %v3471, %v5477
      %v5597 = vadd.f32 %v3476, %v5479
      %v5598 = vadd.f32 %v3479, %v5481
      %v5599 = vadd.f32 %v3484, %v5483
      %v5600 = vadd.f32 %v3487, %v5485
      %v5601 = vadd.f32 %v3492, %v5487
      %v5602 = vadd.f32 %v3495, %v5489
      %v5603 = vadd.f32 %v3500, %v5491
      %v5604 = vadd.f32 %v3503, %v5493
      %v5605 = vadd.f32 %v3508, %v5495
      %v5606 = vadd.f32 %v3511, %v5497
      %v5607 = vadd.f32 %v3516, %v5499
      %v5608 = vadd.f32 %v3519, %v5501
      %v5609 = vadd.f32 %v3524, %v5503
      %v5610 = vadd.f32 %v3527, %v5505
      %v5611 = vadd.f32 %v3532, %v5507
      %v5612 = vadd.f32 %v3535, %v5509
      %v5613 = vadd.f32 %v3540, %v5511
      %v5614 = vadd.f32 %v3543, %v5513
      %v5615 = vadd.f32 %v3548, %v5515
      %v5616 = vadd.f32 %v3551, %v5517
      %v5617 = vadd.f32 %v3556, %v5519
      %v5618 = vadd.f32 %v3559, %v5521
      %v5619 = vadd.f32 %v3564, %v5523
      %v5620 = vadd.f32 %v3567, %v5525
      %v5621 = vadd.f32 %v3572, %v5527
      %v5622 = vadd.f32 %v3575, %v5529
      %v5623 = vadd.f32 %v3580, %v5531
      %v5624 = vadd.f32 %v3583, %v5533
      %v5625 = vadd.f32 %v3588, %v5535
      %v5626 = vadd.f32 %v3591, %v5537
      %v5627 = vadd.f32 %v3596, %v5539
      %v5628 = vadd.f32 %v3599, %v5541
      %v5629 = vadd.f32 %v3604, %v5543
      %v5630 = vadd.f32 %v3607, %v5545
      %v5631 = vadd.f32 %v3612, %v5547
      %v5632 = vadd.f32 %v3615, %v5549
      %v5633 = vadd.f32 %v3620, %v5551
      %v5634 = vxor.u32 %v5593, 2147483648
      %v5635 = vxor.u32 %v5594, 2147483648
      %v5636 = vxor.u32 %v5595, 2147483648
      %v5637 = vxor.u32 %v5596, 2147483648
      %v5638 = vxor.u32 %v5597, 2147483648
      %v5639 = vxor.u32 %v5598, 2147483648
      %v5640 = vxor.u32 %v5599, 2147483648
      %v5641 = vxor.u32 %v5600, 2147483648
      %v5642 = vxor.u32 %v5601, 2147483648
      %v5643 = vxor.u32 %v5602, 2147483648
      %v5644 = vxor.u32 %v5603, 2147483648
      %v5645 = vxor.u32 %v5604, 2147483648
      %v5646 = vxor.u32 %v5605, 2147483648
      %v5647 = vxor.u32 %v5606, 2147483648
      %v5648 = vxor.u32 %v5607, 2147483648
      %v5649 = vxor.u32 %v5608, 2147483648
      %v5650 = vxor.u32 %v5609, 2147483648
      %v5651 = vxor.u32 %v5610, 2147483648
      %v5652 = vxor.u32 %v5611, 2147483648
      %v5653 = vxor.u32 %v5612, 2147483648
      %v5654 = vxor.u32 %v5613, 2147483648
      %v5655 = vxor.u32 %v5614, 2147483648
      %v5656 = vxor.u32 %v5615, 2147483648
      %v5657 = vxor.u32 %v5616, 2147483648
      %v5658 = vxor.u32 %v5617, 2147483648
      %v5659 = vxor.u32 %v5618, 2147483648
      %v5660 = vxor.u32 %v5619, 2147483648
      %v5661 = vxor.u32 %v5620, 2147483648
      %v5662 = vxor.u32 %v5621, 2147483648
      %v5663 = vxor.u32 %v5622, 2147483648
      %v5664 = vxor.u32 %v5623, 2147483648
      %v5665 = vxor.u32 %v5624, 2147483648
      %v5666 = vxor.u32 %v5625, 2147483648
      %v5667 = vxor.u32 %v5626, 2147483648
      %v5668 = vxor.u32 %v5627, 2147483648
      %v5669 = vxor.u32 %v5628, 2147483648
      %v5670 = vxor.u32 %v5629, 2147483648
      %v5671 = vxor.u32 %v5630, 2147483648
      %v5672 = vxor.u32 %v5631, 2147483648
      %v5673 = vxor.u32 %v5632, 2147483648
      %v5674 = vxor.u32 %v5633, 2147483648
      %v5675 = vmul.f32 %v5634, 1.442695
      %v5676 = vpow.pop %v5675
      %v5677 = vmul.f32 %v5635, 1.442695
      %v5678 = vpow.pop %v5677
      %v5679 = vmul.f32 %v5636, 1.442695
      %v5680 = vpow.pop %v5679
      %v5681 = vmul.f32 %v5637, 1.442695
      %v5682 = vpow.pop %v5681
      %v5683 = vmul.f32 %v5638, 1.442695
      %v5684 = vpow.pop %v5683
      %v5685 = vmul.f32 %v5639, 1.442695
      %v5686 = vpow.pop %v5685
      %v5687 = vmul.f32 %v5640, 1.442695
      %v5688 = vpow.pop %v5687
      %v5689 = vmul.f32 %v5641, 1.442695
      %v5690 = vpow.pop %v5689
      %v5691 = vmul.f32 %v5642, 1.442695
      %v5692 = vpow.pop %v5691
      %v5693 = vmul.f32 %v5643, 1.442695
      %v5694 = vpow.pop %v5693
      %v5695 = vmul.f32 %v5644, 1.442695
      %v5696 = vpow.pop %v5695
      %v5697 = vmul.f32 %v5645, 1.442695
      %v5698 = vpow.pop %v5697
      %v5699 = vmul.f32 %v5646, 1.442695
      %v5700 = vpow.pop %v5699
      %v5701 = vmul.f32 %v5647, 1.442695
      %v5702 = vpow.pop %v5701
      %v5703 = vmul.f32 %v5648, 1.442695
      %v5704 = vpow.pop %v5703
      %v5705 = vmul.f32 %v5649, 1.442695
      %v5706 = vpow.pop %v5705
      %v5707 = vmul.f32 %v5650, 1.442695
      %v5708 = vpow.pop %v5707
      %v5709 = vmul.f32 %v5651, 1.442695
      %v5710 = vpow.pop %v5709
      %v5711 = vmul.f32 %v5652, 1.442695
      %v5712 = vpow.pop %v5711
      %v5713 = vmul.f32 %v5653, 1.442695
      %v5714 = vpow.pop %v5713
      %v5715 = vmul.f32 %v5654, 1.442695
      %v5716 = vpow.pop %v5715
      %v5717 = vmul.f32 %v5655, 1.442695
      %v5718 = vpow.pop %v5717
      %v5719 = vmul.f32 %v5656, 1.442695
      %v5720 = vpow.pop %v5719
      %v5721 = vmul.f32 %v5657, 1.442695
      %v5722 = vpow.pop %v5721
      %v5723 = vmul.f32 %v5658, 1.442695
      %v5724 = vpow.pop %v5723
      %v5725 = vmul.f32 %v5659, 1.442695
      %v5726 = vpow.pop %v5725
      %v5727 = vmul.f32 %v5660, 1.442695
      %v5728 = vpow.pop %v5727
      %v5729 = vmul.f32 %v5661, 1.442695
      %v5730 = vpow.pop %v5729
      %v5731 = vmul.f32 %v5662, 1.442695
      %v5732 = vpow.pop %v5731
      %v5733 = vmul.f32 %v5663, 1.442695
      %v5734 = vpow.pop %v5733
      %v5735 = vmul.f32 %v5664, 1.442695
      %v5736 = vpow.pop %v5735
      %v5737 = vmul.f32 %v5665, 1.442695
      %v5738 = vpow.pop %v5737
      %v5739 = vmul.f32 %v5666, 1.442695
      %v5740 = vpow.pop %v5739
      %v5741 = vmul.f32 %v5667, 1.442695
      %v5742 = vpow.pop %v5741
      %v5743 = vmul.f32 %v5668, 1.442695
      %v5744 = vpow.pop %v5743
      %v5745 = vmul.f32 %v5669, 1.442695
      %v5746 = vpow.pop %v5745
      %v5747 = vmul.f32 %v5670, 1.442695
      %v5748 = vpow.pop %v5747
      %v5749 = vmul.f32 %v5671, 1.442695
      %v5750 = vpow.pop %v5749
      %v5751 = vmul.f32 %v5672, 1.442695
      %v5752 = vpow.pop %v5751
      %v5753 = vmul.f32 %v5673, 1.442695
      %v5754 = vpow.pop %v5753
      %v5755 = vmul.f32 %v5674, 1.442695
      %v5756 = vpow.pop %v5755
      %v5757 = vadd.f32 %v5676, 1.0
      %v5758 = vadd.f32 %v5678, 1.0
      %v5759 = vadd.f32 %v5680, 1.0
      %v5760 = vadd.f32 %v5682, 1.0
      %v5761 = vadd.f32 %v5684, 1.0
      %v5762 = vadd.f32 %v5686, 1.0
      %v5763 = vadd.f32 %v5688, 1.0
      %v5764 = vadd.f32 %v5690, 1.0
      %v5765 = vadd.f32 %v5692, 1.0
      %v5766 = vadd.f32 %v5694, 1.0
      %v5767 = vadd.f32 %v5696, 1.0
      %v5768 = vadd.f32 %v5698, 1.0
      %v5769 = vadd.f32 %v5700, 1.0
      %v5770 = vadd.f32 %v5702, 1.0
      %v5771 = vadd.f32 %v5704, 1.0
      %v5772 = vadd.f32 %v5706, 1.0
      %v5773 = vadd.f32 %v5708, 1.0
      %v5774 = vadd.f32 %v5710, 1.0
      %v5775 = vadd.f32 %v5712, 1.0
      %v5776 = vadd.f32 %v5714, 1.0
      %v5777 = vadd.f32 %v5716, 1.0
      %v5778 = vadd.f32 %v5718, 1.0
      %v5779 = vadd.f32 %v5720, 1.0
      %v5780 = vadd.f32 %v5722, 1.0
      %v5781 = vadd.f32 %v5724, 1.0
      %v5782 = vadd.f32 %v5726, 1.0
      %v5783 = vadd.f32 %v5728, 1.0
      %v5784 = vadd.f32 %v5730, 1.0
      %v5785 = vadd.f32 %v5732, 1.0
      %v5786 = vadd.f32 %v5734, 1.0
      %v5787 = vadd.f32 %v5736, 1.0
      %v5788 = vadd.f32 %v5738, 1.0
      %v5789 = vadd.f32 %v5740, 1.0
      %v5790 = vadd.f32 %v5742, 1.0
      %v5791 = vadd.f32 %v5744, 1.0
      %v5792 = vadd.f32 %v5746, 1.0
      %v5793 = vadd.f32 %v5748, 1.0
      %v5794 = vadd.f32 %v5750, 1.0
      %v5795 = vadd.f32 %v5752, 1.0
      %v5796 = vadd.f32 %v5754, 1.0
      %v5797 = vadd.f32 %v5756, 1.0
      %v5798 = vrcp.pop %v5757
      %v5799 = vmul.f32 1.0, %v5798
      %v5800 = vrcp.pop %v5758
      %v5801 = vmul.f32 1.0, %v5800
      %v5802 = vrcp.pop %v5759
      %v5803 = vmul.f32 1.0, %v5802
      %v5804 = vrcp.pop %v5760
      %v5805 = vmul.f32 1.0, %v5804
      %v5806 = vrcp.pop %v5761
      %v5807 = vmul.f32 1.0, %v5806
      %v5808 = vrcp.pop %v5762
      %v5809 = vmul.f32 1.0, %v5808
      %v5810 = vrcp.pop %v5763
      %v5811 = vmul.f32 1.0, %v5810
      %v5812 = vrcp.pop %v5764
      %v5813 = vmul.f32 1.0, %v5812
      %v5814 = vrcp.pop %v5765
      %v5815 = vmul.f32 1.0, %v5814
      %v5816 = vrcp.pop %v5766
      %v5817 = vmul.f32 1.0, %v5816
      %v5818 = vrcp.pop %v5767
      %v5819 = vmul.f32 1.0, %v5818
      %v5820 = vrcp.pop %v5768
      %v5821 = vmul.f32 1.0, %v5820
      %v5822 = vrcp.pop %v5769
      %v5823 = vmul.f32 1.0, %v5822
      %v5824 = vrcp.pop %v5770
      %v5825 = vmul.f32 1.0, %v5824
      %v5826 = vrcp.pop %v5771
      %v5827 = vmul.f32 1.0, %v5826
      %v5828 = vrcp.pop %v5772
      %v5829 = vmul.f32 1.0, %v5828
      %v5830 = vrcp.pop %v5773
      %v5831 = vmul.f32 1.0, %v5830
      %v5832 = vrcp.pop %v5774
      %v5833 = vmul.f32 1.0, %v5832
      %v5834 = vrcp.pop %v5775
      %v5835 = vmul.f32 1.0, %v5834
      %v5836 = vrcp.pop %v5776
      %v5837 = vmul.f32 1.0, %v5836
      %v5838 = vrcp.pop %v5777
      %v5839 = vmul.f32 1.0, %v5838
      %v5840 = vrcp.pop %v5778
      %v5841 = vmul.f32 1.0, %v5840
      %v5842 = vrcp.pop %v5779
      %v5843 = vmul.f32 1.0, %v5842
      %v5844 = vrcp.pop %v5780
      %v5845 = vmul.f32 1.0, %v5844
      %v5846 = vrcp.pop %v5781
      %v5847 = vmul.f32 1.0, %v5846
      %v5848 = vrcp.pop %v5782
      %v5849 = vmul.f32 1.0, %v5848
      %v5850 = vrcp.pop %v5783
      %v5851 = vmul.f32 1.0, %v5850
      %v5852 = vrcp.pop %v5784
      %v5853 = vmul.f32 1.0, %v5852
      %v5854 = vrcp.pop %v5785
      %v5855 = vmul.f32 1.0, %v5854
      %v5856 = vrcp.pop %v5786
      %v5857 = vmul.f32 1.0, %v5856
      %v5858 = vrcp.pop %v5787
      %v5859 = vmul.f32 1.0, %v5858
      %v5860 = vrcp.pop %v5788
      %v5861 = vmul.f32 1.0, %v5860
      %v5862 = vrcp.pop %v5789
      %v5863 = vmul.f32 1.0, %v5862
      %v5864 = vrcp.pop %v5790
      %v5865 = vmul.f32 1.0, %v5864
      %v5866 = vrcp.pop %v5791
      %v5867 = vmul.f32 1.0, %v5866
      %v5868 = vrcp.pop %v5792
      %v5869 = vmul.f32 1.0, %v5868
      %v5870 = vrcp.pop %v5793
      %v5871 = vmul.f32 1.0, %v5870
      %v5872 = vrcp.pop %v5794
      %v5873 = vmul.f32 1.0, %v5872
      %v5874 = vrcp.pop %v5795
      %v5875 = vmul.f32 1.0, %v5874
      %v5876 = vrcp.pop %v5796
      %v5877 = vmul.f32 1.0, %v5876
      %v5878 = vrcp.pop %v5797
      %v5879 = vmul.f32 1.0, %v5878
      %v5880 = vtanh.pop %v5142
      %v5881 = vtanh.pop %v5143
      %v5882 = vtanh.pop %v5144
      %v5883 = vtanh.pop %v5145
      %v5884 = vtanh.pop %v5146
      %v5885 = vtanh.pop %v5147
      %v5886 = vtanh.pop %v5148
      %v5887 = vtanh.pop %v5149
      %v5888 = vtanh.pop %v5150
      %v5889 = vtanh.pop %v5151
      %v5890 = vtanh.pop %v5152
      %v5891 = vtanh.pop %v5153
      %v5892 = vtanh.pop %v5154
      %v5893 = vtanh.pop %v5155
      %v5894 = vtanh.pop %v5156
      %v5895 = vtanh.pop %v5157
      %v5896 = vtanh.pop %v5158
      %v5897 = vtanh.pop %v5159
      %v5898 = vtanh.pop %v5160
      %v5899 = vtanh.pop %v5161
      %v5900 = vtanh.pop %v5162
      %v5901 = vtanh.pop %v5163
      %v5902 = vtanh.pop %v5164
      %v5903 = vtanh.pop %v5165
      %v5904 = vtanh.pop %v5166
      %v5905 = vtanh.pop %v5167
      %v5906 = vtanh.pop %v5168
      %v5907 = vtanh.pop %v5169
      %v5908 = vtanh.pop %v5170
      %v5909 = vtanh.pop %v5171
      %v5910 = vtanh.pop %v5172
      %v5911 = vtanh.pop %v5173
      %v5912 = vtanh.pop %v5174
      %v5913 = vtanh.pop %v5175
      %v5914 = vtanh.pop %v5176
      %v5915 = vtanh.pop %v5177
      %v5916 = vtanh.pop %v5178
      %v5917 = vtanh.pop %v5179
      %v5918 = vtanh.pop %v5180
      %v5919 = vtanh.pop %v5181
      %v5920 = vtanh.pop %v5182
      %5962 = vrot.lane.b32.xlu0 %v5880, 64
      %v5963 = vpop.permute.xlu0 %5962
      %5964 = vrot.lane.b32.xlu0 %v5881, 64
      %v5965 = vpop.permute.xlu0 %5964
      %5966 = vrot.lane.b32.xlu0 %v5882, 64
      %v5967 = vpop.permute.xlu0 %5966
      %5968 = vrot.lane.b32.xlu0 %v5883, 64
      %v5969 = vpop.permute.xlu0 %5968
      %5970 = vrot.lane.b32.xlu0 %v5884, 64
      %v5971 = vpop.permute.xlu0 %5970
      %5972 = vrot.lane.b32.xlu0 %v5885, 64
      %v5973 = vpop.permute.xlu0 %5972
      %5974 = vrot.lane.b32.xlu0 %v5886, 64
      %v5975 = vpop.permute.xlu0 %5974
      %5976 = vrot.lane.b32.xlu0 %v5887, 64
      %v5977 = vpop.permute.xlu0 %5976
      %5978 = vrot.lane.b32.xlu0 %v5888, 64
      %v5979 = vpop.permute.xlu0 %5978
      %5980 = vrot.lane.b32.xlu0 %v5889, 64
      %v5981 = vpop.permute.xlu0 %5980
      %5982 = vrot.lane.b32.xlu0 %v5890, 64
      %v5983 = vpop.permute.xlu0 %5982
      %5984 = vrot.lane.b32.xlu0 %v5891, 64
      %v5985 = vpop.permute.xlu0 %5984
      %5986 = vrot.lane.b32.xlu0 %v5892, 64
      %v5987 = vpop.permute.xlu0 %5986
      %5988 = vrot.lane.b32.xlu0 %v5893, 64
      %v5989 = vpop.permute.xlu0 %5988
      %5990 = vrot.lane.b32.xlu0 %v5894, 64
      %v5991 = vpop.permute.xlu0 %5990
      %5992 = vrot.lane.b32.xlu0 %v5895, 64
      %v5993 = vpop.permute.xlu0 %5992
      %5994 = vrot.lane.b32.xlu0 %v5896, 64
      %v5995 = vpop.permute.xlu0 %5994
      %5996 = vrot.lane.b32.xlu0 %v5897, 64
      %v5997 = vpop.permute.xlu0 %5996
      %5998 = vrot.lane.b32.xlu0 %v5898, 64
      %v5999 = vpop.permute.xlu0 %5998
      %6000 = vrot.lane.b32.xlu0 %v5899, 64
      %v6001 = vpop.permute.xlu0 %6000
      %6002 = vrot.lane.b32.xlu0 %v5900, 64
      %v6003 = vpop.permute.xlu0 %6002
      %6004 = vrot.lane.b32.xlu0 %v5901, 64
      %v6005 = vpop.permute.xlu0 %6004
      %6006 = vrot.lane.b32.xlu0 %v5902, 64
      %v6007 = vpop.permute.xlu0 %6006
      %6008 = vrot.lane.b32.xlu0 %v5903, 64
      %v6009 = vpop.permute.xlu0 %6008
      %6010 = vrot.lane.b32.xlu0 %v5904, 64
      %v6011 = vpop.permute.xlu0 %6010
      %6012 = vrot.lane.b32.xlu0 %v5905, 64
      %v6013 = vpop.permute.xlu0 %6012
      %6014 = vrot.lane.b32.xlu0 %v5906, 64
      %v6015 = vpop.permute.xlu0 %6014
      %6016 = vrot.lane.b32.xlu0 %v5907, 64
      %v6017 = vpop.permute.xlu0 %6016
      %6018 = vrot.lane.b32.xlu0 %v5908, 64
      %v6019 = vpop.permute.xlu0 %6018
      %6020 = vrot.lane.b32.xlu0 %v5909, 64
      %v6021 = vpop.permute.xlu0 %6020
      %6022 = vrot.lane.b32.xlu0 %v5910, 64
      %v6023 = vpop.permute.xlu0 %6022
      %6024 = vrot.lane.b32.xlu0 %v5911, 64
      %v6025 = vpop.permute.xlu0 %6024
      %6026 = vrot.lane.b32.xlu0 %v5912, 64
      %v6027 = vpop.permute.xlu0 %6026
      %6028 = vrot.lane.b32.xlu0 %v5913, 64
      %v6029 = vpop.permute.xlu0 %6028
      %6030 = vrot.lane.b32.xlu0 %v5914, 64
      %v6031 = vpop.permute.xlu0 %6030
      %6032 = vrot.lane.b32.xlu0 %v5915, 64
      %v6033 = vpop.permute.xlu0 %6032
      %6034 = vrot.lane.b32.xlu0 %v5916, 64
      %v6035 = vpop.permute.xlu0 %6034
      %6036 = vrot.lane.b32.xlu0 %v5917, 64
      %v6037 = vpop.permute.xlu0 %6036
      %6038 = vrot.lane.b32.xlu0 %v5918, 64
      %v6039 = vpop.permute.xlu0 %6038
      %6040 = vrot.lane.b32.xlu0 %v5919, 64
      %v6041 = vpop.permute.xlu0 %6040
      %6042 = vrot.lane.b32.xlu0 %v5920, 64
      %v6043 = vpop.permute.xlu0 %6042
      %v6085 = vmul.f32 %v5799, %v5963
      %v6086 = vmul.f32 %v5801, %v5965
      %v6087 = vmul.f32 %v5803, %v5967
      %v6088 = vmul.f32 %v5805, %v5969
      %v6089 = vmul.f32 %v5807, %v5971
      %v6090 = vmul.f32 %v5809, %v5973
      %v6091 = vmul.f32 %v5811, %v5975
      %v6092 = vmul.f32 %v5813, %v5977
      %v6093 = vmul.f32 %v5815, %v5979
      %v6094 = vmul.f32 %v5817, %v5981
      %v6095 = vmul.f32 %v5819, %v5983
      %v6096 = vmul.f32 %v5821, %v5985
      %v6097 = vmul.f32 %v5823, %v5987
      %v6098 = vmul.f32 %v5825, %v5989
      %v6099 = vmul.f32 %v5827, %v5991
      %v6100 = vmul.f32 %v5829, %v5993
      %v6101 = vmul.f32 %v5831, %v5995
      %v6102 = vmul.f32 %v5833, %v5997
      %v6103 = vmul.f32 %v5835, %v5999
      %v6104 = vmul.f32 %v5837, %v6001
      %v6105 = vmul.f32 %v5839, %v6003
      %v6106 = vmul.f32 %v5841, %v6005
      %v6107 = vmul.f32 %v5843, %v6007
      %v6108 = vmul.f32 %v5845, %v6009
      %v6109 = vmul.f32 %v5847, %v6011
      %v6110 = vmul.f32 %v5849, %v6013
      %v6111 = vmul.f32 %v5851, %v6015
      %v6112 = vmul.f32 %v5853, %v6017
      %v6113 = vmul.f32 %v5855, %v6019
      %v6114 = vmul.f32 %v5857, %v6021
      %v6115 = vmul.f32 %v5859, %v6023
      %v6116 = vmul.f32 %v5861, %v6025
      %v6117 = vmul.f32 %v5863, %v6027
      %v6118 = vmul.f32 %v5865, %v6029
      %v6119 = vmul.f32 %v5867, %v6031
      %v6120 = vmul.f32 %v5869, %v6033
      %v6121 = vmul.f32 %v5871, %v6035
      %v6122 = vmul.f32 %v5873, %v6037
      %v6123 = vmul.f32 %v5875, %v6039
      %v6124 = vmul.f32 %v5877, %v6041
      %v6125 = vmul.f32 %v5879, %v6043
      %v6126 = vld [vmem:[%s8] sm:$0xff]
      %v6127 = vld [vmem:[%s8 + $0x8] sm:$0xff]
      %v6128 = vld [vmem:[%s8 + $0x10] sm:$0xff]
      %v6129 = vld [vmem:[%s8 + $0x18] sm:$0xff]
      %v6130 = vld [vmem:[%s8 + $0x20] sm:$0xff]
      %v6131 = vld [vmem:[%s8 + $0x28] sm:$0xff]
      %v6132 = vld [vmem:[%s8 + $0x30] sm:$0xff]
      %v6133 = vld [vmem:[%s8 + $0x38] sm:$0xff]
      %v6134 = vld [vmem:[%s8 + $0x40] sm:$0xff]
      %v6135 = vld [vmem:[%s8 + $0x48] sm:$0xff]
      %v6136 = vld [vmem:[%s8 + $0x50] sm:$0xff]
      %v6137 = vld [vmem:[%s8 + $0x58] sm:$0xff]
      %v6138 = vld [vmem:[%s8 + $0x60] sm:$0xff]
      %v6139 = vld [vmem:[%s8 + $0x68] sm:$0xff]
      %v6140 = vld [vmem:[%s8 + $0x70] sm:$0xff]
      %v6141 = vld [vmem:[%s8 + $0x78] sm:$0xff]
      %v6142 = vld [vmem:[%s8 + $0x80] sm:$0xff]
      %v6143 = vld [vmem:[%s8 + $0x88] sm:$0xff]
      %v6144 = vld [vmem:[%s8 + $0x90] sm:$0xff]
      %v6145 = vld [vmem:[%s8 + $0x98] sm:$0xff]
      %v6146 = vld [vmem:[%s8 + $0xa0] sm:$0xff]
      %v6147 = vld [vmem:[%s8 + $0xa8] sm:$0xff]
      %v6148 = vld [vmem:[%s8 + $0xb0] sm:$0xff]
      %v6149 = vld [vmem:[%s8 + $0xb8] sm:$0xff]
      %v6150 = vld [vmem:[%s8 + $0xc0] sm:$0xff]
      %v6151 = vld [vmem:[%s8 + $0xc8] sm:$0xff]
      %v6152 = vld [vmem:[%s8 + $0xd0] sm:$0xff]
      %v6153 = vld [vmem:[%s8 + $0xd8] sm:$0xff]
      %v6154 = vld [vmem:[%s8 + $0xe0] sm:$0xff]
      %v6155 = vld [vmem:[%s8 + $0xe8] sm:$0xff]
      %v6156 = vld [vmem:[%s8 + $0xf0] sm:$0xff]
      %v6157 = vld [vmem:[%s8 + $0xf8] sm:$0xff]
      %v6158 = vld [vmem:[%s8 + $0x100] sm:$0xff]
      %v6159 = vld [vmem:[%s8 + $0x108] sm:$0xff]
      %v6160 = vld [vmem:[%s8 + $0x110] sm:$0xff]
      %v6161 = vld [vmem:[%s8 + $0x118] sm:$0xff]
      %v6162 = vld [vmem:[%s8 + $0x120] sm:$0xff]
      %v6163 = vld [vmem:[%s8 + $0x128] sm:$0xff]
      %v6164 = vld [vmem:[%s8 + $0x130] sm:$0xff]
      %v6165 = vld [vmem:[%s8 + $0x138] sm:$0xff]
      %v6166 = vld [vmem:[%s8 + $0x140] sm:$0xf]
      %6168 = vset.pattern.permute.xlu0 0
      %6169 = vperm.xlu0 %6168, %v6126
      %v6170 = vpop.permute.xlu0 %6169
      %6173 = vset.pattern.permute.xlu0 0
      %6174 = vperm.xlu0 %6173, %v6127
      %v6175 = vpop.permute.xlu0 %6174
      %6178 = vset.pattern.permute.xlu0 0
      %6179 = vperm.xlu0 %6178, %v6128
      %v6180 = vpop.permute.xlu0 %6179
      %6183 = vset.pattern.permute.xlu0 0
      %6184 = vperm.xlu0 %6183, %v6129
      %v6185 = vpop.permute.xlu0 %6184
      %6188 = vset.pattern.permute.xlu0 0
      %6189 = vperm.xlu0 %6188, %v6130
      %v6190 = vpop.permute.xlu0 %6189
      %6193 = vset.pattern.permute.xlu0 0
      %6194 = vperm.xlu0 %6193, %v6131
      %v6195 = vpop.permute.xlu0 %6194
      %6198 = vset.pattern.permute.xlu0 0
      %6199 = vperm.xlu0 %6198, %v6132
      %v6200 = vpop.permute.xlu0 %6199
      %6203 = vset.pattern.permute.xlu0 0
      %6204 = vperm.xlu0 %6203, %v6133
      %v6205 = vpop.permute.xlu0 %6204
      %6208 = vset.pattern.permute.xlu0 0
      %6209 = vperm.xlu0 %6208, %v6134
      %v6210 = vpop.permute.xlu0 %6209
      %6213 = vset.pattern.permute.xlu0 0
      %6214 = vperm.xlu0 %6213, %v6135
      %v6215 = vpop.permute.xlu0 %6214
      %6218 = vset.pattern.permute.xlu0 0
      %6219 = vperm.xlu0 %6218, %v6136
      %v6220 = vpop.permute.xlu0 %6219
      %6223 = vset.pattern.permute.xlu0 0
      %6224 = vperm.xlu0 %6223, %v6137
      %v6225 = vpop.permute.xlu0 %6224
      %6228 = vset.pattern.permute.xlu0 0
      %6229 = vperm.xlu0 %6228, %v6138
      %v6230 = vpop.permute.xlu0 %6229
      %6233 = vset.pattern.permute.xlu0 0
      %6234 = vperm.xlu0 %6233, %v6139
      %v6235 = vpop.permute.xlu0 %6234
      %6238 = vset.pattern.permute.xlu0 0
      %6239 = vperm.xlu0 %6238, %v6140
      %v6240 = vpop.permute.xlu0 %6239
      %6243 = vset.pattern.permute.xlu0 0
      %6244 = vperm.xlu0 %6243, %v6141
      %v6245 = vpop.permute.xlu0 %6244
      %6248 = vset.pattern.permute.xlu0 0
      %6249 = vperm.xlu0 %6248, %v6142
      %v6250 = vpop.permute.xlu0 %6249
      %6253 = vset.pattern.permute.xlu0 0
      %6254 = vperm.xlu0 %6253, %v6143
      %v6255 = vpop.permute.xlu0 %6254
      %6258 = vset.pattern.permute.xlu0 0
      %6259 = vperm.xlu0 %6258, %v6144
      %v6260 = vpop.permute.xlu0 %6259
      %6263 = vset.pattern.permute.xlu0 0
      %6264 = vperm.xlu0 %6263, %v6145
      %v6265 = vpop.permute.xlu0 %6264
      %6268 = vset.pattern.permute.xlu0 0
      %6269 = vperm.xlu0 %6268, %v6146
      %v6270 = vpop.permute.xlu0 %6269
      %6273 = vset.pattern.permute.xlu0 0
      %6274 = vperm.xlu0 %6273, %v6147
      %v6275 = vpop.permute.xlu0 %6274
      %6278 = vset.pattern.permute.xlu0 0
      %6279 = vperm.xlu0 %6278, %v6148
      %v6280 = vpop.permute.xlu0 %6279
      %6283 = vset.pattern.permute.xlu0 0
      %6284 = vperm.xlu0 %6283, %v6149
      %v6285 = vpop.permute.xlu0 %6284
      %6288 = vset.pattern.permute.xlu0 0
      %6289 = vperm.xlu0 %6288, %v6150
      %v6290 = vpop.permute.xlu0 %6289
      %6293 = vset.pattern.permute.xlu0 0
      %6294 = vperm.xlu0 %6293, %v6151
      %v6295 = vpop.permute.xlu0 %6294
      %6298 = vset.pattern.permute.xlu0 0
      %6299 = vperm.xlu0 %6298, %v6152
      %v6300 = vpop.permute.xlu0 %6299
      %6303 = vset.pattern.permute.xlu0 0
      %6304 = vperm.xlu0 %6303, %v6153
      %v6305 = vpop.permute.xlu0 %6304
      %6308 = vset.pattern.permute.xlu0 0
      %6309 = vperm.xlu0 %6308, %v6154
      %v6310 = vpop.permute.xlu0 %6309
      %6313 = vset.pattern.permute.xlu0 0
      %6314 = vperm.xlu0 %6313, %v6155
      %v6315 = vpop.permute.xlu0 %6314
      %6318 = vset.pattern.permute.xlu0 0
      %6319 = vperm.xlu0 %6318, %v6156
      %v6320 = vpop.permute.xlu0 %6319
      %6323 = vset.pattern.permute.xlu0 0
      %6324 = vperm.xlu0 %6323, %v6157
      %v6325 = vpop.permute.xlu0 %6324
      %6328 = vset.pattern.permute.xlu0 0
      %6329 = vperm.xlu0 %6328, %v6158
      %v6330 = vpop.permute.xlu0 %6329
      %6333 = vset.pattern.permute.xlu0 0
      %6334 = vperm.xlu0 %6333, %v6159
      %v6335 = vpop.permute.xlu0 %6334
      %6338 = vset.pattern.permute.xlu0 0
      %6339 = vperm.xlu0 %6338, %v6160
      %v6340 = vpop.permute.xlu0 %6339
      %6343 = vset.pattern.permute.xlu0 0
      %6344 = vperm.xlu0 %6343, %v6161
      %v6345 = vpop.permute.xlu0 %6344
      %6348 = vset.pattern.permute.xlu0 0
      %6349 = vperm.xlu0 %6348, %v6162
      %v6350 = vpop.permute.xlu0 %6349
      %6353 = vset.pattern.permute.xlu0 0
      %6354 = vperm.xlu0 %6353, %v6163
      %v6355 = vpop.permute.xlu0 %6354
      %6358 = vset.pattern.permute.xlu0 0
      %6359 = vperm.xlu0 %6358, %v6164
      %v6360 = vpop.permute.xlu0 %6359
      %6363 = vset.pattern.permute.xlu0 0
      %6364 = vperm.xlu0 %6363, %v6165
      %v6365 = vpop.permute.xlu0 %6364
      %6368 = vset.pattern.permute.xlu0 0
      %6369 = vperm.xlu0 %6368, %v6166
      %v6370 = vpop.permute.xlu0 %6369
      %v6372 = vmul.f32 %v6085, %v6170
      %v6373 = vmul.f32 %v6086, %v6175
      %v6374 = vmul.f32 %v6087, %v6180
      %v6375 = vmul.f32 %v6088, %v6185
      %v6376 = vmul.f32 %v6089, %v6190
      %v6377 = vmul.f32 %v6090, %v6195
      %v6378 = vmul.f32 %v6091, %v6200
      %v6379 = vmul.f32 %v6092, %v6205
      %v6380 = vmul.f32 %v6093, %v6210
      %v6381 = vmul.f32 %v6094, %v6215
      %v6382 = vmul.f32 %v6095, %v6220
      %v6383 = vmul.f32 %v6096, %v6225
      %v6384 = vmul.f32 %v6097, %v6230
      %v6385 = vmul.f32 %v6098, %v6235
      %v6386 = vmul.f32 %v6099, %v6240
      %v6387 = vmul.f32 %v6100, %v6245
      %v6388 = vmul.f32 %v6101, %v6250
      %v6389 = vmul.f32 %v6102, %v6255
      %v6390 = vmul.f32 %v6103, %v6260
      %v6391 = vmul.f32 %v6104, %v6265
      %v6392 = vmul.f32 %v6105, %v6270
      %v6393 = vmul.f32 %v6106, %v6275
      %v6394 = vmul.f32 %v6107, %v6280
      %v6395 = vmul.f32 %v6108, %v6285
      %v6396 = vmul.f32 %v6109, %v6290
      %v6397 = vmul.f32 %v6110, %v6295
      %v6398 = vmul.f32 %v6111, %v6300
      %v6399 = vmul.f32 %v6112, %v6305
      %v6400 = vmul.f32 %v6113, %v6310
      %v6401 = vmul.f32 %v6114, %v6315
      %v6402 = vmul.f32 %v6115, %v6320
      %v6403 = vmul.f32 %v6116, %v6325
      %v6404 = vmul.f32 %v6117, %v6330
      %v6405 = vmul.f32 %v6118, %v6335
      %v6406 = vmul.f32 %v6119, %v6340
      %v6407 = vmul.f32 %v6120, %v6345
      %v6408 = vmul.f32 %v6121, %v6350
      %v6409 = vmul.f32 %v6122, %v6355
      %v6410 = vmul.f32 %v6123, %v6360
      %v6411 = vmul.f32 %v6124, %v6365
      %v6412 = vmul.f32 %v6125, %v6370
      %v6413 = vmul.f32 %v5142, %v6170
      %v6414 = vmul.f32 %v5143, %v6175
      %v6415 = vmul.f32 %v5144, %v6180
      %v6416 = vmul.f32 %v5145, %v6185
      %v6417 = vmul.f32 %v5146, %v6190
      %v6418 = vmul.f32 %v5147, %v6195
      %v6419 = vmul.f32 %v5148, %v6200
      %v6420 = vmul.f32 %v5149, %v6205
      %v6421 = vmul.f32 %v5150, %v6210
      %v6422 = vmul.f32 %v5151, %v6215
      %v6423 = vmul.f32 %v5152, %v6220
      %v6424 = vmul.f32 %v5153, %v6225
      %v6425 = vmul.f32 %v5154, %v6230
      %v6426 = vmul.f32 %v5155, %v6235
      %v6427 = vmul.f32 %v5156, %v6240
      %v6428 = vmul.f32 %v5157, %v6245
      %v6429 = vmul.f32 %v5158, %v6250
      %v6430 = vmul.f32 %v5159, %v6255
      %v6431 = vmul.f32 %v5160, %v6260
      %v6432 = vmul.f32 %v5161, %v6265
      %v6433 = vmul.f32 %v5162, %v6270
      %v6434 = vmul.f32 %v5163, %v6275
      %v6435 = vmul.f32 %v5164, %v6280
      %v6436 = vmul.f32 %v5165, %v6285
      %v6437 = vmul.f32 %v5166, %v6290
      %v6438 = vmul.f32 %v5167, %v6295
      %v6439 = vmul.f32 %v5168, %v6300
      %v6440 = vmul.f32 %v5169, %v6305
      %v6441 = vmul.f32 %v5170, %v6310
      %v6442 = vmul.f32 %v5171, %v6315
      %v6443 = vmul.f32 %v5172, %v6320
      %v6444 = vmul.f32 %v5173, %v6325
      %v6445 = vmul.f32 %v5174, %v6330
      %v6446 = vmul.f32 %v5175, %v6335
      %v6447 = vmul.f32 %v5176, %v6340
      %v6448 = vmul.f32 %v5177, %v6345
      %v6449 = vmul.f32 %v5178, %v6350
      %v6450 = vmul.f32 %v5179, %v6355
      %v6451 = vmul.f32 %v5180, %v6360
      %v6452 = vmul.f32 %v5181, %v6365
      %v6453 = vmul.f32 %v5182, %v6370
      %6495 = vrot.lane.b32.xlu0 %v6372, 32
      %v6496 = vpop.permute.xlu0 %6495
      %6497 = vrot.lane.b32.xlu0 %v6373, 32
      %v6498 = vpop.permute.xlu0 %6497
      %6499 = vrot.lane.b32.xlu0 %v6374, 32
      %v6500 = vpop.permute.xlu0 %6499
      %6501 = vrot.lane.b32.xlu0 %v6375, 32
      %v6502 = vpop.permute.xlu0 %6501
      %6503 = vrot.lane.b32.xlu0 %v6376, 32
      %v6504 = vpop.permute.xlu0 %6503
      %6505 = vrot.lane.b32.xlu0 %v6377, 32
      %v6506 = vpop.permute.xlu0 %6505
      %6507 = vrot.lane.b32.xlu0 %v6378, 32
      %v6508 = vpop.permute.xlu0 %6507
      %6509 = vrot.lane.b32.xlu0 %v6379, 32
      %v6510 = vpop.permute.xlu0 %6509
      %6511 = vrot.lane.b32.xlu0 %v6380, 32
      %v6512 = vpop.permute.xlu0 %6511
      %6513 = vrot.lane.b32.xlu0 %v6381, 32
      %v6514 = vpop.permute.xlu0 %6513
      %6515 = vrot.lane.b32.xlu0 %v6382, 32
      %v6516 = vpop.permute.xlu0 %6515
      %6517 = vrot.lane.b32.xlu0 %v6383, 32
      %v6518 = vpop.permute.xlu0 %6517
      %6519 = vrot.lane.b32.xlu0 %v6384, 32
      %v6520 = vpop.permute.xlu0 %6519
      %6521 = vrot.lane.b32.xlu0 %v6385, 32
      %v6522 = vpop.permute.xlu0 %6521
      %6523 = vrot.lane.b32.xlu0 %v6386, 32
      %v6524 = vpop.permute.xlu0 %6523
      %6525 = vrot.lane.b32.xlu0 %v6387, 32
      %v6526 = vpop.permute.xlu0 %6525
      %6527 = vrot.lane.b32.xlu0 %v6388, 32
      %v6528 = vpop.permute.xlu0 %6527
      %6529 = vrot.lane.b32.xlu0 %v6389, 32
      %v6530 = vpop.permute.xlu0 %6529
      %6531 = vrot.lane.b32.xlu0 %v6390, 32
      %v6532 = vpop.permute.xlu0 %6531
      %6533 = vrot.lane.b32.xlu0 %v6391, 32
      %v6534 = vpop.permute.xlu0 %6533
      %6535 = vrot.lane.b32.xlu0 %v6392, 32
      %v6536 = vpop.permute.xlu0 %6535
      %6537 = vrot.lane.b32.xlu0 %v6393, 32
      %v6538 = vpop.permute.xlu0 %6537
      %6539 = vrot.lane.b32.xlu0 %v6394, 32
      %v6540 = vpop.permute.xlu0 %6539
      %6541 = vrot.lane.b32.xlu0 %v6395, 32
      %v6542 = vpop.permute.xlu0 %6541
      %6543 = vrot.lane.b32.xlu0 %v6396, 32
      %v6544 = vpop.permute.xlu0 %6543
      %6545 = vrot.lane.b32.xlu0 %v6397, 32
      %v6546 = vpop.permute.xlu0 %6545
      %6547 = vrot.lane.b32.xlu0 %v6398, 32
      %v6548 = vpop.permute.xlu0 %6547
      %6549 = vrot.lane.b32.xlu0 %v6399, 32
      %v6550 = vpop.permute.xlu0 %6549
      %6551 = vrot.lane.b32.xlu0 %v6400, 32
      %v6552 = vpop.permute.xlu0 %6551
      %6553 = vrot.lane.b32.xlu0 %v6401, 32
      %v6554 = vpop.permute.xlu0 %6553
      %6555 = vrot.lane.b32.xlu0 %v6402, 32
      %v6556 = vpop.permute.xlu0 %6555
      %6557 = vrot.lane.b32.xlu0 %v6403, 32
      %v6558 = vpop.permute.xlu0 %6557
      %6559 = vrot.lane.b32.xlu0 %v6404, 32
      %v6560 = vpop.permute.xlu0 %6559
      %6561 = vrot.lane.b32.xlu0 %v6405, 32
      %v6562 = vpop.permute.xlu0 %6561
      %6563 = vrot.lane.b32.xlu0 %v6406, 32
      %v6564 = vpop.permute.xlu0 %6563
      %6565 = vrot.lane.b32.xlu0 %v6407, 32
      %v6566 = vpop.permute.xlu0 %6565
      %6567 = vrot.lane.b32.xlu0 %v6408, 32
      %v6568 = vpop.permute.xlu0 %6567
      %6569 = vrot.lane.b32.xlu0 %v6409, 32
      %v6570 = vpop.permute.xlu0 %6569
      %6571 = vrot.lane.b32.xlu0 %v6410, 32
      %v6572 = vpop.permute.xlu0 %6571
      %6573 = vrot.lane.b32.xlu0 %v6411, 32
      %v6574 = vpop.permute.xlu0 %6573
      %6575 = vrot.lane.b32.xlu0 %v6412, 32
      %v6576 = vpop.permute.xlu0 %6575
      %6618 = vst.msk [vmem:[#allocation2] sm:$0xff] %vm2883, %v6496
      %6619 = vst.msk [vmem:[#allocation2 + $0x8] sm:$0xff] %vm2883, %v6498
      %6620 = vst.msk [vmem:[#allocation2 + $0x10] sm:$0xff] %vm2883, %v6500
      %6621 = vst.msk [vmem:[#allocation2 + $0x18] sm:$0xff] %vm2883, %v6502
      %6622 = vst.msk [vmem:[#allocation2 + $0x20] sm:$0xff] %vm2883, %v6504
      %6623 = vst.msk [vmem:[#allocation2 + $0x28] sm:$0xff] %vm2883, %v6506
      %6624 = vst.msk [vmem:[#allocation2 + $0x30] sm:$0xff] %vm2883, %v6508
      %6625 = vst.msk [vmem:[#allocation2 + $0x38] sm:$0xff] %vm2883, %v6510
      %6626 = vst.msk [vmem:[#allocation2 + $0x40] sm:$0xff] %vm2883, %v6512
      %6627 = vst.msk [vmem:[#allocation2 + $0x48] sm:$0xff] %vm2883, %v6514
      %6628 = vst.msk [vmem:[#allocation2 + $0x50] sm:$0xff] %vm2883, %v6516
      %6629 = vst.msk [vmem:[#allocation2 + $0x58] sm:$0xff] %vm2883, %v6518
      %6630 = vst.msk [vmem:[#allocation2 + $0x60] sm:$0xff] %vm2883, %v6520
      %6631 = vst.msk [vmem:[#allocation2 + $0x68] sm:$0xff] %vm2883, %v6522
      %6632 = vst.msk [vmem:[#allocation2 + $0x70] sm:$0xff] %vm2883, %v6524
      %6633 = vst.msk [vmem:[#allocation2 + $0x78] sm:$0xff] %vm2883, %v6526
      %6634 = vst.msk [vmem:[#allocation2 + $0x80] sm:$0xff] %vm2883, %v6528
      %6635 = vst.msk [vmem:[#allocation2 + $0x88] sm:$0xff] %vm2883, %v6530
      %6636 = vst.msk [vmem:[#allocation2 + $0x90] sm:$0xff] %vm2883, %v6532
      %6637 = vst.msk [vmem:[#allocation2 + $0x98] sm:$0xff] %vm2883, %v6534
      %6638 = vst.msk [vmem:[#allocation2 + $0xa0] sm:$0xff] %vm2883, %v6536
      %6639 = vst.msk [vmem:[#allocation2 + $0xa8] sm:$0xff] %vm2883, %v6538
      %6640 = vst.msk [vmem:[#allocation2 + $0xb0] sm:$0xff] %vm2883, %v6540
      %6641 = vst.msk [vmem:[#allocation2 + $0xb8] sm:$0xff] %vm2883, %v6542
      %6642 = vst.msk [vmem:[#allocation2 + $0xc0] sm:$0xff] %vm2883, %v6544
      %6643 = vst.msk [vmem:[#allocation2 + $0xc8] sm:$0xff] %vm2883, %v6546
      %6644 = vst.msk [vmem:[#allocation2 + $0xd0] sm:$0xff] %vm2883, %v6548
      %6645 = vst.msk [vmem:[#allocation2 + $0xd8] sm:$0xff] %vm2883, %v6550
      %6646 = vst.msk [vmem:[#allocation2 + $0xe0] sm:$0xff] %vm2883, %v6552
      %6647 = vst.msk [vmem:[#allocation2 + $0xe8] sm:$0xff] %vm2883, %v6554
      %6648 = vst.msk [vmem:[#allocation2 + $0xf0] sm:$0xff] %vm2883, %v6556
      %6649 = vst.msk [vmem:[#allocation2 + $0xf8] sm:$0xff] %vm2883, %v6558
      %6650 = vst.msk [vmem:[#allocation2 + $0x100] sm:$0xff] %vm2883, %v6560
      %6651 = vst.msk [vmem:[#allocation2 + $0x108] sm:$0xff] %vm2883, %v6562
      %6652 = vst.msk [vmem:[#allocation2 + $0x110] sm:$0xff] %vm2883, %v6564
      %6653 = vst.msk [vmem:[#allocation2 + $0x118] sm:$0xff] %vm2883, %v6566
      %6654 = vst.msk [vmem:[#allocation2 + $0x120] sm:$0xff] %vm2883, %v6568
      %6655 = vst.msk [vmem:[#allocation2 + $0x128] sm:$0xff] %vm2883, %v6570
      %6656 = vst.msk [vmem:[#allocation2 + $0x130] sm:$0xff] %vm2883, %v6572
      %6657 = vst.msk [vmem:[#allocation2 + $0x138] sm:$0xff] %vm2883, %v6574
      %vm6658 = vcmask 257024
      %6659 = vst.msk [vmem:[#allocation2 + $0x140] sm:$0xf] %vm6658, %v6576
      %6701 = vrot.lane.b32.xlu0 %v6413, 96
      %v6702 = vpop.permute.xlu0 %6701
      %6703 = vrot.lane.b32.xlu0 %v6414, 96
      %v6704 = vpop.permute.xlu0 %6703
      %6705 = vrot.lane.b32.xlu0 %v6415, 96
      %v6706 = vpop.permute.xlu0 %6705
      %6707 = vrot.lane.b32.xlu0 %v6416, 96
      %v6708 = vpop.permute.xlu0 %6707
      %6709 = vrot.lane.b32.xlu0 %v6417, 96
      %v6710 = vpop.permute.xlu0 %6709
      %6711 = vrot.lane.b32.xlu0 %v6418, 96
      %v6712 = vpop.permute.xlu0 %6711
      %6713 = vrot.lane.b32.xlu0 %v6419, 96
      %v6714 = vpop.permute.xlu0 %6713
      %6715 = vrot.lane.b32.xlu0 %v6420, 96
      %v6716 = vpop.permute.xlu0 %6715
      %6717 = vrot.lane.b32.xlu0 %v6421, 96
      %v6718 = vpop.permute.xlu0 %6717
      %6719 = vrot.lane.b32.xlu0 %v6422, 96
      %v6720 = vpop.permute.xlu0 %6719
      %6721 = vrot.lane.b32.xlu0 %v6423, 96
      %v6722 = vpop.permute.xlu0 %6721
      %6723 = vrot.lane.b32.xlu0 %v6424, 96
      %v6724 = vpop.permute.xlu0 %6723
      %6725 = vrot.lane.b32.xlu0 %v6425, 96
      %v6726 = vpop.permute.xlu0 %6725
      %6727 = vrot.lane.b32.xlu0 %v6426, 96
      %v6728 = vpop.permute.xlu0 %6727
      %6729 = vrot.lane.b32.xlu0 %v6427, 96
      %v6730 = vpop.permute.xlu0 %6729
      %6731 = vrot.lane.b32.xlu0 %v6428, 96
      %v6732 = vpop.permute.xlu0 %6731
      %6733 = vrot.lane.b32.xlu0 %v6429, 96
      %v6734 = vpop.permute.xlu0 %6733
      %6735 = vrot.lane.b32.xlu0 %v6430, 96
      %v6736 = vpop.permute.xlu0 %6735
      %6737 = vrot.lane.b32.xlu0 %v6431, 96
      %v6738 = vpop.permute.xlu0 %6737
      %6739 = vrot.lane.b32.xlu0 %v6432, 96
      %v6740 = vpop.permute.xlu0 %6739
      %6741 = vrot.lane.b32.xlu0 %v6433, 96
      %v6742 = vpop.permute.xlu0 %6741
      %6743 = vrot.lane.b32.xlu0 %v6434, 96
      %v6744 = vpop.permute.xlu0 %6743
      %6745 = vrot.lane.b32.xlu0 %v6435, 96
      %v6746 = vpop.permute.xlu0 %6745
      %6747 = vrot.lane.b32.xlu0 %v6436, 96
      %v6748 = vpop.permute.xlu0 %6747
      %6749 = vrot.lane.b32.xlu0 %v6437, 96
      %v6750 = vpop.permute.xlu0 %6749
      %6751 = vrot.lane.b32.xlu0 %v6438, 96
      %v6752 = vpop.permute.xlu0 %6751
      %6753 = vrot.lane.b32.xlu0 %v6439, 96
      %v6754 = vpop.permute.xlu0 %6753
      %6755 = vrot.lane.b32.xlu0 %v6440, 96
      %v6756 = vpop.permute.xlu0 %6755
      %6757 = vrot.lane.b32.xlu0 %v6441, 96
      %v6758 = vpop.permute.xlu0 %6757
      %6759 = vrot.lane.b32.xlu0 %v6442, 96
      %v6760 = vpop.permute.xlu0 %6759
      %6761 = vrot.lane.b32.xlu0 %v6443, 96
      %v6762 = vpop.permute.xlu0 %6761
      %6763 = vrot.lane.b32.xlu0 %v6444, 96
      %v6764 = vpop.permute.xlu0 %6763
      %6765 = vrot.lane.b32.xlu0 %v6445, 96
      %v6766 = vpop.permute.xlu0 %6765
      %6767 = vrot.lane.b32.xlu0 %v6446, 96
      %v6768 = vpop.permute.xlu0 %6767
      %6769 = vrot.lane.b32.xlu0 %v6447, 96
      %v6770 = vpop.permute.xlu0 %6769
      %6771 = vrot.lane.b32.xlu0 %v6448, 96
      %v6772 = vpop.permute.xlu0 %6771
      %6773 = vrot.lane.b32.xlu0 %v6449, 96
      %v6774 = vpop.permute.xlu0 %6773
      %6775 = vrot.lane.b32.xlu0 %v6450, 96
      %v6776 = vpop.permute.xlu0 %6775
      %6777 = vrot.lane.b32.xlu0 %v6451, 96
      %v6778 = vpop.permute.xlu0 %6777
      %6779 = vrot.lane.b32.xlu0 %v6452, 96
      %v6780 = vpop.permute.xlu0 %6779
      %6781 = vrot.lane.b32.xlu0 %v6453, 96
      %v6782 = vpop.permute.xlu0 %6781
      %6824 = vst.msk [vmem:[#allocation3] sm:$0xff] %vm2883, %v6702
      %6825 = vst.msk [vmem:[#allocation3 + $0x8] sm:$0xff] %vm2883, %v6704
      %6826 = vst.msk [vmem:[#allocation3 + $0x10] sm:$0xff] %vm2883, %v6706
      %6827 = vst.msk [vmem:[#allocation3 + $0x18] sm:$0xff] %vm2883, %v6708
      %6828 = vst.msk [vmem:[#allocation3 + $0x20] sm:$0xff] %vm2883, %v6710
      %6829 = vst.msk [vmem:[#allocation3 + $0x28] sm:$0xff] %vm2883, %v6712
      %6830 = vst.msk [vmem:[#allocation3 + $0x30] sm:$0xff] %vm2883, %v6714
      %6831 = vst.msk [vmem:[#allocation3 + $0x38] sm:$0xff] %vm2883, %v6716
      %6832 = vst.msk [vmem:[#allocation3 + $0x40] sm:$0xff] %vm2883, %v6718
      %6833 = vst.msk [vmem:[#allocation3 + $0x48] sm:$0xff] %vm2883, %v6720
      %6834 = vst.msk [vmem:[#allocation3 + $0x50] sm:$0xff] %vm2883, %v6722
      %6835 = vst.msk [vmem:[#allocation3 + $0x58] sm:$0xff] %vm2883, %v6724
      %6836 = vst.msk [vmem:[#allocation3 + $0x60] sm:$0xff] %vm2883, %v6726
      %6837 = vst.msk [vmem:[#allocation3 + $0x68] sm:$0xff] %vm2883, %v6728
      %6838 = vst.msk [vmem:[#allocation3 + $0x70] sm:$0xff] %vm2883, %v6730
      %6839 = vst.msk [vmem:[#allocation3 + $0x78] sm:$0xff] %vm2883, %v6732
      %6840 = vst.msk [vmem:[#allocation3 + $0x80] sm:$0xff] %vm2883, %v6734
      %6841 = vst.msk [vmem:[#allocation3 + $0x88] sm:$0xff] %vm2883, %v6736
      %6842 = vst.msk [vmem:[#allocation3 + $0x90] sm:$0xff] %vm2883, %v6738
      %6843 = vst.msk [vmem:[#allocation3 + $0x98] sm:$0xff] %vm2883, %v6740
      %6844 = vst.msk [vmem:[#allocation3 + $0xa0] sm:$0xff] %vm2883, %v6742
      %6845 = vst.msk [vmem:[#allocation3 + $0xa8] sm:$0xff] %vm2883, %v6744
      %6846 = vst.msk [vmem:[#allocation3 + $0xb0] sm:$0xff] %vm2883, %v6746
      %6847 = vst.msk [vmem:[#allocation3 + $0xb8] sm:$0xff] %vm2883, %v6748
      %6848 = vst.msk [vmem:[#allocation3 + $0xc0] sm:$0xff] %vm2883, %v6750
      %6849 = vst.msk [vmem:[#allocation3 + $0xc8] sm:$0xff] %vm2883, %v6752
      %6850 = vst.msk [vmem:[#allocation3 + $0xd0] sm:$0xff] %vm2883, %v6754
      %6851 = vst.msk [vmem:[#allocation3 + $0xd8] sm:$0xff] %vm2883, %v6756
      %6852 = vst.msk [vmem:[#allocation3 + $0xe0] sm:$0xff] %vm2883, %v6758
      %6853 = vst.msk [vmem:[#allocation3 + $0xe8] sm:$0xff] %vm2883, %v6760
      %6854 = vst.msk [vmem:[#allocation3 + $0xf0] sm:$0xff] %vm2883, %v6762
      %6855 = vst.msk [vmem:[#allocation3 + $0xf8] sm:$0xff] %vm2883, %v6764
      %6856 = vst.msk [vmem:[#allocation3 + $0x100] sm:$0xff] %vm2883, %v6766
      %6857 = vst.msk [vmem:[#allocation3 + $0x108] sm:$0xff] %vm2883, %v6768
      %6858 = vst.msk [vmem:[#allocation3 + $0x110] sm:$0xff] %vm2883, %v6770
      %6859 = vst.msk [vmem:[#allocation3 + $0x118] sm:$0xff] %vm2883, %v6772
      %6860 = vst.msk [vmem:[#allocation3 + $0x120] sm:$0xff] %vm2883, %v6774
      %6861 = vst.msk [vmem:[#allocation3 + $0x128] sm:$0xff] %vm2883, %v6776
      %6862 = vst.msk [vmem:[#allocation3 + $0x130] sm:$0xff] %vm2883, %v6778
      %6863 = vst.msk [vmem:[#allocation3 + $0x138] sm:$0xff] %vm2883, %v6780
      %6864 = vst.msk [vmem:[#allocation3 + $0x140] sm:$0xf] %vm6658, %v6782
      %6865 = vst.msk [vmem:[%s443] sm:$0xff] %vm2883, %v6496
      %6866 = vst.msk [vmem:[%s443 + $0x8] sm:$0xff] %vm2883, %v6498
      %6867 = vst.msk [vmem:[%s443 + $0x10] sm:$0xff] %vm2883, %v6500
      %6868 = vst.msk [vmem:[%s443 + $0x18] sm:$0xff] %vm2883, %v6502
      %6869 = vst.msk [vmem:[%s443 + $0x20] sm:$0xff] %vm2883, %v6504
      %6870 = vst.msk [vmem:[%s443 + $0x28] sm:$0xff] %vm2883, %v6506
      %6871 = vst.msk [vmem:[%s443 + $0x30] sm:$0xff] %vm2883, %v6508
      %6872 = vst.msk [vmem:[%s443 + $0x38] sm:$0xff] %vm2883, %v6510
      %6873 = vst.msk [vmem:[%s443 + $0x40] sm:$0xff] %vm2883, %v6512
      %6874 = vst.msk [vmem:[%s443 + $0x48] sm:$0xff] %vm2883, %v6514
      %6875 = vst.msk [vmem:[%s443 + $0x50] sm:$0xff] %vm2883, %v6516
      %6876 = vst.msk [vmem:[%s443 + $0x58] sm:$0xff] %vm2883, %v6518
      %6877 = vst.msk [vmem:[%s443 + $0x60] sm:$0xff] %vm2883, %v6520
      %6878 = vst.msk [vmem:[%s443 + $0x68] sm:$0xff] %vm2883, %v6522
      %6879 = vst.msk [vmem:[%s443 + $0x70] sm:$0xff] %vm2883, %v6524
      %6880 = vst.msk [vmem:[%s443 + $0x78] sm:$0xff] %vm2883, %v6526
      %6881 = vst.msk [vmem:[%s443 + $0x80] sm:$0xff] %vm2883, %v6528
      %6882 = vst.msk [vmem:[%s443 + $0x88] sm:$0xff] %vm2883, %v6530
      %6883 = vst.msk [vmem:[%s443 + $0x90] sm:$0xff] %vm2883, %v6532
      %6884 = vst.msk [vmem:[%s443 + $0x98] sm:$0xff] %vm2883, %v6534
      %6885 = vst.msk [vmem:[%s443 + $0xa0] sm:$0xff] %vm2883, %v6536
      %6886 = vst.msk [vmem:[%s443 + $0xa8] sm:$0xff] %vm2883, %v6538
      %6887 = vst.msk [vmem:[%s443 + $0xb0] sm:$0xff] %vm2883, %v6540
      %6888 = vst.msk [vmem:[%s443 + $0xb8] sm:$0xff] %vm2883, %v6542
      %6889 = vst.msk [vmem:[%s443 + $0xc0] sm:$0xff] %vm2883, %v6544
      %6890 = vst.msk [vmem:[%s443 + $0xc8] sm:$0xff] %vm2883, %v6546
      %6891 = vst.msk [vmem:[%s443 + $0xd0] sm:$0xff] %vm2883, %v6548
      %6892 = vst.msk [vmem:[%s443 + $0xd8] sm:$0xff] %vm2883, %v6550
      %6893 = vst.msk [vmem:[%s443 + $0xe0] sm:$0xff] %vm2883, %v6552
      %6894 = vst.msk [vmem:[%s443 + $0xe8] sm:$0xff] %vm2883, %v6554
      %6895 = vst.msk [vmem:[%s443 + $0xf0] sm:$0xff] %vm2883, %v6556
      %6896 = vst.msk [vmem:[%s443 + $0xf8] sm:$0xff] %vm2883, %v6558
      %6897 = vst.msk [vmem:[%s443 + $0x100] sm:$0xff] %vm2883, %v6560
      %6898 = vst.msk [vmem:[%s443 + $0x108] sm:$0xff] %vm2883, %v6562
      %6899 = vst.msk [vmem:[%s443 + $0x110] sm:$0xff] %vm2883, %v6564
      %6900 = vst.msk [vmem:[%s443 + $0x118] sm:$0xff] %vm2883, %v6566
      %6901 = vst.msk [vmem:[%s443 + $0x120] sm:$0xff] %vm2883, %v6568
      %6902 = vst.msk [vmem:[%s443 + $0x128] sm:$0xff] %vm2883, %v6570
      %6903 = vst.msk [vmem:[%s443 + $0x130] sm:$0xff] %vm2883, %v6572
      %6904 = vst.msk [vmem:[%s443 + $0x138] sm:$0xff] %vm2883, %v6574
      %6905 = vst.msk [vmem:[%s443 + $0x140] sm:$0xf] %vm6658, %v6576
      %6906 = vst.msk [vmem:[%s448] sm:$0xff] %vm2883, %v6702
      %6907 = vst.msk [vmem:[%s448 + $0x8] sm:$0xff] %vm2883, %v6704
      %6908 = vst.msk [vmem:[%s448 + $0x10] sm:$0xff] %vm2883, %v6706
      %6909 = vst.msk [vmem:[%s448 + $0x18] sm:$0xff] %vm2883, %v6708
      %6910 = vst.msk [vmem:[%s448 + $0x20] sm:$0xff] %vm2883, %v6710
      %6911 = vst.msk [vmem:[%s448 + $0x28] sm:$0xff] %vm2883, %v6712
      %6912 = vst.msk [vmem:[%s448 + $0x30] sm:$0xff] %vm2883, %v6714
      %6913 = vst.msk [vmem:[%s448 + $0x38] sm:$0xff] %vm2883, %v6716
      %6914 = vst.msk [vmem:[%s448 + $0x40] sm:$0xff] %vm2883, %v6718
      %6915 = vst.msk [vmem:[%s448 + $0x48] sm:$0xff] %vm2883, %v6720
      %6916 = vst.msk [vmem:[%s448 + $0x50] sm:$0xff] %vm2883, %v6722
      %6917 = vst.msk [vmem:[%s448 + $0x58] sm:$0xff] %vm2883, %v6724
      %6918 = vst.msk [vmem:[%s448 + $0x60] sm:$0xff] %vm2883, %v6726
      %6919 = vst.msk [vmem:[%s448 + $0x68] sm:$0xff] %vm2883, %v6728
      %6920 = vst.msk [vmem:[%s448 + $0x70] sm:$0xff] %vm2883, %v6730
      %6921 = vst.msk [vmem:[%s448 + $0x78] sm:$0xff] %vm2883, %v6732
      %6922 = vst.msk [vmem:[%s448 + $0x80] sm:$0xff] %vm2883, %v6734
      %6923 = vst.msk [vmem:[%s448 + $0x88] sm:$0xff] %vm2883, %v6736
      %6924 = vst.msk [vmem:[%s448 + $0x90] sm:$0xff] %vm2883, %v6738
      %6925 = vst.msk [vmem:[%s448 + $0x98] sm:$0xff] %vm2883, %v6740
      %6926 = vst.msk [vmem:[%s448 + $0xa0] sm:$0xff] %vm2883, %v6742
      %6927 = vst.msk [vmem:[%s448 + $0xa8] sm:$0xff] %vm2883, %v6744
      %6928 = vst.msk [vmem:[%s448 + $0xb0] sm:$0xff] %vm2883, %v6746
      %6929 = vst.msk [vmem:[%s448 + $0xb8] sm:$0xff] %vm2883, %v6748
      %6930 = vst.msk [vmem:[%s448 + $0xc0] sm:$0xff] %vm2883, %v6750
      %6931 = vst.msk [vmem:[%s448 + $0xc8] sm:$0xff] %vm2883, %v6752
      %6932 = vst.msk [vmem:[%s448 + $0xd0] sm:$0xff] %vm2883, %v6754
      %6933 = vst.msk [vmem:[%s448 + $0xd8] sm:$0xff] %vm2883, %v6756
      %6934 = vst.msk [vmem:[%s448 + $0xe0] sm:$0xff] %vm2883, %v6758
      %6935 = vst.msk [vmem:[%s448 + $0xe8] sm:$0xff] %vm2883, %v6760
      %6936 = vst.msk [vmem:[%s448 + $0xf0] sm:$0xff] %vm2883, %v6762
      %6937 = vst.msk [vmem:[%s448 + $0xf8] sm:$0xff] %vm2883, %v6764
      %6938 = vst.msk [vmem:[%s448 + $0x100] sm:$0xff] %vm2883, %v6766
      %6939 = vst.msk [vmem:[%s448 + $0x108] sm:$0xff] %vm2883, %v6768
      %6940 = vst.msk [vmem:[%s448 + $0x110] sm:$0xff] %vm2883, %v6770
      %6941 = vst.msk [vmem:[%s448 + $0x118] sm:$0xff] %vm2883, %v6772
      %6942 = vst.msk [vmem:[%s448 + $0x120] sm:$0xff] %vm2883, %v6774
      %6943 = vst.msk [vmem:[%s448 + $0x128] sm:$0xff] %vm2883, %v6776
      %6944 = vst.msk [vmem:[%s448 + $0x130] sm:$0xff] %vm2883, %v6778
      %6945 = vst.msk [vmem:[%s448 + $0x138] sm:$0xff] %vm2883, %v6780
      %6946 = vst.msk [vmem:[%s448 + $0x140] sm:$0xf] %vm6658, %v6782
      %p6947 = scmp.lt.s32.totalorder %s26, 1
      %s6948 = scalar_select %p6947, %s26, 1
      %p6949 = scmp.lt.s32.totalorder %s27, 3
      %s6950 = scalar_select %p6949, %s27, 3
      %s6951 = smul.addr %s6950, 41
      %s6952 = smul.addr %s6948, 164
      %s6953 = sadd.s32 %s6951, %s6952
      %s6954 = smul.addr %s6953, 8
      %s6955 = scalar_lea.vmem %s9, %s6954
      %p6956 = scmp.lt.s32.totalorder %s26, 1
      %s6957 = scalar_select %p6956, %s26, 1
      %s6958 = smul.addr %s6957, 41
      %s6959 = smul.addr %s6958, 8
      %s6960 = scalar_lea.vmem %s10, %s6959
      // Predicated region
      $region61: #{conv_lstm_block_forward.1} parent=55 // pred_check
        %p6961 = pneg %p260
      $region62: #{conv_lstm_block_forward.1} parent=55 // pred_check_branch
        %6963 = sbr.rel (%p6961) target = $region64
      $region63: #{conv_lstm_block_forward.1} parent=55 // pred_region
        _
      $region64: #{conv_lstm_block_forward.1} parent=55 // pred_fallthru
        _
      // Predicated region
      $region65: #{conv_lstm_block_forward.1} parent=55 // pred_check
        %p6964 = pneg %p286
      $region66: #{conv_lstm_block_forward.1} parent=55 // pred_check_branch
        %6966 = sbr.rel (%p6964) target = $region68
      $region67: #{conv_lstm_block_forward.1} parent=55 // pred_region
        _
      $region68: #{conv_lstm_block_forward.1} parent=55 // pred_fallthru
        _
    $region56: #{conv_lstm_block_forward.1} parent=5 // pred_fallthru
      _
    %p6967 = scmp.le.s32.totalorder 2, %s17
    // Predicated region
    $region69: #{conv_lstm_block_forward.1} parent=5 // pred_check
      %p6968 = pneg %p6967
    $region70: #{conv_lstm_block_forward.1} parent=5 // pred_check_branch
      %6970 = sbr.rel (%p6968) target = $region72
    $region71: #{conv_lstm_block_forward.1} parent=5 // pred_region
      %s6971 = ssub.s32 %s17, 2
      // Predicated region
      $region73: #{conv_lstm_block_forward.1} parent=71 // pred_check
        %p6972 = pneg %p266
      $region74: #{conv_lstm_block_forward.1} parent=71 // pred_check_branch
        %6974 = sbr.rel (%p6972) target = $region76
      $region75: #{conv_lstm_block_forward.1} parent=71 // pred_region
        %p6975 = scmp.lt.s32.totalorder %s28, 1
        %s6976 = scalar_select %p6975, %s28, 1
        %p6977 = scmp.lt.s32.totalorder %s29, 3
        %s6978 = scalar_select %p6977, %s29, 3
        %s6979 = smul.addr %s6978, 41
        %s6980 = smul.addr %s6976, 164
        %s6981 = sadd.s32 %s6979, %s6980
        %s6982 = smul.addr %s6981, 8
        %s6983 = scalar_lea.vmem %s9, %s6982
      $region76: #{conv_lstm_block_forward.1} parent=71 // pred_fallthru
        _
      // Predicated region
      $region77: #{conv_lstm_block_forward.1} parent=71 // pred_check
        %p6984 = pneg %p292
      $region78: #{conv_lstm_block_forward.1} parent=71 // pred_check_branch
        %6986 = sbr.rel (%p6984) target = $region80
      $region79: #{conv_lstm_block_forward.1} parent=71 // pred_region
        %p6987 = scmp.lt.s32.totalorder %s28, 1
        %s6988 = scalar_select %p6987, %s28, 1
        %s6989 = smul.addr %s6988, 41
        %s6990 = smul.addr %s6989, 8
        %s6991 = scalar_lea.vmem %s10, %s6990
      $region80: #{conv_lstm_block_forward.1} parent=71 // pred_fallthru
        _
    $region72: #{conv_lstm_block_forward.1} parent=5 // pred_fallthru
      _
  $region6: #{conv_lstm_block_forward.1} parent=0 // loop_footer
    %s21 = sadd.s32 1, %s17
  $region7: #{conv_lstm_block_forward.1} parent=0 // loop_footer_branch
    %16 = sbr.rel target = $region3
  $region8: #{conv_lstm_block_forward.1} parent=0 // loop_exit
    _

</llo_original>
